<compile_context>
chip_gen: v5e
topology: v5e:2x2
jax: 0.10.0
libtpu: 0.0.40
codegen_flags: <defaults>
</compile_context>

<pallas_src>
import functools
import math

import jax
import jax.numpy as jnp
from jax.experimental import pallas as pl
from jax.experimental.pallas import tpu as pltpu


# ----------------------------------------------------------------------------
# Generic fused dense kernel (single grid step; whole operand resident in VMEM)
# ----------------------------------------------------------------------------
def _dense_kernel(x_ref, w_ref, b_ref, o_ref, *, activation):
    y = jnp.dot(x_ref[...], w_ref[...], preferred_element_type=jnp.float32)
    y = y + b_ref[...]
    if activation == "relu":
        y = jnp.maximum(y, 0.0)
    o_ref[...] = y


def dense(x2d, w, b, activation="none"):
    """y = act(x2d @ w + b); x2d: [M, K], w: [K, N], b: [N]. One grid step."""
    M, K = x2d.shape
    Kw, N = w.shape
    assert K == Kw
    kernel = functools.partial(_dense_kernel, activation=activation)
    return pl.pallas_call(
        kernel,
        out_shape=jax.ShapeDtypeStruct((M, N), jnp.float32),
        grid=(1,),
        in_specs=[
            pl.BlockSpec((M, K), lambda i: (0, 0)),
            pl.BlockSpec((K, N), lambda i: (0, 0)),
            pl.BlockSpec((1, N), lambda i: (0, 0)),
        ],
        out_specs=pl.BlockSpec((M, N), lambda i: (0, 0)),
        compiler_params=pltpu.CompilerParams(dimension_semantics=("parallel",)),
        cost_estimate=pl.CostEstimate(
            flops=int(2 * M * K * N),
            transcendentals=0,
            bytes_accessed=int(4 * (M * K + K * N + M * N))),
    )(x2d, w, b.reshape(1, N))


# ----------------------------------------------------------------------------
# Fused embedding + DecoupleGate1 kernel
# (gate's 64->1 projection is a VPU reduction; no HBM intermediates)
# ----------------------------------------------------------------------------
def _embed_gate_kernel(hd_ref, gate_ref, ew_ref, eb_ref, w1_ref, b1_ref,
                       w2_ref, b2_ref, hdemb_ref, x1_ref, x2_ref):
    he = jnp.dot(hd_ref[...], ew_ref[...],
                 preferred_element_type=jnp.float32) + eb_ref[...]
    hid = jnp.maximum(
        jnp.dot(gate_ref[...], w1_ref[...],
                preferred_element_type=jnp.float32) + b1_ref[...], 0.0)
    gpre = jnp.sum(hid * w2_ref[...], axis=-1, keepdims=True) + b2_ref[...]
    g = jax.nn.sigmoid(gpre)
    x1 = g * he
    hdemb_ref[...] = he
    x1_ref[...] = x1
    x2_ref[...] = he - x1


def embed_gate(hd2d, gate2d, p):
    M, nf = hd2d.shape
    _, kg = gate2d.shape
    h = p["emb_w"].shape[1]
    gh = p["dg1_w1"].shape[1]
    out_sds = (jax.ShapeDtypeStruct((M, h), jnp.float32),) * 3
    return pl.pallas_call(
        _embed_gate_kernel,
        out_shape=out_sds,
        grid=(1,),
        in_specs=[
            pl.BlockSpec((M, nf), lambda i: (0, 0)),
            pl.BlockSpec((M, kg), lambda i: (0, 0)),
            pl.BlockSpec((nf, h), lambda i: (0, 0)),
            pl.BlockSpec((1, h), lambda i: (0, 0)),
            pl.BlockSpec((kg, gh), lambda i: (0, 0)),
            pl.BlockSpec((1, gh), lambda i: (0, 0)),
            pl.BlockSpec((1, gh), lambda i: (0, 0)),
            pl.BlockSpec((1, 1), lambda i: (0, 0)),
        ],
        out_specs=tuple(pl.BlockSpec((M, h), lambda i: (0, 0)) for _ in range(3)),
        compiler_params=pltpu.CompilerParams(dimension_semantics=("parallel",)),
    )(hd2d, gate2d, p["emb_w"], p["emb_b"].reshape(1, h),
      p["dg1_w1"], p["dg1_b1"].reshape(1, gh),
      p["dg1_w2"].reshape(1, gh), p["dg1_b2"].reshape(1, 1))


# ----------------------------------------------------------------------------
# SpaceTime graph: fused adjacency construction + (A+I) row normalization
# for both propagation directions, one grid step per batch.
# ----------------------------------------------------------------------------
def _spacetime_adj_kernel(fu_ref, fd_ref, w1_ref, b1_ref, w2_ref, b2_ref,
                          af_ref, ab_ref, *, alpha):
    fu = fu_ref[0]
    fd = fd_ref[0]
    e1 = jnp.tanh(alpha * (jnp.dot(fu, w1_ref[...],
                                   preferred_element_type=jnp.float32)
                           + b1_ref[...]))
    e2 = jnp.tanh(alpha * (jnp.dot(fd, w2_ref[...],
                                   preferred_element_type=jnp.float32)
                           + b2_ref[...]))
    nt = (((1,), (1,)), ((), ()))                         # contract last dims
    a_fwd = jnp.maximum(jnp.tanh(alpha * jax.lax.dot_general(
        e1, e2, nt, preferred_element_type=jnp.float32)), 0.0)
    a_bwd = jnp.maximum(jnp.tanh(alpha * jax.lax.dot_general(
        e2, e1, nt, preferred_element_type=jnp.float32)), 0.0)   # == a_fwd^T
    n = a_fwd.shape[0]
    rows = jax.lax.broadcasted_iota(jnp.int32, (n, n), 0)
    cols = jax.lax.broadcasted_iota(jnp.int32, (n, n), 1)
    eye = (rows == cols).astype(jnp.float32)
    af = a_fwd + eye
    ab = a_bwd + eye
    af_ref[0] = af / jnp.sum(af, axis=-1, keepdims=True)
    ab_ref[0] = ab / jnp.sum(ab, axis=-1, keepdims=True)


def spacetime_adjacency(feat_u, feat_d, w1, b1, w2, b2, alpha):
    B, N, K = feat_u.shape
    Dn = w1.shape[1]
    kernel = functools.partial(_spacetime_adj_kernel, alpha=alpha)
    return pl.pallas_call(
        kernel,
        out_shape=(jax.ShapeDtypeStruct((B, N, N), jnp.float32),) * 2,
        grid=(B,),
        in_specs=[
            pl.BlockSpec((1, N, K), lambda b: (b, 0, 0)),
            pl.BlockSpec((1, N, K), lambda b: (b, 0, 0)),
            pl.BlockSpec((K, Dn), lambda b: (0, 0)),
            pl.BlockSpec((1, Dn), lambda b: (0, 0)),
            pl.BlockSpec((K, Dn), lambda b: (0, 0)),
            pl.BlockSpec((1, Dn), lambda b: (0, 0)),
        ],
        out_specs=(pl.BlockSpec((1, N, N), lambda b: (b, 0, 0)),
                   pl.BlockSpec((1, N, N), lambda b: (b, 0, 0))),
        compiler_params=pltpu.CompilerParams(dimension_semantics=("parallel",)),
    )(feat_u, feat_d, w1, b1.reshape(1, Dn), w2, b2.reshape(1, Dn))


# ----------------------------------------------------------------------------
# Mixprop propagation: per batch, lane-dense [N, N] x [N, h*C] matmuls for
# both adjacency directions and both depths.  All intermediates stay in VMEM.
# ----------------------------------------------------------------------------
def _mixprop_prop_kernel(x_ref, af_ref, ab_ref, o_ref, *, prop_alpha):
    x = x_ref[0]                                           # [N, h*C]
    af = af_ref[0]
    ab = ab_ref[0]
    beta = 1.0 - prop_alpha
    h1f = prop_alpha * x + beta * jnp.dot(af, x, preferred_element_type=jnp.float32)
    h2f = prop_alpha * x + beta * jnp.dot(af, h1f, preferred_element_type=jnp.float32)
    h1b = prop_alpha * x + beta * jnp.dot(ab, x, preferred_element_type=jnp.float32)
    h2b = prop_alpha * x + beta * jnp.dot(ab, h1b, preferred_element_type=jnp.float32)
    o_ref[0, 0] = h1f
    o_ref[0, 1] = h2f
    o_ref[0, 2] = h1b
    o_ref[0, 3] = h2b


def mixprop_propagate(x_flat, a_fwd, a_bwd, prop_alpha):
    B, N, F = x_flat.shape
    kernel = functools.partial(_mixprop_prop_kernel, prop_alpha=prop_alpha)
    return pl.pallas_call(
        kernel,
        out_shape=jax.ShapeDtypeStruct((B, 4, N, F), jnp.float32),
        grid=(B,),
        in_specs=[
            pl.BlockSpec((1, N, F), lambda b: (b, 0, 0)),
            pl.BlockSpec((1, N, N), lambda b: (b, 0, 0)),
            pl.BlockSpec((1, N, N), lambda b: (b, 0, 0)),
        ],
        out_specs=pl.BlockSpec((1, 4, N, F), lambda b: (b, 0, 0, 0)),
        compiler_params=pltpu.CompilerParams(dimension_semantics=("parallel",)),
    )(x_flat, a_fwd, a_bwd)


# ----------------------------------------------------------------------------
# TFModule + end_conv_1 + end_conv_2 fused, one (b, n) tile per grid step.
# The TF MLP acts on the hidden (last) axis, the end convs on the channel axis
# of the same [C, 4h] tile, so fusing avoids a full-tensor transpose + two
# HBM round trips.
# ----------------------------------------------------------------------------
def _tf_endconv_kernel(x_ref, wt1_ref, bt1_ref, wt2_ref, bt2_ref,
                       we1_ref, be1_ref, we2_ref, be2_ref, o_ref):
    t = x_ref[0]                                           # [C=32, 4h]
    m = jnp.maximum(jnp.dot(t, wt1_ref[...],
                            preferred_element_type=jnp.float32) + bt1_ref[...], 0.0)
    m = jnp.dot(m, wt2_ref[...], preferred_element_type=jnp.float32) + bt2_ref[...]
    e = jnp.maximum(jnp.dot(we1_ref[...], m,
                            preferred_element_type=jnp.float32) + be1_ref[...], 0.0)
    e = jnp.dot(we2_ref[...], e, preferred_element_type=jnp.float32) + be2_ref[...]
    o_ref[0] = e                                           # [12, 4h]


def tf_endconv(tf_in, params):
    BN, C, W4 = tf_in.shape
    Ltf = params["tf_w1"].shape[1]
    we1t = params["ec1_w"].T                               # [128, 32]
    we2t = params["ec2_w"].T                               # [12, 128]
    E1 = we1t.shape[0]
    E2 = we2t.shape[0]
    return pl.pallas_call(
        _tf_endconv_kernel,
        out_shape=jax.ShapeDtypeStruct((BN, E2, W4), jnp.float32),
        grid=(BN,),
        in_specs=[
            pl.BlockSpec((1, C, W4), lambda i: (i, 0, 0)),
            pl.BlockSpec((W4, Ltf), lambda i: (0, 0)),
            pl.BlockSpec((1, Ltf), lambda i: (0, 0)),
            pl.BlockSpec((Ltf, W4), lambda i: (0, 0)),
            pl.BlockSpec((1, W4), lambda i: (0, 0)),
            pl.BlockSpec((E1, C), lambda i: (0, 0)),
            pl.BlockSpec((E1, 1), lambda i: (0, 0)),
            pl.BlockSpec((E2, E1), lambda i: (0, 0)),
            pl.BlockSpec((E2, 1), lambda i: (0, 0)),
        ],
        out_specs=pl.BlockSpec((1, E2, W4), lambda i: (i, 0, 0)),
        compiler_params=pltpu.CompilerParams(dimension_semantics=("parallel",)),
    )(tf_in, params["tf_w1"], params["tf_b1"].reshape(1, Ltf),
      params["tf_w2"], params["tf_b2"].reshape(1, W4),
      we1t, params["ec1_b"].reshape(E1, 1),
      we2t, params["ec2_b"].reshape(E2, 1))


# ----------------------------------------------------------------------------
# Forecast head: relu -> out_fc_1 -> relu -> out_fc_2 -> end_conv_3 fused,
# one (b, n) tile per grid step; only the final [4, 3] block is stored.
# ----------------------------------------------------------------------------
def _forecast_head_kernel(fh_ref, w1_ref, b1_ref, w2_ref, b2_ref,
                          w3_ref, b3_ref, o_ref):
    fh = jnp.maximum(fh_ref[0], 0.0)                       # [L=12, 128]
    f = jnp.maximum(jnp.dot(fh, w1_ref[...],
                            preferred_element_type=jnp.float32) + b1_ref[...], 0.0)
    f = jnp.dot(f, w2_ref[...], preferred_element_type=jnp.float32) + b2_ref[...]
    f = jnp.dot(w3_ref[...], f, preferred_element_type=jnp.float32) + b3_ref[...]
    o_ref[0] = f                                           # [4, 3]


def forecast_head(fh, params):
    BN, L, F = fh.shape
    H1 = params["fc1_w"].shape[1]
    O2 = params["fc2_w"].shape[1]
    w3t = params["ec3_w"].T                                # [4, 12]
    O3 = w3t.shape[0]
    return pl.pallas_call(
        _forecast_head_kernel,
        out_shape=jax.ShapeDtypeStruct((BN, O3, O2), jnp.float32),
        grid=(BN,),
        in_specs=[
            pl.BlockSpec((1, L, F), lambda i: (i, 0, 0)),
            pl.BlockSpec((F, H1), lambda i: (0, 0)),
            pl.BlockSpec((1, H1), lambda i: (0, 0)),
            pl.BlockSpec((H1, O2), lambda i: (0, 0)),
            pl.BlockSpec((1, O2), lambda i: (0, 0)),
            pl.BlockSpec((O3, L), lambda i: (0, 0)),
            pl.BlockSpec((O3, 1), lambda i: (0, 0)),
        ],
        out_specs=pl.BlockSpec((1, O3, O2), lambda i: (i, 0, 0)),
        compiler_params=pltpu.CompilerParams(dimension_semantics=("parallel",)),
    )(fh, params["fc1_w"], params["fc1_b"].reshape(1, H1),
      params["fc2_w"], params["fc2_b"].reshape(1, O2),
      w3t, params["ec3_b"].reshape(O3, 1))


# ----------------------------------------------------------------------------
# Parameters (deterministic synthetic init; same shapes as the PyTorch module)
# ----------------------------------------------------------------------------
def glorot(key, shape):
    fan_in, fan_out = shape[0], shape[-1]
    lim = math.sqrt(6.0 / (fan_in + fan_out))
    return jax.random.uniform(key, shape, jnp.float32, -lim, lim)


def init_params(key, cfg):
    h, te = cfg["num_hidden"], cfg["time_emb_dim"]
    Dn, N, nf = cfg["node_hidden"], cfg["num_nodes"], cfg["num_feat"]
    keys = iter(jax.random.split(key, 64))

    def W(shape):
        return glorot(next(keys), shape)

    def Z(n):
        return jnp.zeros((n,), jnp.float32)

    return {
        "T_i_D_emb": W((288, te)),
        "D_i_W_emb": W((7, te)),
        "node_emb_u": W((N, Dn)),
        "node_emb_d": W((N, Dn)),
        "emb_w": W((nf, h)), "emb_b": Z(h),
        # DecoupleGate1
        "dg1_w1": W((Dn + 2 * te, 64)), "dg1_b1": Z(64),
        "dg1_w2": W((64, 1)), "dg1_b2": Z(1),
        # SpaceTime_graph / SpaceTime_graph2
        "stg1_w1": W((2 * te + Dn, Dn)), "stg1_b1": Z(Dn),
        "stg1_w2": W((2 * te + Dn, Dn)), "stg1_b2": Z(Dn),
        "stg2_w1": W((2 * te + Dn, Dn)), "stg2_b1": Z(Dn),
        "stg2_w2": W((2 * te + Dn, Dn)), "stg2_b2": Z(Dn),
        # start conv (Conv2d 12 -> 32, 1x1)
        "start_w": W((12, 32)), "start_b": Z(32),
        # residualconv mlps ((gdep+1)*32 -> 32)
        "gconv1": [{"w": W((96, 32)), "b": Z(32)} for _ in range(2)],
        "gconv2": [{"w": W((96, 32)), "b": Z(32)} for _ in range(2)],
        # TFModule (4h -> 256 -> 4h)
        "tf_w1": W((4 * h, 256)), "tf_b1": Z(256),
        "tf_w2": W((256, 4 * h)), "tf_b2": Z(4 * h),
        # end convs
        "ec1_w": W((32, 128)), "ec1_b": Z(128),
        "ec2_w": W((128, 12)), "ec2_b": Z(12),
        "ec3_w": W((12, 4)), "ec3_b": Z(4),
        # output FCs
        "fc1_w": W((7 * h + 2 * te, 512)), "fc1_b": Z(512),
        "fc2_w": W((512, 3)), "fc2_b": Z(3),
    }


# ----------------------------------------------------------------------------
# Forward
# ----------------------------------------------------------------------------
def sfadnet_forward(params, history_data, cfg):
    B, L, N, _ = history_data.shape
    nf, h, te = cfg["num_feat"], cfg["num_hidden"], cfg["time_emb_dim"]
    Dn = cfg["node_hidden"]
    tanhalpha = 3.0
    propalpha = 0.05
    num_layers = 2
    C = 32                                                    # conv channels

    # ---- _prepare_inputs (embedding lookups stay in XLA) ----
    tid_idx = jnp.clip((history_data[..., nf] * 288.0).astype(jnp.int32), 0, 287)
    diw_idx = jnp.clip(history_data[..., nf + 1].astype(jnp.int32), 0, 6)
    tid_feat = params["T_i_D_emb"][tid_idx]                   # [B, L, N, te]
    diw_feat = params["D_i_W_emb"][diw_idx]
    hd = history_data[..., :nf]                               # [B, L, N, nf]

    # TODO(synk): graph_constructor output (`adp`) is dead code in the reference
    # forward (assigned, never used) -> not computed.

    M = B * L * N

    # ---- fused embedding + DecoupleGate1 ----
    # TODO(synk): DecoupleGate1 source not provided; sigmoid gate MLP on
    # [node_emb, time-of-day, day-of-week] multiplying the embedded history.
    ne_bc = jnp.broadcast_to(params["node_emb_u"][None, None], (B, L, N, Dn))
    gate_in = jnp.concatenate([ne_bc, tid_feat, diw_feat], -1).reshape(M, Dn + 2 * te)
    hd_emb2d, x1_2d, x2_2d = embed_gate(hd.reshape(M, nf), gate_in, params)
    hd_emb = hd_emb2d.reshape(B, L, N, h)
    x1 = x1_2d.reshape(B, L, N, h)
    x2 = x2_2d.reshape(B, L, N, h)

    # ---- SpaceTime graphs -> normalized adjacencies (fwd & transposed) ----
    # TODO(synk): SpaceTime_graph{,2} sources not provided; time-conditioned
    # MTGNN-style adjacency relu(tanh(alpha * E1 @ E2^T)); dropout = identity.
    tpool = jnp.concatenate([tid_feat, diw_feat], -1).mean(axis=1)      # [B, N, 2te]
    feat_u = jnp.concatenate(
        [tpool, jnp.broadcast_to(params["node_emb_u"][None], (B, N, Dn))], -1)
    feat_d = jnp.concatenate(
        [tpool, jnp.broadcast_to(params["node_emb_d"][None], (B, N, Dn))], -1)
    adj2_f, adj2_b = spacetime_adjacency(
        feat_u, feat_d, params["stg1_w1"], params["stg1_b1"],
        params["stg1_w2"], params["stg1_b2"], tanhalpha)
    adj3_f, adj3_b = spacetime_adjacency(
        feat_u, feat_d, params["stg2_w1"], params["stg2_b1"],
        params["stg2_w2"], params["stg2_b2"], tanhalpha)

    # ---- start conv (channels-last, both streams in one matmul) ----
    x1_cl = jnp.transpose(x1, (0, 2, 3, 1)).reshape(B * N * h, L)       # [B*N*h, 12]
    x2_cl = jnp.transpose(x2, (0, 2, 3, 1)).reshape(B * N * h, L)
    x12c = dense(jnp.concatenate([x1_cl, x2_cl], 0),
                 params["start_w"], params["start_b"], "relu")          # [2*B*N*h, 32]
    x1c = x12c[:B * N * h].reshape(B, N, h, C)
    x2c = x12c[B * N * h:].reshape(B, N, h, C)

    # ---- mixprop propagation: one lane-dense matmul set per batch ----
    # TODO(synk): residualconv source not provided; MTGNN mixprop assumed
    # (row-normalized A+I propagation, depth concat, 1x1 MLP).
    P1 = mixprop_propagate(x1c.reshape(B, N, h * C), adj2_f, adj2_b, propalpha)
    P2 = mixprop_propagate(x2c.reshape(B, N, h * C), adj3_f, adj3_b, propalpha)

    # ---- mixprop output MLPs: both layers & both streams in one matmul ----
    def _pixel_feats(P, xc):
        Pr = P.reshape(B, 4, N, h, C).transpose(0, 2, 3, 1, 4).reshape(B, N, h, 4 * C)
        return jnp.concatenate([xc, Pr], -1)                            # [B, N, h, 5C]

    feats = jnp.stack([_pixel_feats(P1, x1c), _pixel_feats(P2, x2c)], 0)
    feats = feats.reshape(2 * B * N * h, 5 * C)

    w_blocks, b_blocks = [], []
    for i in range(num_layers):
        W1 = params["gconv1"][i]["w"]
        W2 = params["gconv2"][i]["w"]
        w_blocks.append(jnp.concatenate(
            [W1[0:C] + W2[0:C], W1[C:2 * C], W1[2 * C:3 * C],
             W2[C:2 * C], W2[2 * C:3 * C]], axis=0))                    # [5C, C]
        b_blocks.append(params["gconv1"][i]["b"] + params["gconv2"][i]["b"])
    w_comb = jnp.concatenate(w_blocks, axis=1)                          # [5C, 2C]
    b_comb = jnp.concatenate(b_blocks, axis=0)
    hmlp = dense(feats, w_comb, b_comb)                                 # [2*B*N*h, 2C]
    hmlp = hmlp.reshape(2, B, N, h, num_layers, C)

    # out = cat([H_1^(0), H_2^(0), H_1^(1), H_2^(1)], dim=-1) as (b,n) tiles [C, 4h]
    tf_in = hmlp.transpose(1, 2, 5, 4, 0, 3).reshape(B * N, C, num_layers * 2 * h)

    # ---- TFModule + end_conv_1 + end_conv_2 (fused) ----
    # TODO(synk): TFModule source not provided; 2-layer MLP (4h -> 256 -> 4h).
    ec_out = tf_endconv(tf_in, params)                                  # [B*N, 12, 4h]
    x_ec = ec_out.reshape(B, N, L, num_layers * 2 * h)

    # ---- forecast head: fc1 -> relu -> fc2 -> end_conv_3 (fused) ----
    def to_bn(t):                                                       # [B,L,N,F] -> [B,N,L,F]
        return jnp.transpose(t, (0, 2, 1, 3))

    fh = jnp.concatenate([to_bn(x1), to_bn(x2), x_ec, to_bn(tid_feat),
                          to_bn(diw_feat), to_bn(hd_emb)], -1)          # [B,N,12,7h+2te]
    fh = fh.reshape(B * N, L, fh.shape[-1])
    out = forecast_head(fh, params)                                     # [B*N, 4, 3]
    return out.reshape(B, N, 12)


# ----------------------------------------------------------------------------
# Demo
# ----------------------------------------------------------------------------
if __name__ == "__main__":
    cfg = dict(num_feat=2, num_hidden=16, node_hidden=8, time_emb_dim=8,
               num_nodes=8, k_s=2, k_t=2)
    B, L, N = 2, 12, cfg["num_nodes"]   # L fixed to 12 by start_conv/end_conv_3

    key = jax.random.PRNGKey(0)
    k1, k2, k3, kp = jax.random.split(key, 4)
    flow = jax.random.normal(k1, (B, L, N, cfg["num_feat"]), jnp.float32)
    tid = jax.random.uniform(k2, (B, L, N, 1), jnp.float32)
    diw = jax.random.randint(k3, (B, L, N, 1), 0, 7).astype(jnp.float32)
    history_data = jnp.concatenate([flow, tid, diw], -1)                # [2, 12, 8, 4]

    params = init_params(kp, cfg)

    fwd = jax.jit(functools.partial(sfadnet_forward, cfg=cfg))
    y = fwd(params, history_data)
    jax.block_until_ready(y)

    assert y.shape == (B, N, 12), y.shape
    assert bool(jnp.all(jnp.isfinite(y)))
    print("KERNEL_OK")
</pallas_src>

<mosaic_0001>
module attributes {stable_mosaic.version = 11 : i64} {
  func.func @_embed_gate_kernel(%arg0: i32, %arg1: memref<192x2xf32, #tpu.memory_space<vmem>>, %arg2: memref<192x24xf32, #tpu.memory_space<vmem>>, %arg3: memref<2x16xf32, #tpu.memory_space<vmem>>, %arg4: memref<1x16xf32, #tpu.memory_space<vmem>>, %arg5: memref<24x64xf32, #tpu.memory_space<vmem>>, %arg6: memref<1x64xf32, #tpu.memory_space<vmem>>, %arg7: memref<1x64xf32, #tpu.memory_space<vmem>>, %arg8: memref<1x1xf32, #tpu.memory_space<vmem>>, %arg9: memref<192x16xf32, #tpu.memory_space<vmem>>, %arg10: memref<192x16xf32, #tpu.memory_space<vmem>>, %arg11: memref<192x16xf32, #tpu.memory_space<vmem>>) attributes {dimension_semantics = [#tpu.dimension_semantics<parallel>], iteration_bounds = array<i64: 1>, scalar_prefetch = 0 : i64, scratch_operands = 0 : i64, tpu.core_type = #tpu.core_type<tc>, window_params = [{pipeline_mode = #tpu.pipeline_mode<synchronous>, transform_indices = @transform_0, window_bounds = array<i64: 192, 2>}, {pipeline_mode = #tpu.pipeline_mode<synchronous>, transform_indices = @transform_1, window_bounds = array<i64: 192, 24>}, {pipeline_mode = #tpu.pipeline_mode<synchronous>, transform_indices = @transform_2, window_bounds = array<i64: 2, 16>}, {pipeline_mode = #tpu.pipeline_mode<synchronous>, transform_indices = @transform_3, window_bounds = array<i64: 1, 16>}, {pipeline_mode = #tpu.pipeline_mode<synchronous>, transform_indices = @transform_4, window_bounds = array<i64: 24, 64>}, {pipeline_mode = #tpu.pipeline_mode<synchronous>, transform_indices = @transform_5, window_bounds = array<i64: 1, 64>}, {pipeline_mode = #tpu.pipeline_mode<synchronous>, transform_indices = @transform_6, window_bounds = array<i64: 1, 64>}, {pipeline_mode = #tpu.pipeline_mode<synchronous>, transform_indices = @transform_7, window_bounds = array<i64: 1, 1>}, {pipeline_mode = #tpu.pipeline_mode<synchronous>, transform_indices = @transform_8, window_bounds = array<i64: 192, 16>}, {pipeline_mode = #tpu.pipeline_mode<synchronous>, transform_indices = @transform_9, window_bounds = array<i64: 192, 16>}, {pipeline_mode = #tpu.pipeline_mode<synchronous>, transform_indices = @transform_10, window_bounds = array<i64: 192, 16>}]} {
    %c0 = arith.constant 0 : index
    %c0_0 = arith.constant 0 : index
    %0 = vector.load %arg1[%c0, %c0_0] : memref<192x2xf32, #tpu.memory_space<vmem>>, vector<192x2xf32>
    %c0_1 = arith.constant 0 : index
    %c0_2 = arith.constant 0 : index
    %1 = vector.load %arg3[%c0_1, %c0_2] : memref<2x16xf32, #tpu.memory_space<vmem>>, vector<2x16xf32>
    %cst = arith.constant dense<0.000000e+00> : vector<192x16xf32>
    %2 = tpu.matmul %0, %1, %cst {dimension_numbers = #tpu.dot_dimension_numbers<[1], [0], [0], [1], [0, 0, 1, 1], [], []>} : vector<192x2xf32>, vector<2x16xf32>, vector<192x16xf32> -> vector<192x16xf32>
    %c0_3 = arith.constant 0 : index
    %c0_4 = arith.constant 0 : index
    %3 = vector.load %arg4[%c0_3, %c0_4] : memref<1x16xf32, #tpu.memory_space<vmem>>, vector<1x16xf32>
    %4 = vector.broadcast %3 : vector<1x16xf32> to vector<192x16xf32>
    %5 = arith.addf %2, %4 : vector<192x16xf32>
    %c0_5 = arith.constant 0 : index
    %c0_6 = arith.constant 0 : index
    %6 = vector.load %arg2[%c0_5, %c0_6] : memref<192x24xf32, #tpu.memory_space<vmem>>, vector<192x24xf32>
    %c0_7 = arith.constant 0 : index
    %c0_8 = arith.constant 0 : index
    %7 = vector.load %arg5[%c0_7, %c0_8] : memref<24x64xf32, #tpu.memory_space<vmem>>, vector<24x64xf32>
    %cst_9 = arith.constant dense<0.000000e+00> : vector<192x64xf32>
    %8 = tpu.matmul %6, %7, %cst_9 {dimension_numbers = #tpu.dot_dimension_numbers<[1], [0], [0], [1], [0, 0, 1, 1], [], []>} : vector<192x24xf32>, vector<24x64xf32>, vector<192x64xf32> -> vector<192x64xf32>
    %c0_10 = arith.constant 0 : index
    %c0_11 = arith.constant 0 : index
    %9 = vector.load %arg6[%c0_10, %c0_11] : memref<1x64xf32, #tpu.memory_space<vmem>>, vector<1x64xf32>
    %10 = vector.broadcast %9 : vector<1x64xf32> to vector<192x64xf32>
    %11 = arith.addf %8, %10 : vector<192x64xf32>
    %cst_12 = arith.constant 0.000000e+00 : f32
    %12 = vector.broadcast %cst_12 : f32 to vector<192x64xf32>
    %13 = arith.maximumf %11, %12 : vector<192x64xf32>
    %c0_13 = arith.constant 0 : index
    %c0_14 = arith.constant 0 : index
    %14 = vector.load %arg7[%c0_13, %c0_14] : memref<1x64xf32, #tpu.memory_space<vmem>>, vector<1x64xf32>
    %15 = vector.broadcast %14 : vector<1x64xf32> to vector<192x64xf32>
    %16 = arith.mulf %13, %15 : vector<192x64xf32>
    %cst_15 = arith.constant dense<0.000000e+00> : vector<192xf32>
    %17 = vector.multi_reduction <add>, %16, %cst_15 [1] : vector<192x64xf32> to vector<192xf32>
    %18 = vector.shape_cast %17 : vector<192xf32> to vector<192x1xf32>
    %c0_16 = arith.constant 0 : index
    %c0_17 = arith.constant 0 : index
    %19 = vector.load %arg8[%c0_16, %c0_17] : memref<1x1xf32, #tpu.memory_space<vmem>>, vector<1x1xf32>
    %20 = vector.broadcast %19 : vector<1x1xf32> to vector<192x1xf32>
    %21 = arith.addf %18, %20 : vector<192x1xf32>
    %22 = arith.negf %21 : vector<192x1xf32>
    %23 = math.exp %22 : vector<192x1xf32>
    %cst_18 = arith.constant 1.000000e+00 : f32
    %24 = vector.broadcast %cst_18 : f32 to vector<192x1xf32>
    %25 = arith.addf %24, %23 : vector<192x1xf32>
    %26 = arith.divf %24, %25 : vector<192x1xf32>
    %27 = vector.broadcast %26 : vector<192x1xf32> to vector<192x16xf32>
    %28 = arith.mulf %27, %5 : vector<192x16xf32>
    %c0_19 = arith.constant 0 : index
    %c0_20 = arith.constant 0 : index
    %29 = vector.load %arg9[%c0_19, %c0_20] : memref<192x16xf32, #tpu.memory_space<vmem>>, vector<192x16xf32>
    tpu.vector_store %arg9[%c0_19, %c0_20], %5 {strides = array<i32>} : memref<192x16xf32, #tpu.memory_space<vmem>>, vector<192x16xf32>,
    %c0_21 = arith.constant 0 : index
    %c0_22 = arith.constant 0 : index
    %30 = vector.load %arg10[%c0_21, %c0_22] : memref<192x16xf32, #tpu.memory_space<vmem>>, vector<192x16xf32>
    tpu.vector_store %arg10[%c0_21, %c0_22], %28 {strides = array<i32>} : memref<192x16xf32, #tpu.memory_space<vmem>>, vector<192x16xf32>,
    %31 = arith.subf %5, %28 : vector<192x16xf32>
    %c0_23 = arith.constant 0 : index
    %c0_24 = arith.constant 0 : index
    %32 = vector.load %arg11[%c0_23, %c0_24] : memref<192x16xf32, #tpu.memory_space<vmem>>, vector<192x16xf32>
    tpu.vector_store %arg11[%c0_23, %c0_24], %31 {strides = array<i32>} : memref<192x16xf32, #tpu.memory_space<vmem>>, vector<192x16xf32>,
    return
  }
  func.func @transform_0(%arg0: i32) -> (i32, i32) {
    %c0_i32 = arith.constant 0 : i32
    %c0_i32_0 = arith.constant 0 : i32
    %c0_i32_1 = arith.constant 0 : i32
    return %c0_i32, %c0_i32_0 : i32, i32
  }
  func.func @transform_1(%arg0: i32) -> (i32, i32) {
    %c0_i32 = arith.constant 0 : i32
    %c0_i32_0 = arith.constant 0 : i32
    %c0_i32_1 = arith.constant 0 : i32
    return %c0_i32, %c0_i32_0 : i32, i32
  }
  func.func @transform_2(%arg0: i32) -> (i32, i32) {
    %c0_i32 = arith.constant 0 : i32
    %c0_i32_0 = arith.constant 0 : i32
    %c0_i32_1 = arith.constant 0 : i32
    return %c0_i32, %c0_i32_0 : i32, i32
  }
  func.func @transform_3(%arg0: i32) -> (i32, i32) {
    %c0_i32 = arith.constant 0 : i32
    %c0_i32_0 = arith.constant 0 : i32
    %c0_i32_1 = arith.constant 0 : i32
    return %c0_i32, %c0_i32_0 : i32, i32
  }
  func.func @transform_4(%arg0: i32) -> (i32, i32) {
    %c0_i32 = arith.constant 0 : i32
    %c0_i32_0 = arith.constant 0 : i32
    %c0_i32_1 = arith.constant 0 : i32
    return %c0_i32, %c0_i32_0 : i32, i32
  }
  func.func @transform_5(%arg0: i32) -> (i32, i32) {
    %c0_i32 = arith.constant 0 : i32
    %c0_i32_0 = arith.constant 0 : i32
    %c0_i32_1 = arith.constant 0 : i32
    return %c0_i32, %c0_i32_0 : i32, i32
  }
  func.func @transform_6(%arg0: i32) -> (i32, i32) {
    %c0_i32 = arith.constant 0 : i32
    %c0_i32_0 = arith.constant 0 : i32
    %c0_i32_1 = arith.constant 0 : i32
    return %c0_i32, %c0_i32_0 : i32, i32
  }
  func.func @transform_7(%arg0: i32) -> (i32, i32) {
    %c0_i32 = arith.constant 0 : i32
    %c0_i32_0 = arith.constant 0 : i32
    %c0_i32_1 = arith.constant 0 : i32
    return %c0_i32, %c0_i32_0 : i32, i32
  }
  func.func @transform_8(%arg0: i32) -> (i32, i32) {
    %c0_i32 = arith.constant 0 : i32
    %c0_i32_0 = arith.constant 0 : i32
    %c0_i32_1 = arith.constant 0 : i32
    return %c0_i32, %c0_i32_0 : i32, i32
  }
  func.func @transform_9(%arg0: i32) -> (i32, i32) {
    %c0_i32 = arith.constant 0 : i32
    %c0_i32_0 = arith.constant 0 : i32
    %c0_i32_1 = arith.constant 0 : i32
    return %c0_i32, %c0_i32_0 : i32, i32
  }
  func.func @transform_10(%arg0: i32) -> (i32, i32) {
    %c0_i32 = arith.constant 0 : i32
    %c0_i32_0 = arith.constant 0 : i32
    %c0_i32_1 = arith.constant 0 : i32
    return %c0_i32, %c0_i32_0 : i32, i32
  }
}

module attributes {stable_mosaic.version = 11 : i64} {
  func.func @_dense_kernel(%arg0: i32, %arg1: memref<512x12xf32, #tpu.memory_space<vmem>>, %arg2: memref<12x32xf32, #tpu.memory_space<vmem>>, %arg3: memref<1x32xf32, #tpu.memory_space<vmem>>, %arg4: memref<512x32xf32, #tpu.memory_space<vmem>>) attributes {dimension_semantics = [#tpu.dimension_semantics<parallel>], iteration_bounds = array<i64: 1>, scalar_prefetch = 0 : i64, scratch_operands = 0 : i64, tpu.core_type = #tpu.core_type<tc>, window_params = [{pipeline_mode = #tpu.pipeline_mode<synchronous>, transform_indices = @transform_0, window_bounds = array<i64: 512, 12>}, {pipeline_mode = #tpu.pipeline_mode<synchronous>, transform_indices = @transform_1, window_bounds = array<i64: 12, 32>}, {pipeline_mode = #tpu.pipeline_mode<synchronous>, transform_indices = @transform_2, window_bounds = array<i64: 1, 32>}, {pipeline_mode = #tpu.pipeline_mode<synchronous>, transform_indices = @transform_3, window_bounds = array<i64: 512, 32>}]} {
    %c0 = arith.constant 0 : index
    %c0_0 = arith.constant 0 : index
    %0 = vector.load %arg1[%c0, %c0_0] : memref<512x12xf32, #tpu.memory_space<vmem>>, vector<512x12xf32>
    %c0_1 = arith.constant 0 : index
    %c0_2 = arith.constant 0 : index
    %1 = vector.load %arg2[%c0_1, %c0_2] : memref<12x32xf32, #tpu.memory_space<vmem>>, vector<12x32xf32>
    %cst = arith.constant dense<0.000000e+00> : vector<512x32xf32>
    %2 = tpu.matmul %0, %1, %cst {dimension_numbers = #tpu.dot_dimension_numbers<[1], [0], [0], [1], [0, 0, 1, 1], [], []>} : vector<512x12xf32>, vector<12x32xf32>, vector<512x32xf32> -> vector<512x32xf32>
    %c0_3 = arith.constant 0 : index
    %c0_4 = arith.constant 0 : index
    %3 = vector.load %arg3[%c0_3, %c0_4] : memref<1x32xf32, #tpu.memory_space<vmem>>, vector<1x32xf32>
    %4 = vector.broadcast %3 : vector<1x32xf32> to vector<512x32xf32>
    %5 = arith.addf %2, %4 : vector<512x32xf32>
    %cst_5 = arith.constant 0.000000e+00 : f32
    %6 = vector.broadcast %cst_5 : f32 to vector<512x32xf32>
    %7 = arith.maximumf %5, %6 : vector<512x32xf32>
    %c0_6 = arith.constant 0 : index
    %c0_7 = arith.constant 0 : index
    %8 = vector.load %arg4[%c0_6, %c0_7] : memref<512x32xf32, #tpu.memory_space<vmem>>, vector<512x32xf32>
    tpu.vector_store %arg4[%c0_6, %c0_7], %7 {strides = array<i32>} : memref<512x32xf32, #tpu.memory_space<vmem>>, vector<512x32xf32>,
    return
  }
  func.func @transform_0(%arg0: i32) -> (i32, i32) {
    %c0_i32 = arith.constant 0 : i32
    %c0_i32_0 = arith.constant 0 : i32
    %c0_i32_1 = arith.constant 0 : i32
    return %c0_i32, %c0_i32_0 : i32, i32
  }
  func.func @transform_1(%arg0: i32) -> (i32, i32) {
    %c0_i32 = arith.constant 0 : i32
    %c0_i32_0 = arith.constant 0 : i32
    %c0_i32_1 = arith.constant 0 : i32
    return %c0_i32, %c0_i32_0 : i32, i32
  }
  func.func @transform_2(%arg0: i32) -> (i32, i32) {
    %c0_i32 = arith.constant 0 : i32
    %c0_i32_0 = arith.constant 0 : i32
    %c0_i32_1 = arith.constant 0 : i32
    return %c0_i32, %c0_i32_0 : i32, i32
  }
  func.func @transform_3(%arg0: i32) -> (i32, i32) {
    %c0_i32 = arith.constant 0 : i32
    %c0_i32_0 = arith.constant 0 : i32
    %c0_i32_1 = arith.constant 0 : i32
    return %c0_i32, %c0_i32_0 : i32, i32
  }
}

module attributes {stable_mosaic.version = 11 : i64} {
  func.func @_spacetime_adj_kernel(%arg0: i32, %arg1: memref<1x8x24xf32, #tpu.memory_space<vmem>>, %arg2: memref<1x8x24xf32, #tpu.memory_space<vmem>>, %arg3: memref<24x8xf32, #tpu.memory_space<vmem>>, %arg4: memref<1x8xf32, #tpu.memory_space<vmem>>, %arg5: memref<24x8xf32, #tpu.memory_space<vmem>>, %arg6: memref<1x8xf32, #tpu.memory_space<vmem>>, %arg7: memref<1x8x8xf32, #tpu.memory_space<vmem>>, %arg8: memref<1x8x8xf32, #tpu.memory_space<vmem>>) attributes {dimension_semantics = [#tpu.dimension_semantics<parallel>], iteration_bounds = array<i64: 2>, scalar_prefetch = 0 : i64, scratch_operands = 0 : i64, tpu.core_type = #tpu.core_type<tc>, window_params = [{transform_indices = @transform_0, window_bounds = array<i64: 1, 8, 24>}, {transform_indices = @transform_1, window_bounds = array<i64: 1, 8, 24>}, {pipeline_mode = #tpu.pipeline_mode<synchronous>, transform_indices = @transform_2, window_bounds = array<i64: 24, 8>}, {pipeline_mode = #tpu.pipeline_mode<synchronous>, transform_indices = @transform_3, window_bounds = array<i64: 1, 8>}, {pipeline_mode = #tpu.pipeline_mode<synchronous>, transform_indices = @transform_4, window_bounds = array<i64: 24, 8>}, {pipeline_mode = #tpu.pipeline_mode<synchronous>, transform_indices = @transform_5, window_bounds = array<i64: 1, 8>}, {transform_indices = @transform_6, window_bounds = array<i64: 1, 8, 8>}, {transform_indices = @transform_7, window_bounds = array<i64: 1, 8, 8>}]} {
    %c0 = arith.constant 0 : index
    %c0_0 = arith.constant 0 : index
    %c0_1 = arith.constant 0 : index
    %0 = vector.load %arg1[%c0, %c0_0, %c0_1] : memref<1x8x24xf32, #tpu.memory_space<vmem>>, vector<1x8x24xf32>
    %1 = vector.shape_cast %0 : vector<1x8x24xf32> to vector<8x24xf32>
    %c0_2 = arith.constant 0 : index
    %c0_3 = arith.constant 0 : index
    %c0_4 = arith.constant 0 : index
    %2 = vector.load %arg2[%c0_2, %c0_3, %c0_4] : memref<1x8x24xf32, #tpu.memory_space<vmem>>, vector<1x8x24xf32>
    %3 = vector.shape_cast %2 : vector<1x8x24xf32> to vector<8x24xf32>
    %c0_5 = arith.constant 0 : index
    %c0_6 = arith.constant 0 : index
    %4 = vector.load %arg3[%c0_5, %c0_6] : memref<24x8xf32, #tpu.memory_space<vmem>>, vector<24x8xf32>
    %cst = arith.constant dense<0.000000e+00> : vector<8x8xf32>
    %5 = tpu.matmul %1, %4, %cst {dimension_numbers = #tpu.dot_dimension_numbers<[1], [0], [0], [1], [0, 0, 1, 1], [], []>} : vector<8x24xf32>, vector<24x8xf32>, vector<8x8xf32> -> vector<8x8xf32>
    %c0_7 = arith.constant 0 : index
    %c0_8 = arith.constant 0 : index
    %6 = vector.load %arg4[%c0_7, %c0_8] : memref<1x8xf32, #tpu.memory_space<vmem>>, vector<1x8xf32>
    %7 = vector.broadcast %6 : vector<1x8xf32> to vector<8x8xf32>
    %8 = arith.addf %5, %7 : vector<8x8xf32>
    %cst_9 = arith.constant 3.000000e+00 : f32
    %9 = vector.broadcast %cst_9 : f32 to vector<8x8xf32>
    %10 = arith.mulf %9, %8 : vector<8x8xf32>
    %11 = math.tanh %10 : vector<8x8xf32>
    %c0_10 = arith.constant 0 : index
    %c0_11 = arith.constant 0 : index
    %12 = vector.load %arg5[%c0_10, %c0_11] : memref<24x8xf32, #tpu.memory_space<vmem>>, vector<24x8xf32>
    %cst_12 = arith.constant dense<0.000000e+00> : vector<8x8xf32>
    %13 = tpu.matmul %3, %12, %cst_12 {dimension_numbers = #tpu.dot_dimension_numbers<[1], [0], [0], [1], [0, 0, 1, 1], [], []>} : vector<8x24xf32>, vector<24x8xf32>, vector<8x8xf32> -> vector<8x8xf32>
    %c0_13 = arith.constant 0 : index
    %c0_14 = arith.constant 0 : index
    %14 = vector.load %arg6[%c0_13, %c0_14] : memref<1x8xf32, #tpu.memory_space<vmem>>, vector<1x8xf32>
    %15 = vector.broadcast %14 : vector<1x8xf32> to vector<8x8xf32>
    %16 = arith.addf %13, %15 : vector<8x8xf32>
    %cst_15 = arith.constant 3.000000e+00 : f32
    %17 = vector.broadcast %cst_15 : f32 to vector<8x8xf32>
    %18 = arith.mulf %17, %16 : vector<8x8xf32>
    %19 = math.tanh %18 : vector<8x8xf32>
    %cst_16 = arith.constant dense<0.000000e+00> : vector<8x8xf32>
    %20 = tpu.matmul %11, %19, %cst_16 {dimension_numbers = #tpu.dot_dimension_numbers<[1], [1], [0], [0], [0, 0, 1, 0], [], []>} : vector<8x8xf32>, vector<8x8xf32>, vector<8x8xf32> -> vector<8x8xf32>
    %cst_17 = arith.constant 3.000000e+00 : f32
    %21 = vector.broadcast %cst_17 : f32 to vector<8x8xf32>
    %22 = arith.mulf %21, %20 : vector<8x8xf32>
    %23 = math.tanh %22 : vector<8x8xf32>
    %cst_18 = arith.constant 0.000000e+00 : f32
    %24 = vector.broadcast %cst_18 : f32 to vector<8x8xf32>
    %25 = arith.maximumf %23, %24 : vector<8x8xf32>
    %cst_19 = arith.constant dense<0.000000e+00> : vector<8x8xf32>
    %26 = tpu.matmul %19, %11, %cst_19 {dimension_numbers = #tpu.dot_dimension_numbers<[1], [1], [0], [0], [0, 0, 1, 0], [], []>} : vector<8x8xf32>, vector<8x8xf32>, vector<8x8xf32> -> vector<8x8xf32>
    %cst_20 = arith.constant 3.000000e+00 : f32
    %27 = vector.broadcast %cst_20 : f32 to vector<8x8xf32>
    %28 = arith.mulf %27, %26 : vector<8x8xf32>
    %29 = math.tanh %28 : vector<8x8xf32>
    %cst_21 = arith.constant 0.000000e+00 : f32
    %30 = vector.broadcast %cst_21 : f32 to vector<8x8xf32>
    %31 = arith.maximumf %29, %30 : vector<8x8xf32>
    %32 = tpu.iota {dimensions = array<i32: 0>} : vector<8x8xi32>
    %33 = tpu.iota {dimensions = array<i32: 1>} : vector<8x8xi32>
    %34 = arith.cmpi eq, %32, %33 : vector<8x8xi32>
    %35 = arith.extui %34 : vector<8x8xi1> to vector<8x8xi32>
    %36 = arith.sitofp %35 : vector<8x8xi32> to vector<8x8xf32>
    %37 = arith.addf %25, %36 : vector<8x8xf32>
    %38 = arith.addf %31, %36 : vector<8x8xf32>
    %cst_22 = arith.constant dense<0.000000e+00> : vector<8xf32>
    %39 = vector.multi_reduction <add>, %37, %cst_22 [1] : vector<8x8xf32> to vector<8xf32>
    %40 = vector.shape_cast %39 : vector<8xf32> to vector<8x1xf32>
    %41 = vector.broadcast %40 : vector<8x1xf32> to vector<8x8xf32>
    %42 = arith.divf %37, %41 : vector<8x8xf32>
    %c0_23 = arith.constant 0 : index
    %c0_24 = arith.constant 0 : index
    %c0_25 = arith.constant 0 : index
    %43 = vector.load %arg7[%c0_23, %c0_24, %c0_25] : memref<1x8x8xf32, #tpu.memory_space<vmem>>, vector<1x8x8xf32>
    %44 = vector.shape_cast %43 : vector<1x8x8xf32> to vector<8x8xf32>
    %45 = vector.shape_cast %42 : vector<8x8xf32> to vector<1x8x8xf32>
    tpu.vector_store %arg7[%c0_23, %c0_24, %c0_25], %45 {strides = array<i32>} : memref<1x8x8xf32, #tpu.memory_space<vmem>>, vector<1x8x8xf32>,
    %cst_26 = arith.constant dense<0.000000e+00> : vector<8xf32>
    %46 = vector.multi_reduction <add>, %38, %cst_26 [1] : vector<8x8xf32> to vector<8xf32>
    %47 = vector.shape_cast %46 : vector<8xf32> to vector<8x1xf32>
    %48 = vector.broadcast %47 : vector<8x1xf32> to vector<8x8xf32>
    %49 = arith.divf %38, %48 : vector<8x8xf32>
    %c0_27 = arith.constant 0 : index
    %c0_28 = arith.constant 0 : index
    %c0_29 = arith.constant 0 : index
    %50 = vector.load %arg8[%c0_27, %c0_28, %c0_29] : memref<1x8x8xf32, #tpu.memory_space<vmem>>, vector<1x8x8xf32>
    %51 = vector.shape_cast %50 : vector<1x8x8xf32> to vector<8x8xf32>
    %52 = vector.shape_cast %49 : vector<8x8xf32> to vector<1x8x8xf32>
    tpu.vector_store %arg8[%c0_27, %c0_28, %c0_29], %52 {strides = array<i32>} : memref<1x8x8xf32, #tpu.memory_space<vmem>>, vector<1x8x8xf32>,
    return
  }
  func.func @transform_0(%arg0: i32) -> (i32, i32, i32) {
    %c0_i32 = arith.constant 0 : i32
    %c0_i32_0 = arith.constant 0 : i32
    %c0_i32_1 = arith.constant 0 : i32
    return %arg0, %c0_i32, %c0_i32_0 : i32, i32, i32
  }
  func.func @transform_1(%arg0: i32) -> (i32, i32, i32) {
    %c0_i32 = arith.constant 0 : i32
    %c0_i32_0 = arith.constant 0 : i32
    %c0_i32_1 = arith.constant 0 : i32
    return %arg0, %c0_i32, %c0_i32_0 : i32, i32, i32
  }
  func.func @transform_2(%arg0: i32) -> (i32, i32) {
    %c0_i32 = arith.constant 0 : i32
    %c0_i32_0 = arith.constant 0 : i32
    %c0_i32_1 = arith.constant 0 : i32
    return %c0_i32, %c0_i32_0 : i32, i32
  }
  func.func @transform_3(%arg0: i32) -> (i32, i32) {
    %c0_i32 = arith.constant 0 : i32
    %c0_i32_0 = arith.constant 0 : i32
    %c0_i32_1 = arith.constant 0 : i32
    return %c0_i32, %c0_i32_0 : i32, i32
  }
  func.func @transform_4(%arg0: i32) -> (i32, i32) {
    %c0_i32 = arith.constant 0 : i32
    %c0_i32_0 = arith.constant 0 : i32
    %c0_i32_1 = arith.constant 0 : i32
    return %c0_i32, %c0_i32_0 : i32, i32
  }
  func.func @transform_5(%arg0: i32) -> (i32, i32) {
    %c0_i32 = arith.constant 0 : i32
    %c0_i32_0 = arith.constant 0 : i32
    %c0_i32_1 = arith.constant 0 : i32
    return %c0_i32, %c0_i32_0 : i32, i32
  }
  func.func @transform_6(%arg0: i32) -> (i32, i32, i32) {
    %c0_i32 = arith.constant 0 : i32
    %c0_i32_0 = arith.constant 0 : i32
    %c0_i32_1 = arith.constant 0 : i32
    return %arg0, %c0_i32, %c0_i32_0 : i32, i32, i32
  }
  func.func @transform_7(%arg0: i32) -> (i32, i32, i32) {
    %c0_i32 = arith.constant 0 : i32
    %c0_i32_0 = arith.constant 0 : i32
    %c0_i32_1 = arith.constant 0 : i32
    return %arg0, %c0_i32, %c0_i32_0 : i32, i32, i32
  }
}

module attributes {stable_mosaic.version = 11 : i64} {
  func.func @_mixprop_prop_kernel(%arg0: i32, %arg1: memref<1x8x512xf32, #tpu.memory_space<vmem>>, %arg2: memref<1x8x8xf32, #tpu.memory_space<vmem>>, %arg3: memref<1x8x8xf32, #tpu.memory_space<vmem>>, %arg4: memref<1x4x8x512xf32, #tpu.memory_space<vmem>>) attributes {dimension_semantics = [#tpu.dimension_semantics<parallel>], iteration_bounds = array<i64: 2>, scalar_prefetch = 0 : i64, scratch_operands = 0 : i64, tpu.core_type = #tpu.core_type<tc>, window_params = [{transform_indices = @transform_0, window_bounds = array<i64: 1, 8, 512>}, {transform_indices = @transform_1, window_bounds = array<i64: 1, 8, 8>}, {transform_indices = @transform_2, window_bounds = array<i64: 1, 8, 8>}, {transform_indices = @transform_3, window_bounds = array<i64: 1, 4, 8, 512>}]} {
    %c0 = arith.constant 0 : index
    %c0_0 = arith.constant 0 : index
    %c0_1 = arith.constant 0 : index
    %0 = vector.load %arg1[%c0, %c0_0, %c0_1] : memref<1x8x512xf32, #tpu.memory_space<vmem>>, vector<1x8x512xf32>
    %1 = vector.shape_cast %0 : vector<1x8x512xf32> to vector<8x512xf32>
    %c0_2 = arith.constant 0 : index
    %c0_3 = arith.constant 0 : index
    %c0_4 = arith.constant 0 : index
    %2 = vector.load %arg2[%c0_2, %c0_3, %c0_4] : memref<1x8x8xf32, #tpu.memory_space<vmem>>, vector<1x8x8xf32>
    %3 = vector.shape_cast %2 : vector<1x8x8xf32> to vector<8x8xf32>
    %c0_5 = arith.constant 0 : index
    %c0_6 = arith.constant 0 : index
    %c0_7 = arith.constant 0 : index
    %4 = vector.load %arg3[%c0_5, %c0_6, %c0_7] : memref<1x8x8xf32, #tpu.memory_space<vmem>>, vector<1x8x8xf32>
    %5 = vector.shape_cast %4 : vector<1x8x8xf32> to vector<8x8xf32>
    %cst = arith.constant 5.000000e-02 : f32
    %6 = vector.broadcast %cst : f32 to vector<8x512xf32>
    %7 = arith.mulf %6, %1 : vector<8x512xf32>
    %cst_8 = arith.constant dense<0.000000e+00> : vector<8x512xf32>
    %8 = tpu.matmul %3, %1, %cst_8 {dimension_numbers = #tpu.dot_dimension_numbers<[1], [0], [0], [1], [0, 0, 1, 1], [], []>} : vector<8x8xf32>, vector<8x512xf32>, vector<8x512xf32> -> vector<8x512xf32>
    %cst_9 = arith.constant 0.949999988 : f32
    %9 = vector.broadcast %cst_9 : f32 to vector<8x512xf32>
    %10 = arith.mulf %9, %8 : vector<8x512xf32>
    %11 = arith.addf %7, %10 : vector<8x512xf32>
    %cst_10 = arith.constant 5.000000e-02 : f32
    %12 = vector.broadcast %cst_10 : f32 to vector<8x512xf32>
    %13 = arith.mulf %12, %1 : vector<8x512xf32>
    %cst_11 = arith.constant dense<0.000000e+00> : vector<8x512xf32>
    %14 = tpu.matmul %3, %11, %cst_11 {dimension_numbers = #tpu.dot_dimension_numbers<[1], [0], [0], [1], [0, 0, 1, 1], [], []>} : vector<8x8xf32>, vector<8x512xf32>, vector<8x512xf32> -> vector<8x512xf32>
    %cst_12 = arith.constant 0.949999988 : f32
    %15 = vector.broadcast %cst_12 : f32 to vector<8x512xf32>
    %16 = arith.mulf %15, %14 : vector<8x512xf32>
    %17 = arith.addf %13, %16 : vector<8x512xf32>
    %cst_13 = arith.constant 5.000000e-02 : f32
    %18 = vector.broadcast %cst_13 : f32 to vector<8x512xf32>
    %19 = arith.mulf %18, %1 : vector<8x512xf32>
    %cst_14 = arith.constant dense<0.000000e+00> : vector<8x512xf32>
    %20 = tpu.matmul %5, %1, %cst_14 {dimension_numbers = #tpu.dot_dimension_numbers<[1], [0], [0], [1], [0, 0, 1, 1], [], []>} : vector<8x8xf32>, vector<8x512xf32>, vector<8x512xf32> -> vector<8x512xf32>
    %cst_15 = arith.constant 0.949999988 : f32
    %21 = vector.broadcast %cst_15 : f32 to vector<8x512xf32>
    %22 = arith.mulf %21, %20 : vector<8x512xf32>
    %23 = arith.addf %19, %22 : vector<8x512xf32>
    %cst_16 = arith.constant 5.000000e-02 : f32
    %24 = vector.broadcast %cst_16 : f32 to vector<8x512xf32>
    %25 = arith.mulf %24, %1 : vector<8x512xf32>
    %cst_17 = arith.constant dense<0.000000e+00> : vector<8x512xf32>
    %26 = tpu.matmul %5, %23, %cst_17 {dimension_numbers = #tpu.dot_dimension_numbers<[1], [0], [0], [1], [0, 0, 1, 1], [], []>} : vector<8x8xf32>, vector<8x512xf32>, vector<8x512xf32> -> vector<8x512xf32>
    %cst_18 = arith.constant 0.949999988 : f32
    %27 = vector.broadcast %cst_18 : f32 to vector<8x512xf32>
    %28 = arith.mulf %27, %26 : vector<8x512xf32>
    %29 = arith.addf %25, %28 : vector<8x512xf32>
    %c0_19 = arith.constant 0 : index
    %c0_20 = arith.constant 0 : index
    %c0_21 = arith.constant 0 : index
    %c0_22 = arith.constant 0 : index
    %30 = vector.load %arg4[%c0_19, %c0_20, %c0_21, %c0_22] : memref<1x4x8x512xf32, #tpu.memory_space<vmem>>, vector<1x1x8x512xf32>
    %31 = vector.shape_cast %30 : vector<1x1x8x512xf32> to vector<8x512xf32>
    %32 = vector.shape_cast %11 : vector<8x512xf32> to vector<1x1x8x512xf32>
    tpu.vector_store %arg4[%c0_19, %c0_20, %c0_21, %c0_22], %32 {strides = array<i32>} : memref<1x4x8x512xf32, #tpu.memory_space<vmem>>, vector<1x1x8x512xf32>,
    %c0_23 = arith.constant 0 : index
    %c1 = arith.constant 1 : index
    %c0_24 = arith.constant 0 : index
    %c0_25 = arith.constant 0 : index
    %33 = vector.load %arg4[%c0_23, %c1, %c0_24, %c0_25] : memref<1x4x8x512xf32, #tpu.memory_space<vmem>>, vector<1x1x8x512xf32>
    %34 = vector.shape_cast %33 : vector<1x1x8x512xf32> to vector<8x512xf32>
    %35 = vector.shape_cast %17 : vector<8x512xf32> to vector<1x1x8x512xf32>
    tpu.vector_store %arg4[%c0_23, %c1, %c0_24, %c0_25], %35 {strides = array<i32>} : memref<1x4x8x512xf32, #tpu.memory_space<vmem>>, vector<1x1x8x512xf32>,
    %c0_26 = arith.constant 0 : index
    %c2 = arith.constant 2 : index
    %c0_27 = arith.constant 0 : index
    %c0_28 = arith.constant 0 : index
    %36 = vector.load %arg4[%c0_26, %c2, %c0_27, %c0_28] : memref<1x4x8x512xf32, #tpu.memory_space<vmem>>, vector<1x1x8x512xf32>
    %37 = vector.shape_cast %36 : vector<1x1x8x512xf32> to vector<8x512xf32>
    %38 = vector.shape_cast %23 : vector<8x512xf32> to vector<1x1x8x512xf32>
    tpu.vector_store %arg4[%c0_26, %c2, %c0_27, %c0_28], %38 {strides = array<i32>} : memref<1x4x8x512xf32, #tpu.memory_space<vmem>>, vector<1x1x8x512xf32>,
    %c0_29 = arith.constant 0 : index
    %c3 = arith.constant 3 : index
    %c0_30 = arith.constant 0 : index
    %c0_31 = arith.constant 0 : index
    %39 = vector.load %arg4[%c0_29, %c3, %c0_30, %c0_31] : memref<1x4x8x512xf32, #tpu.memory_space<vmem>>, vector<1x1x8x512xf32>
    %40 = vector.shape_cast %39 : vector<1x1x8x512xf32> to vector<8x512xf32>
    %41 = vector.shape_cast %29 : vector<8x512xf32> to vector<1x1x8x512xf32>
    tpu.vector_store %arg4[%c0_29, %c3, %c0_30, %c0_31], %41 {strides = array<i32>} : memref<1x4x8x512xf32, #tpu.memory_space<vmem>>, vector<1x1x8x512xf32>,
    return
  }
  func.func @transform_0(%arg0: i32) -> (i32, i32, i32) {
    %c0_i32 = arith.constant 0 : i32
    %c0_i32_0 = arith.constant 0 : i32
    %c0_i32_1 = arith.constant 0 : i32
    return %arg0, %c0_i32, %c0_i32_0 : i32, i32, i32
  }
  func.func @transform_1(%arg0: i32) -> (i32, i32, i32) {
    %c0_i32 = arith.constant 0 : i32
    %c0_i32_0 = arith.constant 0 : i32
    %c0_i32_1 = arith.constant 0 : i32
    return %arg0, %c0_i32, %c0_i32_0 : i32, i32, i32
  }
  func.func @transform_2(%arg0: i32) -> (i32, i32, i32) {
    %c0_i32 = arith.constant 0 : i32
    %c0_i32_0 = arith.constant 0 : i32
    %c0_i32_1 = arith.constant 0 : i32
    return %arg0, %c0_i32, %c0_i32_0 : i32, i32, i32
  }
  func.func @transform_3(%arg0: i32) -> (i32, i32, i32, i32) {
    %c0_i32 = arith.constant 0 : i32
    %c0_i32_0 = arith.constant 0 : i32
    %c0_i32_1 = arith.constant 0 : i32
    %c0_i32_2 = arith.constant 0 : i32
    return %arg0, %c0_i32, %c0_i32_0, %c0_i32_1 : i32, i32, i32, i32
  }
}

module attributes {stable_mosaic.version = 11 : i64} {
  func.func @_dense_kernel(%arg0: i32, %arg1: memref<512x160xf32, #tpu.memory_space<vmem>>, %arg2: memref<160x64xf32, #tpu.memory_space<vmem>>, %arg3: memref<1x64xf32, #tpu.memory_space<vmem>>, %arg4: memref<512x64xf32, #tpu.memory_space<vmem>>) attributes {dimension_semantics = [#tpu.dimension_semantics<parallel>], iteration_bounds = array<i64: 1>, scalar_prefetch = 0 : i64, scratch_operands = 0 : i64, tpu.core_type = #tpu.core_type<tc>, window_params = [{pipeline_mode = #tpu.pipeline_mode<synchronous>, transform_indices = @transform_0, window_bounds = array<i64: 512, 160>}, {pipeline_mode = #tpu.pipeline_mode<synchronous>, transform_indices = @transform_1, window_bounds = array<i64: 160, 64>}, {pipeline_mode = #tpu.pipeline_mode<synchronous>, transform_indices = @transform_2, window_bounds = array<i64: 1, 64>}, {pipeline_mode = #tpu.pipeline_mode<synchronous>, transform_indices = @transform_3, window_bounds = array<i64: 512, 64>}]} {
    %c0 = arith.constant 0 : index
    %c0_0 = arith.constant 0 : index
    %0 = vector.load %arg1[%c0, %c0_0] : memref<512x160xf32, #tpu.memory_space<vmem>>, vector<512x160xf32>
    %c0_1 = arith.constant 0 : index
    %c0_2 = arith.constant 0 : index
    %1 = vector.load %arg2[%c0_1, %c0_2] : memref<160x64xf32, #tpu.memory_space<vmem>>, vector<160x64xf32>
    %cst = arith.constant dense<0.000000e+00> : vector<512x64xf32>
    %2 = tpu.matmul %0, %1, %cst {dimension_numbers = #tpu.dot_dimension_numbers<[1], [0], [0], [1], [0, 0, 1, 1], [], []>} : vector<512x160xf32>, vector<160x64xf32>, vector<512x64xf32> -> vector<512x64xf32>
    %c0_3 = arith.constant 0 : index
    %c0_4 = arith.constant 0 : index
    %3 = vector.load %arg3[%c0_3, %c0_4] : memref<1x64xf32, #tpu.memory_space<vmem>>, vector<1x64xf32>
    %4 = vector.broadcast %3 : vector<1x64xf32> to vector<512x64xf32>
    %5 = arith.addf %2, %4 : vector<512x64xf32>
    %c0_5 = arith.constant 0 : index
    %c0_6 = arith.constant 0 : index
    %6 = vector.load %arg4[%c0_5, %c0_6] : memref<512x64xf32, #tpu.memory_space<vmem>>, vector<512x64xf32>
    tpu.vector_store %arg4[%c0_5, %c0_6], %5 {strides = array<i32>} : memref<512x64xf32, #tpu.memory_space<vmem>>, vector<512x64xf32>,
    return
  }
  func.func @transform_0(%arg0: i32) -> (i32, i32) {
    %c0_i32 = arith.constant 0 : i32
    %c0_i32_0 = arith.constant 0 : i32
    %c0_i32_1 = arith.constant 0 : i32
    return %c0_i32, %c0_i32_0 : i32, i32
  }
  func.func @transform_1(%arg0: i32) -> (i32, i32) {
    %c0_i32 = arith.constant 0 : i32
    %c0_i32_0 = arith.constant 0 : i32
    %c0_i32_1 = arith.constant 0 : i32
    return %c0_i32, %c0_i32_0 : i32, i32
  }
  func.func @transform_2(%arg0: i32) -> (i32, i32) {
    %c0_i32 = arith.constant 0 : i32
    %c0_i32_0 = arith.constant 0 : i32
    %c0_i32_1 = arith.constant 0 : i32
    return %c0_i32, %c0_i32_0 : i32, i32
  }
  func.func @transform_3(%arg0: i32) -> (i32, i32) {
    %c0_i32 = arith.constant 0 : i32
    %c0_i32_0 = arith.constant 0 : i32
    %c0_i32_1 = arith.constant 0 : i32
    return %c0_i32, %c0_i32_0 : i32, i32
  }
}

module attributes {stable_mosaic.version = 11 : i64} {
  func.func @_tf_endconv_kernel(%arg0: i32, %arg1: memref<1x32x64xf32, #tpu.memory_space<vmem>>, %arg2: memref<64x256xf32, #tpu.memory_space<vmem>>, %arg3: memref<1x256xf32, #tpu.memory_space<vmem>>, %arg4: memref<256x64xf32, #tpu.memory_space<vmem>>, %arg5: memref<1x64xf32, #tpu.memory_space<vmem>>, %arg6: memref<128x32xf32, #tpu.memory_space<vmem>>, %arg7: memref<128x1xf32, #tpu.memory_space<vmem>>, %arg8: memref<12x128xf32, #tpu.memory_space<vmem>>, %arg9: memref<12x1xf32, #tpu.memory_space<vmem>>, %arg10: memref<1x12x64xf32, #tpu.memory_space<vmem>>) attributes {dimension_semantics = [#tpu.dimension_semantics<parallel>], iteration_bounds = array<i64: 16>, scalar_prefetch = 0 : i64, scratch_operands = 0 : i64, tpu.core_type = #tpu.core_type<tc>, window_params = [{transform_indices = @transform_0, window_bounds = array<i64: 1, 32, 64>}, {pipeline_mode = #tpu.pipeline_mode<synchronous>, transform_indices = @transform_1, window_bounds = array<i64: 64, 256>}, {pipeline_mode = #tpu.pipeline_mode<synchronous>, transform_indices = @transform_2, window_bounds = array<i64: 1, 256>}, {pipeline_mode = #tpu.pipeline_mode<synchronous>, transform_indices = @transform_3, window_bounds = array<i64: 256, 64>}, {pipeline_mode = #tpu.pipeline_mode<synchronous>, transform_indices = @transform_4, window_bounds = array<i64: 1, 64>}, {pipeline_mode = #tpu.pipeline_mode<synchronous>, transform_indices = @transform_5, window_bounds = array<i64: 128, 32>}, {pipeline_mode = #tpu.pipeline_mode<synchronous>, transform_indices = @transform_6, window_bounds = array<i64: 128, 1>}, {pipeline_mode = #tpu.pipeline_mode<synchronous>, transform_indices = @transform_7, window_bounds = array<i64: 12, 128>}, {pipeline_mode = #tpu.pipeline_mode<synchronous>, transform_indices = @transform_8, window_bounds = array<i64: 12, 1>}, {transform_indices = @transform_9, window_bounds = array<i64: 1, 12, 64>}]} {
    %c0 = arith.constant 0 : index
    %c0_0 = arith.constant 0 : index
    %c0_1 = arith.constant 0 : index
    %0 = vector.load %arg1[%c0, %c0_0, %c0_1] : memref<1x32x64xf32, #tpu.memory_space<vmem>>, vector<1x32x64xf32>
    %1 = vector.shape_cast %0 : vector<1x32x64xf32> to vector<32x64xf32>
    %c0_2 = arith.constant 0 : index
    %c0_3 = arith.constant 0 : index
    %2 = vector.load %arg2[%c0_2, %c0_3] : memref<64x256xf32, #tpu.memory_space<vmem>>, vector<64x256xf32>
    %cst = arith.constant dense<0.000000e+00> : vector<32x256xf32>
    %3 = tpu.matmul %1, %2, %cst {dimension_numbers = #tpu.dot_dimension_numbers<[1], [0], [0], [1], [0, 0, 1, 1], [], []>} : vector<32x64xf32>, vector<64x256xf32>, vector<32x256xf32> -> vector<32x256xf32>
    %c0_4 = arith.constant 0 : index
    %c0_5 = arith.constant 0 : index
    %4 = vector.load %arg3[%c0_4, %c0_5] : memref<1x256xf32, #tpu.memory_space<vmem>>, vector<1x256xf32>
    %5 = vector.broadcast %4 : vector<1x256xf32> to vector<32x256xf32>
    %6 = arith.addf %3, %5 : vector<32x256xf32>
    %cst_6 = arith.constant 0.000000e+00 : f32
    %7 = vector.broadcast %cst_6 : f32 to vector<32x256xf32>
    %8 = arith.maximumf %6, %7 : vector<32x256xf32>
    %c0_7 = arith.constant 0 : index
    %c0_8 = arith.constant 0 : index
    %9 = vector.load %arg4[%c0_7, %c0_8] : memref<256x64xf32, #tpu.memory_space<vmem>>, vector<256x64xf32>
    %cst_9 = arith.constant dense<0.000000e+00> : vector<32x64xf32>
    %10 = tpu.matmul %8, %9, %cst_9 {dimension_numbers = #tpu.dot_dimension_numbers<[1], [0], [0], [1], [0, 0, 1, 1], [], []>} : vector<32x256xf32>, vector<256x64xf32>, vector<32x64xf32> -> vector<32x64xf32>
    %c0_10 = arith.constant 0 : index
    %c0_11 = arith.constant 0 : index
    %11 = vector.load %arg5[%c0_10, %c0_11] : memref<1x64xf32, #tpu.memory_space<vmem>>, vector<1x64xf32>
    %12 = vector.broadcast %11 : vector<1x64xf32> to vector<32x64xf32>
    %13 = arith.addf %10, %12 : vector<32x64xf32>
    %c0_12 = arith.constant 0 : index
    %c0_13 = arith.constant 0 : index
    %14 = vector.load %arg6[%c0_12, %c0_13] : memref<128x32xf32, #tpu.memory_space<vmem>>, vector<128x32xf32>
    %cst_14 = arith.constant dense<0.000000e+00> : vector<128x64xf32>
    %15 = tpu.matmul %14, %13, %cst_14 {dimension_numbers = #tpu.dot_dimension_numbers<[1], [0], [0], [1], [0, 0, 1, 1], [], []>} : vector<128x32xf32>, vector<32x64xf32>, vector<128x64xf32> -> vector<128x64xf32>
    %c0_15 = arith.constant 0 : index
    %c0_16 = arith.constant 0 : index
    %16 = vector.load %arg7[%c0_15, %c0_16] : memref<128x1xf32, #tpu.memory_space<vmem>>, vector<128x1xf32>
    %17 = vector.broadcast %16 : vector<128x1xf32> to vector<128x64xf32>
    %18 = arith.addf %15, %17 : vector<128x64xf32>
    %cst_17 = arith.constant 0.000000e+00 : f32
    %19 = vector.broadcast %cst_17 : f32 to vector<128x64xf32>
    %20 = arith.maximumf %18, %19 : vector<128x64xf32>
    %c0_18 = arith.constant 0 : index
    %c0_19 = arith.constant 0 : index
    %21 = vector.load %arg8[%c0_18, %c0_19] : memref<12x128xf32, #tpu.memory_space<vmem>>, vector<12x128xf32>
    %cst_20 = arith.constant dense<0.000000e+00> : vector<12x64xf32>
    %22 = tpu.matmul %21, %20, %cst_20 {dimension_numbers = #tpu.dot_dimension_numbers<[1], [0], [0], [1], [0, 0, 1, 1], [], []>} : vector<12x128xf32>, vector<128x64xf32>, vector<12x64xf32> -> vector<12x64xf32>
    %c0_21 = arith.constant 0 : index
    %c0_22 = arith.constant 0 : index
    %23 = vector.load %arg9[%c0_21, %c0_22] : memref<12x1xf32, #tpu.memory_space<vmem>>, vector<12x1xf32>
    %24 = vector.broadcast %23 : vector<12x1xf32> to vector<12x64xf32>
    %25 = arith.addf %22, %24 : vector<12x64xf32>
    %c0_23 = arith.constant 0 : index
    %c0_24 = arith.constant 0 : index
    %c0_25 = arith.constant 0 : index
    %26 = vector.load %arg10[%c0_23, %c0_24, %c0_25] : memref<1x12x64xf32, #tpu.memory_space<vmem>>, vector<1x12x64xf32>
    %27 = vector.shape_cast %26 : vector<1x12x64xf32> to vector<12x64xf32>
    %28 = vector.shape_cast %25 : vector<12x64xf32> to vector<1x12x64xf32>
    tpu.vector_store %arg10[%c0_23, %c0_24, %c0_25], %28 {strides = array<i32>} : memref<1x12x64xf32, #tpu.memory_space<vmem>>, vector<1x12x64xf32>,
    return
  }
  func.func @transform_0(%arg0: i32) -> (i32, i32, i32) {
    %c0_i32 = arith.constant 0 : i32
    %c0_i32_0 = arith.constant 0 : i32
    %c0_i32_1 = arith.constant 0 : i32
    return %arg0, %c0_i32, %c0_i32_0 : i32, i32, i32
  }
  func.func @transform_1(%arg0: i32) -> (i32, i32) {
    %c0_i32 = arith.constant 0 : i32
    %c0_i32_0 = arith.constant 0 : i32
    %c0_i32_1 = arith.constant 0 : i32
    return %c0_i32, %c0_i32_0 : i32, i32
  }
  func.func @transform_2(%arg0: i32) -> (i32, i32) {
    %c0_i32 = arith.constant 0 : i32
    %c0_i32_0 = arith.constant 0 : i32
    %c0_i32_1 = arith.constant 0 : i32
    return %c0_i32, %c0_i32_0 : i32, i32
  }
  func.func @transform_3(%arg0: i32) -> (i32, i32) {
    %c0_i32 = arith.constant 0 : i32
    %c0_i32_0 = arith.constant 0 : i32
    %c0_i32_1 = arith.constant 0 : i32
    return %c0_i32, %c0_i32_0 : i32, i32
  }
  func.func @transform_4(%arg0: i32) -> (i32, i32) {
    %c0_i32 = arith.constant 0 : i32
    %c0_i32_0 = arith.constant 0 : i32
    %c0_i32_1 = arith.constant 0 : i32
    return %c0_i32, %c0_i32_0 : i32, i32
  }
  func.func @transform_5(%arg0: i32) -> (i32, i32) {
    %c0_i32 = arith.constant 0 : i32
    %c0_i32_0 = arith.constant 0 : i32
    %c0_i32_1 = arith.constant 0 : i32
    return %c0_i32, %c0_i32_0 : i32, i32
  }
  func.func @transform_6(%arg0: i32) -> (i32, i32) {
    %c0_i32 = arith.constant 0 : i32
    %c0_i32_0 = arith.constant 0 : i32
    %c0_i32_1 = arith.constant 0 : i32
    return %c0_i32, %c0_i32_0 : i32, i32
  }
  func.func @transform_7(%arg0: i32) -> (i32, i32) {
    %c0_i32 = arith.constant 0 : i32
    %c0_i32_0 = arith.constant 0 : i32
    %c0_i32_1 = arith.constant 0 : i32
    return %c0_i32, %c0_i32_0 : i32, i32
  }
  func.func @transform_8(%arg0: i32) -> (i32, i32) {
    %c0_i32 = arith.constant 0 : i32
    %c0_i32_0 = arith.constant 0 : i32
    %c0_i32_1 = arith.constant 0 : i32
    return %c0_i32, %c0_i32_0 : i32, i32
  }
  func.func @transform_9(%arg0: i32) -> (i32, i32, i32) {
    %c0_i32 = arith.constant 0 : i32
    %c0_i32_0 = arith.constant 0 : i32
    %c0_i32_1 = arith.constant 0 : i32
    return %arg0, %c0_i32, %c0_i32_0 : i32, i32, i32
  }
}

module attributes {stable_mosaic.version = 11 : i64} {
  func.func @_forecast_head_kernel(%arg0: i32, %arg1: memref<1x12x128xf32, #tpu.memory_space<vmem>>, %arg2: memref<128x512xf32, #tpu.memory_space<vmem>>, %arg3: memref<1x512xf32, #tpu.memory_space<vmem>>, %arg4: memref<512x3xf32, #tpu.memory_space<vmem>>, %arg5: memref<1x3xf32, #tpu.memory_space<vmem>>, %arg6: memref<4x12xf32, #tpu.memory_space<vmem>>, %arg7: memref<4x1xf32, #tpu.memory_space<vmem>>, %arg8: memref<1x4x3xf32, #tpu.memory_space<vmem>>) attributes {dimension_semantics = [#tpu.dimension_semantics<parallel>], iteration_bounds = array<i64: 16>, scalar_prefetch = 0 : i64, scratch_operands = 0 : i64, tpu.core_type = #tpu.core_type<tc>, window_params = [{transform_indices = @transform_0, window_bounds = array<i64: 1, 12, 128>}, {pipeline_mode = #tpu.pipeline_mode<synchronous>, transform_indices = @transform_1, window_bounds = array<i64: 128, 512>}, {pipeline_mode = #tpu.pipeline_mode<synchronous>, transform_indices = @transform_2, window_bounds = array<i64: 1, 512>}, {pipeline_mode = #tpu.pipeline_mode<synchronous>, transform_indices = @transform_3, window_bounds = array<i64: 512, 3>}, {pipeline_mode = #tpu.pipeline_mode<synchronous>, transform_indices = @transform_4, window_bounds = array<i64: 1, 3>}, {pipeline_mode = #tpu.pipeline_mode<synchronous>, transform_indices = @transform_5, window_bounds = array<i64: 4, 12>}, {pipeline_mode = #tpu.pipeline_mode<synchronous>, transform_indices = @transform_6, window_bounds = array<i64: 4, 1>}, {transform_indices = @transform_7, window_bounds = array<i64: 1, 4, 3>}]} {
    %c0 = arith.constant 0 : index
    %c0_0 = arith.constant 0 : index
    %c0_1 = arith.constant 0 : index
    %0 = vector.load %arg1[%c0, %c0_0, %c0_1] : memref<1x12x128xf32, #tpu.memory_space<vmem>>, vector<1x12x128xf32>
    %1 = vector.shape_cast %0 : vector<1x12x128xf32> to vector<12x128xf32>
    %cst = arith.constant 0.000000e+00 : f32
    %2 = vector.broadcast %cst : f32 to vector<12x128xf32>
    %3 = arith.maximumf %1, %2 : vector<12x128xf32>
    %c0_2 = arith.constant 0 : index
    %c0_3 = arith.constant 0 : index
    %4 = vector.load %arg2[%c0_2, %c0_3] : memref<128x512xf32, #tpu.memory_space<vmem>>, vector<128x512xf32>
    %cst_4 = arith.constant dense<0.000000e+00> : vector<12x512xf32>
    %5 = tpu.matmul %3, %4, %cst_4 {dimension_numbers = #tpu.dot_dimension_numbers<[1], [0], [0], [1], [0, 0, 1, 1], [], []>} : vector<12x128xf32>, vector<128x512xf32>, vector<12x512xf32> -> vector<12x512xf32>
    %c0_5 = arith.constant 0 : index
    %c0_6 = arith.constant 0 : index
    %6 = vector.load %arg3[%c0_5, %c0_6] : memref<1x512xf32, #tpu.memory_space<vmem>>, vector<1x512xf32>
    %7 = vector.broadcast %6 : vector<1x512xf32> to vector<12x512xf32>
    %8 = arith.addf %5, %7 : vector<12x512xf32>
    %cst_7 = arith.constant 0.000000e+00 : f32
    %9 = vector.broadcast %cst_7 : f32 to vector<12x512xf32>
    %10 = arith.maximumf %8, %9 : vector<12x512xf32>
    %c0_8 = arith.constant 0 : index
    %c0_9 = arith.constant 0 : index
    %11 = vector.load %arg4[%c0_8, %c0_9] : memref<512x3xf32, #tpu.memory_space<vmem>>, vector<512x3xf32>
    %cst_10 = arith.constant dense<0.000000e+00> : vector<12x3xf32>
    %12 = tpu.matmul %10, %11, %cst_10 {dimension_numbers = #tpu.dot_dimension_numbers<[1], [0], [0], [1], [0, 0, 1, 1], [], []>} : vector<12x512xf32>, vector<512x3xf32>, vector<12x3xf32> -> vector<12x3xf32>
    %c0_11 = arith.constant 0 : index
    %c0_12 = arith.constant 0 : index
    %13 = vector.load %arg5[%c0_11, %c0_12] : memref<1x3xf32, #tpu.memory_space<vmem>>, vector<1x3xf32>
    %14 = vector.broadcast %13 : vector<1x3xf32> to vector<12x3xf32>
    %15 = arith.addf %12, %14 : vector<12x3xf32>
    %c0_13 = arith.constant 0 : index
    %c0_14 = arith.constant 0 : index
    %16 = vector.load %arg6[%c0_13, %c0_14] : memref<4x12xf32, #tpu.memory_space<vmem>>, vector<4x12xf32>
    %cst_15 = arith.constant dense<0.000000e+00> : vector<4x3xf32>
    %17 = tpu.matmul %16, %15, %cst_15 {dimension_numbers = #tpu.dot_dimension_numbers<[1], [0], [0], [1], [0, 0, 1, 1], [], []>} : vector<4x12xf32>, vector<12x3xf32>, vector<4x3xf32> -> vector<4x3xf32>
    %c0_16 = arith.constant 0 : index
    %c0_17 = arith.constant 0 : index
    %18 = vector.load %arg7[%c0_16, %c0_17] : memref<4x1xf32, #tpu.memory_space<vmem>>, vector<4x1xf32>
    %19 = vector.broadcast %18 : vector<4x1xf32> to vector<4x3xf32>
    %20 = arith.addf %17, %19 : vector<4x3xf32>
    %c0_18 = arith.constant 0 : index
    %c0_19 = arith.constant 0 : index
    %c0_20 = arith.constant 0 : index
    %21 = vector.load %arg8[%c0_18, %c0_19, %c0_20] : memref<1x4x3xf32, #tpu.memory_space<vmem>>, vector<1x4x3xf32>
    %22 = vector.shape_cast %21 : vector<1x4x3xf32> to vector<4x3xf32>
    %23 = vector.shape_cast %20 : vector<4x3xf32> to vector<1x4x3xf32>
    tpu.vector_store %arg8[%c0_18, %c0_19, %c0_20], %23 {strides = array<i32>} : memref<1x4x3xf32, #tpu.memory_space<vmem>>, vector<1x4x3xf32>,
    return
  }
  func.func @transform_0(%arg0: i32) -> (i32, i32, i32) {
    %c0_i32 = arith.constant 0 : i32
    %c0_i32_0 = arith.constant 0 : i32
    %c0_i32_1 = arith.constant 0 : i32
    return %arg0, %c0_i32, %c0_i32_0 : i32, i32, i32
  }
  func.func @transform_1(%arg0: i32) -> (i32, i32) {
    %c0_i32 = arith.constant 0 : i32
    %c0_i32_0 = arith.constant 0 : i32
    %c0_i32_1 = arith.constant 0 : i32
    return %c0_i32, %c0_i32_0 : i32, i32
  }
  func.func @transform_2(%arg0: i32) -> (i32, i32) {
    %c0_i32 = arith.constant 0 : i32
    %c0_i32_0 = arith.constant 0 : i32
    %c0_i32_1 = arith.constant 0 : i32
    return %c0_i32, %c0_i32_0 : i32, i32
  }
  func.func @transform_3(%arg0: i32) -> (i32, i32) {
    %c0_i32 = arith.constant 0 : i32
    %c0_i32_0 = arith.constant 0 : i32
    %c0_i32_1 = arith.constant 0 : i32
    return %c0_i32, %c0_i32_0 : i32, i32
  }
  func.func @transform_4(%arg0: i32) -> (i32, i32) {
    %c0_i32 = arith.constant 0 : i32
    %c0_i32_0 = arith.constant 0 : i32
    %c0_i32_1 = arith.constant 0 : i32
    return %c0_i32, %c0_i32_0 : i32, i32
  }
  func.func @transform_5(%arg0: i32) -> (i32, i32) {
    %c0_i32 = arith.constant 0 : i32
    %c0_i32_0 = arith.constant 0 : i32
    %c0_i32_1 = arith.constant 0 : i32
    return %c0_i32, %c0_i32_0 : i32, i32
  }
  func.func @transform_6(%arg0: i32) -> (i32, i32) {
    %c0_i32 = arith.constant 0 : i32
    %c0_i32_0 = arith.constant 0 : i32
    %c0_i32_1 = arith.constant 0 : i32
    return %c0_i32, %c0_i32_0 : i32, i32
  }
  func.func @transform_7(%arg0: i32) -> (i32, i32, i32) {
    %c0_i32 = arith.constant 0 : i32
    %c0_i32_0 = arith.constant 0 : i32
    %c0_i32_1 = arith.constant 0 : i32
    return %arg0, %c0_i32, %c0_i32_0 : i32, i32, i32
  }
}

</mosaic_0001>

<llo_original>
// kernel: sfadnet_forward.12
$region0: #{sfadnet_forward.12}
  #allocation0 [shape = 'u32[]', space=smem, size = 0x4, offset = 0x4, fixed_abs, tag = 'smem constant byte address 0x4 - core index']
  #allocation1 [shape = 'u32[72,128]{1,0:T(1,128)}', space=vmem, size = 0x9000, scoped, tag = 'internal scratch']
  %s0 = inlined_call_operand.vmem [shape: f32[512,12], index: 0, kind: input, shape index: {}]
  %s1 = inlined_call_operand.vmem [shape: f32[12,32], index: 1, kind: input, shape index: {}]
  %s2 = inlined_call_operand.vmem [shape: f32[1,32], index: 2, kind: input, shape index: {}]
  %s3 = inlined_call_operand.vmem [shape: f32[512,32], index: 3, kind: output, shape index: {}]
  %s4 = sld [smem:[#allocation0]]
  $region22: #{sfadnet_forward.12} parent=0
    _
  %s6 = ssub.s32 1, %s4
  %s7 = scalar_select 0, %s6, %s4
  // Predicated region
  $region2: #{sfadnet_forward.12} parent=0 // pred_check
    _
  $region3: #{sfadnet_forward.12} parent=0 // pred_check_branch
    %9 = sbr.rel (0) target = $region5
  $region4: #{sfadnet_forward.12} parent=0 // pred_region
    _
  $region5: #{sfadnet_forward.12} parent=0 // pred_fallthru
    _
  // Predicated region
  $region6: #{sfadnet_forward.12} parent=0 // pred_check
    _
  $region7: #{sfadnet_forward.12} parent=0 // pred_check_branch
    %11 = sbr.rel (0) target = $region9
  $region8: #{sfadnet_forward.12} parent=0 // pred_region
    _
  $region9: #{sfadnet_forward.12} parent=0 // pred_fallthru
    _
  // Predicated region
  $region10: #{sfadnet_forward.12} parent=0 // pred_check
    _
  $region11: #{sfadnet_forward.12} parent=0 // pred_check_branch
    %13 = sbr.rel (0) target = $region13
  $region12: #{sfadnet_forward.12} parent=0 // pred_region
    _
  $region13: #{sfadnet_forward.12} parent=0 // pred_fallthru
    _
  %v14 = vld [vmem:[%s0] sm:$0xff]
  %v15 = vld [vmem:[%s0 + $0x8] sm:$0xff]
  %v16 = vld [vmem:[%s0 + $0x10] sm:$0xff]
  %v17 = vld [vmem:[%s0 + $0x18] sm:$0xff]
  %v18 = vld [vmem:[%s0 + $0x20] sm:$0xff]
  %v19 = vld [vmem:[%s0 + $0x28] sm:$0xff]
  %v20 = vld [vmem:[%s0 + $0x30] sm:$0xff]
  %v21 = vld [vmem:[%s0 + $0x38] sm:$0xff]
  %v22 = vld [vmem:[%s0 + $0x40] sm:$0xff]
  %v23 = vld [vmem:[%s0 + $0x48] sm:$0xff]
  %v24 = vld [vmem:[%s0 + $0x50] sm:$0xff]
  %v25 = vld [vmem:[%s0 + $0x58] sm:$0xff]
  %v26 = vld [vmem:[%s0 + $0x60] sm:$0xff]
  %v27 = vld [vmem:[%s0 + $0x68] sm:$0xff]
  %v28 = vld [vmem:[%s0 + $0x70] sm:$0xff]
  %v29 = vld [vmem:[%s0 + $0x78] sm:$0xff]
  %v30 = vld [vmem:[%s0 + $0x80] sm:$0xff]
  %v31 = vld [vmem:[%s0 + $0x88] sm:$0xff]
  %v32 = vld [vmem:[%s0 + $0x90] sm:$0xff]
  %v33 = vld [vmem:[%s0 + $0x98] sm:$0xff]
  %v34 = vld [vmem:[%s0 + $0xa0] sm:$0xff]
  %v35 = vld [vmem:[%s0 + $0xa8] sm:$0xff]
  %v36 = vld [vmem:[%s0 + $0xb0] sm:$0xff]
  %v37 = vld [vmem:[%s0 + $0xb8] sm:$0xff]
  %v38 = vld [vmem:[%s0 + $0xc0] sm:$0xff]
  %v39 = vld [vmem:[%s0 + $0xc8] sm:$0xff]
  %v40 = vld [vmem:[%s0 + $0xd0] sm:$0xff]
  %v41 = vld [vmem:[%s0 + $0xd8] sm:$0xff]
  %v42 = vld [vmem:[%s0 + $0xe0] sm:$0xff]
  %v43 = vld [vmem:[%s0 + $0xe8] sm:$0xff]
  %v44 = vld [vmem:[%s0 + $0xf0] sm:$0xff]
  %v45 = vld [vmem:[%s0 + $0xf8] sm:$0xff]
  %v46 = vld [vmem:[%s0 + $0x100] sm:$0xff]
  %v47 = vld [vmem:[%s0 + $0x108] sm:$0xff]
  %v48 = vld [vmem:[%s0 + $0x110] sm:$0xff]
  %v49 = vld [vmem:[%s0 + $0x118] sm:$0xff]
  %v50 = vld [vmem:[%s0 + $0x120] sm:$0xff]
  %v51 = vld [vmem:[%s0 + $0x128] sm:$0xff]
  %v52 = vld [vmem:[%s0 + $0x130] sm:$0xff]
  %v53 = vld [vmem:[%s0 + $0x138] sm:$0xff]
  %v54 = vld [vmem:[%s0 + $0x140] sm:$0xff]
  %v55 = vld [vmem:[%s0 + $0x148] sm:$0xff]
  %v56 = vld [vmem:[%s0 + $0x150] sm:$0xff]
  %v57 = vld [vmem:[%s0 + $0x158] sm:$0xff]
  %v58 = vld [vmem:[%s0 + $0x160] sm:$0xff]
  %v59 = vld [vmem:[%s0 + $0x168] sm:$0xff]
  %v60 = vld [vmem:[%s0 + $0x170] sm:$0xff]
  %v61 = vld [vmem:[%s0 + $0x178] sm:$0xff]
  %v62 = vld [vmem:[%s0 + $0x180] sm:$0xff]
  %v63 = vld [vmem:[%s0 + $0x188] sm:$0xff]
  %v64 = vld [vmem:[%s0 + $0x190] sm:$0xff]
  %v65 = vld [vmem:[%s0 + $0x198] sm:$0xff]
  %v66 = vld [vmem:[%s0 + $0x1a0] sm:$0xff]
  %v67 = vld [vmem:[%s0 + $0x1a8] sm:$0xff]
  %v68 = vld [vmem:[%s0 + $0x1b0] sm:$0xff]
  %v69 = vld [vmem:[%s0 + $0x1b8] sm:$0xff]
  %v70 = vld [vmem:[%s0 + $0x1c0] sm:$0xff]
  %v71 = vld [vmem:[%s0 + $0x1c8] sm:$0xff]
  %v72 = vld [vmem:[%s0 + $0x1d0] sm:$0xff]
  %v73 = vld [vmem:[%s0 + $0x1d8] sm:$0xff]
  %v74 = vld [vmem:[%s0 + $0x1e0] sm:$0xff]
  %v75 = vld [vmem:[%s0 + $0x1e8] sm:$0xff]
  %v76 = vld [vmem:[%s0 + $0x1f0] sm:$0xff]
  %v77 = vld [vmem:[%s0 + $0x1f8] sm:$0xff]
  %v78 = vld [vmem:[%s1] sm:$0xff]
  %v79 = vld [vmem:[%s1 + $0x8] sm:$0xf]
  %v80 = vld [vmem:[%s2] sm:$0x1]
  %v82 = vperm.slane %v80, 0
  %vm84 = vcmask 97280
  %v86 = vsel %vm84, %v14, 0
  %v89 = vsel %vm84, %v15, 0
  %v92 = vsel %vm84, %v16, 0
  %v95 = vsel %vm84, %v17, 0
  %v98 = vsel %vm84, %v18, 0
  %v101 = vsel %vm84, %v19, 0
  %v104 = vsel %vm84, %v20, 0
  %v107 = vsel %vm84, %v21, 0
  %v110 = vsel %vm84, %v22, 0
  %v113 = vsel %vm84, %v23, 0
  %v116 = vsel %vm84, %v24, 0
  %v119 = vsel %vm84, %v25, 0
  %v122 = vsel %vm84, %v26, 0
  %v125 = vsel %vm84, %v27, 0
  %v128 = vsel %vm84, %v28, 0
  %v131 = vsel %vm84, %v29, 0
  %v134 = vsel %vm84, %v30, 0
  %v137 = vsel %vm84, %v31, 0
  %v140 = vsel %vm84, %v32, 0
  %v143 = vsel %vm84, %v33, 0
  %v146 = vsel %vm84, %v34, 0
  %v149 = vsel %vm84, %v35, 0
  %v152 = vsel %vm84, %v36, 0
  %v155 = vsel %vm84, %v37, 0
  %v158 = vsel %vm84, %v38, 0
  %v161 = vsel %vm84, %v39, 0
  %v164 = vsel %vm84, %v40, 0
  %v167 = vsel %vm84, %v41, 0
  %v170 = vsel %vm84, %v42, 0
  %v173 = vsel %vm84, %v43, 0
  %v176 = vsel %vm84, %v44, 0
  %v179 = vsel %vm84, %v45, 0
  %v182 = vsel %vm84, %v46, 0
  %v185 = vsel %vm84, %v47, 0
  %v188 = vsel %vm84, %v48, 0
  %v191 = vsel %vm84, %v49, 0
  %v194 = vsel %vm84, %v50, 0
  %v197 = vsel %vm84, %v51, 0
  %v200 = vsel %vm84, %v52, 0
  %v203 = vsel %vm84, %v53, 0
  %v206 = vsel %vm84, %v54, 0
  %v209 = vsel %vm84, %v55, 0
  %v212 = vsel %vm84, %v56, 0
  %v215 = vsel %vm84, %v57, 0
  %v218 = vsel %vm84, %v58, 0
  %v221 = vsel %vm84, %v59, 0
  %v224 = vsel %vm84, %v60, 0
  %v227 = vsel %vm84, %v61, 0
  %v230 = vsel %vm84, %v62, 0
  %v233 = vsel %vm84, %v63, 0
  %v236 = vsel %vm84, %v64, 0
  %v239 = vsel %vm84, %v65, 0
  %v242 = vsel %vm84, %v66, 0
  %v245 = vsel %vm84, %v67, 0
  %v248 = vsel %vm84, %v68, 0
  %v251 = vsel %vm84, %v69, 0
  %v254 = vsel %vm84, %v70, 0
  %v257 = vsel %vm84, %v71, 0
  %v260 = vsel %vm84, %v72, 0
  %v263 = vsel %vm84, %v73, 0
  %v266 = vsel %vm84, %v74, 0
  %v269 = vsel %vm84, %v75, 0
  %v272 = vsel %vm84, %v76, 0
  %v275 = vsel %vm84, %v77, 0
  %vm277 = vcmask 1043456
  %v279 = vsel %vm277, %v79, 0
  %281 = vmatpush.msra.mxu0 0.0
  %282 = vmatpush.msra.mxu0 0.0
  %283 = vmatpush.msra.mxu0 0.0
  %284 = vmatpush.msra.mxu0 0.0
  %285 = vmatpush.msra.mxu0 0.0
  %286 = vmatpush.msra.mxu0 0.0
  %287 = vmatpush.msra.mxu0 0.0
  %288 = vmatpush.msra.mxu0 0.0
  %289 = vmatpush.msra.mxu0 0.0
  %290 = vmatpush.msra.mxu0 0.0
  %291 = vmatpush.msra.mxu0 0.0
  %292 = vmatpush.msra.mxu0 0.0
  %293 = vmatpush.msra.mxu0 0.0
  %294 = vmatpush.msra.mxu0 0.0
  %295 = vmatpush.msra.mxu0 %v279
  %296 = vmatpush.msra.mxu0 %v78
  %297 = vmatmul.f32.gmra.mxu0 %v86
  %v298 = vpop.f32.mrf.mxu0
  %v299 = vadd.f32 %v82, %v298
  %300 = vmatmul.f32.gmra.mxu0 %v89
  %v301 = vpop.f32.mrf.mxu0
  %v302 = vadd.f32 %v82, %v301
  %303 = vmatmul.f32.gmra.mxu0 %v92
  %v304 = vpop.f32.mrf.mxu0
  %v305 = vadd.f32 %v82, %v304
  %306 = vmatmul.f32.gmra.mxu0 %v95
  %v307 = vpop.f32.mrf.mxu0
  %v308 = vadd.f32 %v82, %v307
  %309 = vmatmul.f32.gmra.mxu0 %v98
  %v310 = vpop.f32.mrf.mxu0
  %v311 = vadd.f32 %v82, %v310
  %312 = vmatmul.f32.gmra.mxu0 %v101
  %v313 = vpop.f32.mrf.mxu0
  %v314 = vadd.f32 %v82, %v313
  %315 = vmatmul.f32.gmra.mxu0 %v104
  %v316 = vpop.f32.mrf.mxu0
  %v317 = vadd.f32 %v82, %v316
  %318 = vmatmul.f32.gmra.mxu0 %v107
  %v319 = vpop.f32.mrf.mxu0
  %v320 = vadd.f32 %v82, %v319
  %321 = vmatmul.f32.gmra.mxu0 %v110
  %v322 = vpop.f32.mrf.mxu0
  %v323 = vadd.f32 %v82, %v322
  %324 = vmatmul.f32.gmra.mxu0 %v113
  %v325 = vpop.f32.mrf.mxu0
  %v326 = vadd.f32 %v82, %v325
  %327 = vmatmul.f32.gmra.mxu0 %v116
  %v328 = vpop.f32.mrf.mxu0
  %v329 = vadd.f32 %v82, %v328
  %330 = vmatmul.f32.gmra.mxu0 %v119
  %v331 = vpop.f32.mrf.mxu0
  %v332 = vadd.f32 %v82, %v331
  %333 = vmatmul.f32.gmra.mxu0 %v122
  %v334 = vpop.f32.mrf.mxu0
  %v335 = vadd.f32 %v82, %v334
  %336 = vmatmul.f32.gmra.mxu0 %v125
  %v337 = vpop.f32.mrf.mxu0
  %v338 = vadd.f32 %v82, %v337
  %339 = vmatmul.f32.gmra.mxu0 %v128
  %v340 = vpop.f32.mrf.mxu0
  %v341 = vadd.f32 %v82, %v340
  %342 = vmatmul.f32.gmra.mxu0 %v131
  %v343 = vpop.f32.mrf.mxu0
  %v344 = vadd.f32 %v82, %v343
  %345 = vmatmul.f32.gmra.mxu0 %v134
  %v346 = vpop.f32.mrf.mxu0
  %v347 = vadd.f32 %v82, %v346
  %348 = vmatmul.f32.gmra.mxu0 %v137
  %v349 = vpop.f32.mrf.mxu0
  %v350 = vadd.f32 %v82, %v349
  %351 = vmatmul.f32.gmra.mxu0 %v140
  %v352 = vpop.f32.mrf.mxu0
  %v353 = vadd.f32 %v82, %v352
  %354 = vmatmul.f32.gmra.mxu0 %v143
  %v355 = vpop.f32.mrf.mxu0
  %v356 = vadd.f32 %v82, %v355
  %357 = vmatmul.f32.gmra.mxu0 %v146
  %v358 = vpop.f32.mrf.mxu0
  %v359 = vadd.f32 %v82, %v358
  %360 = vmatmul.f32.gmra.mxu0 %v149
  %v361 = vpop.f32.mrf.mxu0
  %v362 = vadd.f32 %v82, %v361
  %363 = vmatmul.f32.gmra.mxu0 %v152
  %v364 = vpop.f32.mrf.mxu0
  %v365 = vadd.f32 %v82, %v364
  %366 = vmatmul.f32.gmra.mxu0 %v155
  %v367 = vpop.f32.mrf.mxu0
  %v368 = vadd.f32 %v82, %v367
  %369 = vmatmul.f32.gmra.mxu0 %v158
  %v370 = vpop.f32.mrf.mxu0
  %v371 = vadd.f32 %v82, %v370
  %372 = vmatmul.f32.gmra.mxu0 %v161
  %v373 = vpop.f32.mrf.mxu0
  %v374 = vadd.f32 %v82, %v373
  %375 = vmatmul.f32.gmra.mxu0 %v164
  %v376 = vpop.f32.mrf.mxu0
  %v377 = vadd.f32 %v82, %v376
  %378 = vmatmul.f32.gmra.mxu0 %v167
  %v379 = vpop.f32.mrf.mxu0
  %v380 = vadd.f32 %v82, %v379
  %381 = vmatmul.f32.gmra.mxu0 %v170
  %v382 = vpop.f32.mrf.mxu0
  %v383 = vadd.f32 %v82, %v382
  %384 = vmatmul.f32.gmra.mxu0 %v173
  %v385 = vpop.f32.mrf.mxu0
  %v386 = vadd.f32 %v82, %v385
  %387 = vmatmul.f32.gmra.mxu0 %v176
  %v388 = vpop.f32.mrf.mxu0
  %v389 = vadd.f32 %v82, %v388
  %390 = vmatmul.f32.gmra.mxu0 %v179
  %v391 = vpop.f32.mrf.mxu0
  %v392 = vadd.f32 %v82, %v391
  %393 = vmatmul.f32.gmra.mxu0 %v182
  %v394 = vpop.f32.mrf.mxu0
  %v395 = vadd.f32 %v82, %v394
  %396 = vmatmul.f32.gmra.mxu0 %v185
  %v397 = vpop.f32.mrf.mxu0
  %v398 = vadd.f32 %v82, %v397
  %399 = vmatmul.f32.gmra.mxu0 %v188
  %v400 = vpop.f32.mrf.mxu0
  %v401 = vadd.f32 %v82, %v400
  %402 = vmatmul.f32.gmra.mxu0 %v191
  %v403 = vpop.f32.mrf.mxu0
  %v404 = vadd.f32 %v82, %v403
  %405 = vmatmul.f32.gmra.mxu0 %v194
  %v406 = vpop.f32.mrf.mxu0
  %v407 = vadd.f32 %v82, %v406
  %408 = vmatmul.f32.gmra.mxu0 %v197
  %v409 = vpop.f32.mrf.mxu0
  %v410 = vadd.f32 %v82, %v409
  %411 = vmatmul.f32.gmra.mxu0 %v200
  %v412 = vpop.f32.mrf.mxu0
  %v413 = vadd.f32 %v82, %v412
  %414 = vmatmul.f32.gmra.mxu0 %v203
  %v415 = vpop.f32.mrf.mxu0
  %v416 = vadd.f32 %v82, %v415
  %417 = vmatmul.f32.gmra.mxu0 %v206
  %v418 = vpop.f32.mrf.mxu0
  %v419 = vadd.f32 %v82, %v418
  %420 = vmatmul.f32.gmra.mxu0 %v209
  %v421 = vpop.f32.mrf.mxu0
  %v422 = vadd.f32 %v82, %v421
  %423 = vmatmul.f32.gmra.mxu0 %v212
  %v424 = vpop.f32.mrf.mxu0
  %v425 = vadd.f32 %v82, %v424
  %426 = vmatmul.f32.gmra.mxu0 %v215
  %v427 = vpop.f32.mrf.mxu0
  %v428 = vadd.f32 %v82, %v427
  %429 = vmatmul.f32.gmra.mxu0 %v218
  %v430 = vpop.f32.mrf.mxu0
  %v431 = vadd.f32 %v82, %v430
  %432 = vmatmul.f32.gmra.mxu0 %v221
  %v433 = vpop.f32.mrf.mxu0
  %v434 = vadd.f32 %v82, %v433
  %435 = vmatmul.f32.gmra.mxu0 %v224
  %v436 = vpop.f32.mrf.mxu0
  %v437 = vadd.f32 %v82, %v436
  %438 = vmatmul.f32.gmra.mxu0 %v227
  %v439 = vpop.f32.mrf.mxu0
  %v440 = vadd.f32 %v82, %v439
  %441 = vmatmul.f32.gmra.mxu0 %v230
  %v442 = vpop.f32.mrf.mxu0
  %v443 = vadd.f32 %v82, %v442
  %444 = vmatmul.f32.gmra.mxu0 %v233
  %v445 = vpop.f32.mrf.mxu0
  %v446 = vadd.f32 %v82, %v445
  %447 = vmatmul.f32.gmra.mxu0 %v236
  %v448 = vpop.f32.mrf.mxu0
  %v449 = vadd.f32 %v82, %v448
  %450 = vmatmul.f32.gmra.mxu0 %v239
  %v451 = vpop.f32.mrf.mxu0
  %v452 = vadd.f32 %v82, %v451
  %453 = vmatmul.f32.gmra.mxu0 %v242
  %v454 = vpop.f32.mrf.mxu0
  %v455 = vadd.f32 %v82, %v454
  %456 = vmatmul.f32.gmra.mxu0 %v245
  %v457 = vpop.f32.mrf.mxu0
  %v458 = vadd.f32 %v82, %v457
  %459 = vmatmul.f32.gmra.mxu0 %v248
  %v460 = vpop.f32.mrf.mxu0
  %v461 = vadd.f32 %v82, %v460
  %462 = vmatmul.f32.gmra.mxu0 %v251
  %v463 = vpop.f32.mrf.mxu0
  %v464 = vadd.f32 %v82, %v463
  %465 = vmatmul.f32.gmra.mxu0 %v254
  %v466 = vpop.f32.mrf.mxu0
  %v467 = vadd.f32 %v82, %v466
  %468 = vmatmul.f32.gmra.mxu0 %v257
  %v469 = vpop.f32.mrf.mxu0
  %v470 = vadd.f32 %v82, %v469
  %471 = vmatmul.f32.gmra.mxu0 %v260
  %v472 = vpop.f32.mrf.mxu0
  %v473 = vadd.f32 %v82, %v472
  %474 = vmatmul.f32.gmra.mxu0 %v263
  %v475 = vpop.f32.mrf.mxu0
  %v476 = vadd.f32 %v82, %v475
  %477 = vmatmul.f32.gmra.mxu0 %v266
  %v478 = vpop.f32.mrf.mxu0
  %v479 = vadd.f32 %v82, %v478
  %480 = vmatmul.f32.gmra.mxu0 %v269
  %v481 = vpop.f32.mrf.mxu0
  %v482 = vadd.f32 %v82, %v481
  %483 = vmatmul.f32.gmra.mxu0 %v272
  %v484 = vpop.f32.mrf.mxu0
  %v485 = vadd.f32 %v82, %v484
  %486 = vmatmul.f32.gmra.mxu0 %v275
  %v487 = vpop.f32.mrf.mxu0
  %v488 = vadd.f32 %v82, %v487
  %489 = vdwg.mxu0
  %v490 = vmax.f32 %v299, 0.0
  %v491 = vmax.f32 %v302, 0.0
  %v492 = vmax.f32 %v305, 0.0
  %v493 = vmax.f32 %v308, 0.0
  %v494 = vmax.f32 %v311, 0.0
  %v495 = vmax.f32 %v314, 0.0
  %v496 = vmax.f32 %v317, 0.0
  %v497 = vmax.f32 %v320, 0.0
  %v498 = vmax.f32 %v323, 0.0
  %v499 = vmax.f32 %v326, 0.0
  %v500 = vmax.f32 %v329, 0.0
  %v501 = vmax.f32 %v332, 0.0
  %v502 = vmax.f32 %v335, 0.0
  %v503 = vmax.f32 %v338, 0.0
  %v504 = vmax.f32 %v341, 0.0
  %v505 = vmax.f32 %v344, 0.0
  %v506 = vmax.f32 %v347, 0.0
  %v507 = vmax.f32 %v350, 0.0
  %v508 = vmax.f32 %v353, 0.0
  %v509 = vmax.f32 %v356, 0.0
  %v510 = vmax.f32 %v359, 0.0
  %v511 = vmax.f32 %v362, 0.0
  %v512 = vmax.f32 %v365, 0.0
  %v513 = vmax.f32 %v368, 0.0
  %v514 = vmax.f32 %v371, 0.0
  %v515 = vmax.f32 %v374, 0.0
  %v516 = vmax.f32 %v377, 0.0
  %v517 = vmax.f32 %v380, 0.0
  %v518 = vmax.f32 %v383, 0.0
  %v519 = vmax.f32 %v386, 0.0
  %v520 = vmax.f32 %v389, 0.0
  %v521 = vmax.f32 %v392, 0.0
  %v522 = vmax.f32 %v395, 0.0
  %v523 = vmax.f32 %v398, 0.0
  %v524 = vmax.f32 %v401, 0.0
  %v525 = vmax.f32 %v404, 0.0
  %v526 = vmax.f32 %v407, 0.0
  %v527 = vmax.f32 %v410, 0.0
  %v528 = vmax.f32 %v413, 0.0
  %v529 = vmax.f32 %v416, 0.0
  %v530 = vmax.f32 %v419, 0.0
  %v531 = vmax.f32 %v422, 0.0
  %v532 = vmax.f32 %v425, 0.0
  %v533 = vmax.f32 %v428, 0.0
  %v534 = vmax.f32 %v431, 0.0
  %v535 = vmax.f32 %v434, 0.0
  %v536 = vmax.f32 %v437, 0.0
  %v537 = vmax.f32 %v440, 0.0
  %v538 = vmax.f32 %v443, 0.0
  %v539 = vmax.f32 %v446, 0.0
  %v540 = vmax.f32 %v449, 0.0
  %v541 = vmax.f32 %v452, 0.0
  %v542 = vmax.f32 %v455, 0.0
  %v543 = vmax.f32 %v458, 0.0
  %v544 = vmax.f32 %v461, 0.0
  %v545 = vmax.f32 %v464, 0.0
  %v546 = vmax.f32 %v467, 0.0
  %v547 = vmax.f32 %v470, 0.0
  %v548 = vmax.f32 %v473, 0.0
  %v549 = vmax.f32 %v476, 0.0
  %v550 = vmax.f32 %v479, 0.0
  %v551 = vmax.f32 %v482, 0.0
  %v552 = vmax.f32 %v485, 0.0
  %v553 = vmax.f32 %v488, 0.0
  %vm554 = vcmask 261120
  %555 = vst.msk [vmem:[%s3] sm:$0xff] %vm554, %v490
  %556 = vst.msk [vmem:[%s3 + $0x8] sm:$0xff] %vm554, %v491
  %557 = vst.msk [vmem:[%s3 + $0x10] sm:$0xff] %vm554, %v492
  %558 = vst.msk [vmem:[%s3 + $0x18] sm:$0xff] %vm554, %v493
  %559 = vst.msk [vmem:[%s3 + $0x20] sm:$0xff] %vm554, %v494
  %560 = vst.msk [vmem:[%s3 + $0x28] sm:$0xff] %vm554, %v495
  %561 = vst.msk [vmem:[%s3 + $0x30] sm:$0xff] %vm554, %v496
  %562 = vst.msk [vmem:[%s3 + $0x38] sm:$0xff] %vm554, %v497
  %563 = vst.msk [vmem:[%s3 + $0x40] sm:$0xff] %vm554, %v498
  %564 = vst.msk [vmem:[%s3 + $0x48] sm:$0xff] %vm554, %v499
  %565 = vst.msk [vmem:[%s3 + $0x50] sm:$0xff] %vm554, %v500
  %566 = vst.msk [vmem:[%s3 + $0x58] sm:$0xff] %vm554, %v501
  %567 = vst.msk [vmem:[%s3 + $0x60] sm:$0xff] %vm554, %v502
  %568 = vst.msk [vmem:[%s3 + $0x68] sm:$0xff] %vm554, %v503
  %569 = vst.msk [vmem:[%s3 + $0x70] sm:$0xff] %vm554, %v504
  %570 = vst.msk [vmem:[%s3 + $0x78] sm:$0xff] %vm554, %v505
  %571 = vst.msk [vmem:[%s3 + $0x80] sm:$0xff] %vm554, %v506
  %572 = vst.msk [vmem:[%s3 + $0x88] sm:$0xff] %vm554, %v507
  %573 = vst.msk [vmem:[%s3 + $0x90] sm:$0xff] %vm554, %v508
  %574 = vst.msk [vmem:[%s3 + $0x98] sm:$0xff] %vm554, %v509
  %575 = vst.msk [vmem:[%s3 + $0xa0] sm:$0xff] %vm554, %v510
  %576 = vst.msk [vmem:[%s3 + $0xa8] sm:$0xff] %vm554, %v511
  %577 = vst.msk [vmem:[%s3 + $0xb0] sm:$0xff] %vm554, %v512
  %578 = vst.msk [vmem:[%s3 + $0xb8] sm:$0xff] %vm554, %v513
  %579 = vst.msk [vmem:[%s3 + $0xc0] sm:$0xff] %vm554, %v514
  %580 = vst.msk [vmem:[%s3 + $0xc8] sm:$0xff] %vm554, %v515
  %581 = vst.msk [vmem:[%s3 + $0xd0] sm:$0xff] %vm554, %v516
  %582 = vst.msk [vmem:[%s3 + $0xd8] sm:$0xff] %vm554, %v517
  %583 = vst.msk [vmem:[%s3 + $0xe0] sm:$0xff] %vm554, %v518
  %584 = vst.msk [vmem:[%s3 + $0xe8] sm:$0xff] %vm554, %v519
  %585 = vst.msk [vmem:[%s3 + $0xf0] sm:$0xff] %vm554, %v520
  %586 = vst.msk [vmem:[%s3 + $0xf8] sm:$0xff] %vm554, %v521
  %587 = vst.msk [vmem:[%s3 + $0x100] sm:$0xff] %vm554, %v522
  %588 = vst.msk [vmem:[%s3 + $0x108] sm:$0xff] %vm554, %v523
  %589 = vst.msk [vmem:[%s3 + $0x110] sm:$0xff] %vm554, %v524
  %590 = vst.msk [vmem:[%s3 + $0x118] sm:$0xff] %vm554, %v525
  %591 = vst.msk [vmem:[%s3 + $0x120] sm:$0xff] %vm554, %v526
  %592 = vst.msk [vmem:[%s3 + $0x128] sm:$0xff] %vm554, %v527
  %593 = vst.msk [vmem:[%s3 + $0x130] sm:$0xff] %vm554, %v528
  %594 = vst.msk [vmem:[%s3 + $0x138] sm:$0xff] %vm554, %v529
  %595 = vst.msk [vmem:[%s3 + $0x140] sm:$0xff] %vm554, %v530
  %596 = vst.msk [vmem:[%s3 + $0x148] sm:$0xff] %vm554, %v531
  %597 = vst.msk [vmem:[%s3 + $0x150] sm:$0xff] %vm554, %v532
  %598 = vst.msk [vmem:[%s3 + $0x158] sm:$0xff] %vm554, %v533
  %599 = vst.msk [vmem:[%s3 + $0x160] sm:$0xff] %vm554, %v534
  %600 = vst.msk [vmem:[%s3 + $0x168] sm:$0xff] %vm554, %v535
  %601 = vst.msk [vmem:[%s3 + $0x170] sm:$0xff] %vm554, %v536
  %602 = vst.msk [vmem:[%s3 + $0x178] sm:$0xff] %vm554, %v537
  %603 = vst.msk [vmem:[%s3 + $0x180] sm:$0xff] %vm554, %v538
  %604 = vst.msk [vmem:[%s3 + $0x188] sm:$0xff] %vm554, %v539
  %605 = vst.msk [vmem:[%s3 + $0x190] sm:$0xff] %vm554, %v540
  %606 = vst.msk [vmem:[%s3 + $0x198] sm:$0xff] %vm554, %v541
  %607 = vst.msk [vmem:[%s3 + $0x1a0] sm:$0xff] %vm554, %v542
  %608 = vst.msk [vmem:[%s3 + $0x1a8] sm:$0xff] %vm554, %v543
  %609 = vst.msk [vmem:[%s3 + $0x1b0] sm:$0xff] %vm554, %v544
  %610 = vst.msk [vmem:[%s3 + $0x1b8] sm:$0xff] %vm554, %v545
  %611 = vst.msk [vmem:[%s3 + $0x1c0] sm:$0xff] %vm554, %v546
  %612 = vst.msk [vmem:[%s3 + $0x1c8] sm:$0xff] %vm554, %v547
  %613 = vst.msk [vmem:[%s3 + $0x1d0] sm:$0xff] %vm554, %v548
  %614 = vst.msk [vmem:[%s3 + $0x1d8] sm:$0xff] %vm554, %v549
  %615 = vst.msk [vmem:[%s3 + $0x1e0] sm:$0xff] %vm554, %v550
  %616 = vst.msk [vmem:[%s3 + $0x1e8] sm:$0xff] %vm554, %v551
  %617 = vst.msk [vmem:[%s3 + $0x1f0] sm:$0xff] %vm554, %v552
  %618 = vst.msk [vmem:[%s3 + $0x1f8] sm:$0xff] %vm554, %v553
  // Predicated region
  $region14: #{sfadnet_forward.12} parent=0 // pred_check
    _
  $region15: #{sfadnet_forward.12} parent=0 // pred_check_branch
    %620 = sbr.rel (0) target = $region17
  $region16: #{sfadnet_forward.12} parent=0 // pred_region
    _
  $region17: #{sfadnet_forward.12} parent=0 // pred_fallthru
    _
  // Predicated region
  $region18: #{sfadnet_forward.12} parent=0 // pred_check
    _
  $region19: #{sfadnet_forward.12} parent=0 // pred_check_branch
    %622 = sbr.rel (0) target = $region21
  $region20: #{sfadnet_forward.12} parent=0 // pred_region
    _
  $region21: #{sfadnet_forward.12} parent=0 // pred_fallthru
    _

// kernel: sfadnet_forward.9
$region0: #{sfadnet_forward.9}
  #allocation0 [shape = 'u32[]', space=smem, size = 0x4, offset = 0x4, fixed_abs, tag = 'smem constant byte address 0x4 - core index']
  #allocation1 [shape = 'u32[72,128]{1,0:T(1,128)}', space=vmem, size = 0x9000, scoped, tag = 'internal scratch']
  #allocation2 [shape = 'f32[1,1]{1,0:T(1,128)S(1)}', space=vmem, size = 0x200, scoped, tag = 'scoped memory for sfadnet_forward.9']
  %s0 = inlined_call_operand.vmem [shape: f32[192,2], index: 0, kind: input, shape index: {}]
  %s1 = inlined_call_operand.vmem [shape: f32[192,24], index: 1, kind: input, shape index: {}]
  %s2 = inlined_call_operand.vmem [shape: f32[2,16], index: 2, kind: input, shape index: {}]
  %s3 = inlined_call_operand.vmem [shape: f32[1,16], index: 3, kind: input, shape index: {}]
  %s4 = inlined_call_operand.vmem [shape: f32[24,64], index: 4, kind: input, shape index: {}]
  %s5 = inlined_call_operand.vmem [shape: f32[1,64], index: 5, kind: input, shape index: {}]
  %s6 = inlined_call_operand.vmem [shape: f32[1,64], index: 6, kind: input, shape index: {}]
  %s7 = inlined_call_operand.<no memory space> [shape: f32[1,1], index: 7, kind: input, shape index: {}]
  %s8 = inlined_call_operand.vmem [shape: f32[192,16], index: 8, kind: output, shape index: {0}]
  %s9 = inlined_call_operand.vmem [shape: f32[192,16], index: 9, kind: output, shape index: {1}]
  %s10 = inlined_call_operand.vmem [shape: f32[192,16], index: 10, kind: output, shape index: {2}]
  %11 = xla_tuple %s8, %s9, %s10
  %s12 = sld [smem:[#allocation0]]
  $region58: #{sfadnet_forward.9} parent=0
    _
  %s14 = ssub.s32 1, %s12
  %s15 = scalar_select 0, %s14, %s12
  %v16 = vstv %s7
  %17 = vst [vmem:[#allocation2] sm:$0x1] %v16
  // Predicated region
  $region2: #{sfadnet_forward.9} parent=0 // pred_check
    _
  $region3: #{sfadnet_forward.9} parent=0 // pred_check_branch
    %19 = sbr.rel (0) target = $region5
  $region4: #{sfadnet_forward.9} parent=0 // pred_region
    _
  $region5: #{sfadnet_forward.9} parent=0 // pred_fallthru
    _
  // Predicated region
  $region6: #{sfadnet_forward.9} parent=0 // pred_check
    _
  $region7: #{sfadnet_forward.9} parent=0 // pred_check_branch
    %21 = sbr.rel (0) target = $region9
  $region8: #{sfadnet_forward.9} parent=0 // pred_region
    _
  $region9: #{sfadnet_forward.9} parent=0 // pred_fallthru
    _
  // Predicated region
  $region10: #{sfadnet_forward.9} parent=0 // pred_check
    _
  $region11: #{sfadnet_forward.9} parent=0 // pred_check_branch
    %23 = sbr.rel (0) target = $region13
  $region12: #{sfadnet_forward.9} parent=0 // pred_region
    _
  $region13: #{sfadnet_forward.9} parent=0 // pred_fallthru
    _
  // Predicated region
  $region14: #{sfadnet_forward.9} parent=0 // pred_check
    _
  $region15: #{sfadnet_forward.9} parent=0 // pred_check_branch
    %25 = sbr.rel (0) target = $region17
  $region16: #{sfadnet_forward.9} parent=0 // pred_region
    _
  $region17: #{sfadnet_forward.9} parent=0 // pred_fallthru
    _
  // Predicated region
  $region18: #{sfadnet_forward.9} parent=0 // pred_check
    _
  $region19: #{sfadnet_forward.9} parent=0 // pred_check_branch
    %27 = sbr.rel (0) target = $region21
  $region20: #{sfadnet_forward.9} parent=0 // pred_region
    _
  $region21: #{sfadnet_forward.9} parent=0 // pred_fallthru
    _
  // Predicated region
  $region22: #{sfadnet_forward.9} parent=0 // pred_check
    _
  $region23: #{sfadnet_forward.9} parent=0 // pred_check_branch
    %29 = sbr.rel (0) target = $region25
  $region24: #{sfadnet_forward.9} parent=0 // pred_region
    _
  $region25: #{sfadnet_forward.9} parent=0 // pred_fallthru
    _
  // Predicated region
  $region26: #{sfadnet_forward.9} parent=0 // pred_check
    _
  $region27: #{sfadnet_forward.9} parent=0 // pred_check_branch
    %31 = sbr.rel (0) target = $region29
  $region28: #{sfadnet_forward.9} parent=0 // pred_region
    _
  $region29: #{sfadnet_forward.9} parent=0 // pred_fallthru
    _
  // Predicated region
  $region30: #{sfadnet_forward.9} parent=0 // pred_check
    _
  $region31: #{sfadnet_forward.9} parent=0 // pred_check_branch
    %33 = sbr.rel (0) target = $region33
  $region32: #{sfadnet_forward.9} parent=0 // pred_region
    _
  $region33: #{sfadnet_forward.9} parent=0 // pred_fallthru
    _
  %v34 = vld [vmem:[%s0] sm:$0xff]
  %v35 = vld [vmem:[%s0 + $0x8] sm:$0xff]
  %v36 = vld [vmem:[%s0 + $0x10] sm:$0xff]
  %v37 = vld [vmem:[%s0 + $0x18] sm:$0xff]
  %v38 = vld [vmem:[%s0 + $0x20] sm:$0xff]
  %v39 = vld [vmem:[%s0 + $0x28] sm:$0xff]
  %v40 = vld [vmem:[%s0 + $0x30] sm:$0xff]
  %v41 = vld [vmem:[%s0 + $0x38] sm:$0xff]
  %v42 = vld [vmem:[%s0 + $0x40] sm:$0xff]
  %v43 = vld [vmem:[%s0 + $0x48] sm:$0xff]
  %v44 = vld [vmem:[%s0 + $0x50] sm:$0xff]
  %v45 = vld [vmem:[%s0 + $0x58] sm:$0xff]
  %v46 = vld [vmem:[%s0 + $0x60] sm:$0xff]
  %v47 = vld [vmem:[%s0 + $0x68] sm:$0xff]
  %v48 = vld [vmem:[%s0 + $0x70] sm:$0xff]
  %v49 = vld [vmem:[%s0 + $0x78] sm:$0xff]
  %v50 = vld [vmem:[%s0 + $0x80] sm:$0xff]
  %v51 = vld [vmem:[%s0 + $0x88] sm:$0xff]
  %v52 = vld [vmem:[%s0 + $0x90] sm:$0xff]
  %v53 = vld [vmem:[%s0 + $0x98] sm:$0xff]
  %v54 = vld [vmem:[%s0 + $0xa0] sm:$0xff]
  %v55 = vld [vmem:[%s0 + $0xa8] sm:$0xff]
  %v56 = vld [vmem:[%s0 + $0xb0] sm:$0xff]
  %v57 = vld [vmem:[%s0 + $0xb8] sm:$0xff]
  %v58 = vld [vmem:[%s2] sm:$0x3]
  %v59 = vld [vmem:[%s3] sm:$0x1]
  %v61 = vperm.slane %v59, 0
  %vm63 = vcmask 15360
  %v65 = vsel %vm63, %v34, 0
  %v68 = vsel %vm63, %v35, 0
  %v71 = vsel %vm63, %v36, 0
  %v74 = vsel %vm63, %v37, 0
  %v77 = vsel %vm63, %v38, 0
  %v80 = vsel %vm63, %v39, 0
  %v83 = vsel %vm63, %v40, 0
  %v86 = vsel %vm63, %v41, 0
  %v89 = vsel %vm63, %v42, 0
  %v92 = vsel %vm63, %v43, 0
  %v95 = vsel %vm63, %v44, 0
  %v98 = vsel %vm63, %v45, 0
  %v101 = vsel %vm63, %v46, 0
  %v104 = vsel %vm63, %v47, 0
  %v107 = vsel %vm63, %v48, 0
  %v110 = vsel %vm63, %v49, 0
  %v113 = vsel %vm63, %v50, 0
  %v116 = vsel %vm63, %v51, 0
  %v119 = vsel %vm63, %v52, 0
  %v122 = vsel %vm63, %v53, 0
  %v125 = vsel %vm63, %v54, 0
  %v128 = vsel %vm63, %v55, 0
  %v131 = vsel %vm63, %v56, 0
  %v134 = vsel %vm63, %v57, 0
  %vm136 = vcmask 1041408
  %v138 = vsel %vm136, %v58, 0
  %140 = vmatpush.msra.mxu0 0.0
  %141 = vmatpush.msra.mxu0 0.0
  %142 = vmatpush.msra.mxu0 0.0
  %143 = vmatpush.msra.mxu0 0.0
  %144 = vmatpush.msra.mxu0 0.0
  %145 = vmatpush.msra.mxu0 0.0
  %146 = vmatpush.msra.mxu0 0.0
  %147 = vmatpush.msra.mxu0 0.0
  %148 = vmatpush.msra.mxu0 0.0
  %149 = vmatpush.msra.mxu0 0.0
  %150 = vmatpush.msra.mxu0 0.0
  %151 = vmatpush.msra.mxu0 0.0
  %152 = vmatpush.msra.mxu0 0.0
  %153 = vmatpush.msra.mxu0 0.0
  %154 = vmatpush.msra.mxu0 0.0
  %155 = vmatpush.msra.mxu0 %v138
  %156 = vmatmul.f32.gmra.mxu0 %v65
  %v157 = vpop.f32.mrf.mxu0
  %v158 = vadd.f32 %v61, %v157
  %159 = vmatmul.f32.gmra.mxu0 %v68
  %v160 = vpop.f32.mrf.mxu0
  %v161 = vadd.f32 %v61, %v160
  %162 = vmatmul.f32.gmra.mxu0 %v71
  %v163 = vpop.f32.mrf.mxu0
  %v164 = vadd.f32 %v61, %v163
  %165 = vmatmul.f32.gmra.mxu0 %v74
  %v166 = vpop.f32.mrf.mxu0
  %v167 = vadd.f32 %v61, %v166
  %168 = vmatmul.f32.gmra.mxu0 %v77
  %v169 = vpop.f32.mrf.mxu0
  %v170 = vadd.f32 %v61, %v169
  %171 = vmatmul.f32.gmra.mxu0 %v80
  %v172 = vpop.f32.mrf.mxu0
  %v173 = vadd.f32 %v61, %v172
  %174 = vmatmul.f32.gmra.mxu0 %v83
  %v175 = vpop.f32.mrf.mxu0
  %v176 = vadd.f32 %v61, %v175
  %177 = vmatmul.f32.gmra.mxu0 %v86
  %v178 = vpop.f32.mrf.mxu0
  %v179 = vadd.f32 %v61, %v178
  %180 = vmatmul.f32.gmra.mxu0 %v89
  %v181 = vpop.f32.mrf.mxu0
  %v182 = vadd.f32 %v61, %v181
  %183 = vmatmul.f32.gmra.mxu0 %v92
  %v184 = vpop.f32.mrf.mxu0
  %v185 = vadd.f32 %v61, %v184
  %186 = vmatmul.f32.gmra.mxu0 %v95
  %v187 = vpop.f32.mrf.mxu0
  %v188 = vadd.f32 %v61, %v187
  %189 = vmatmul.f32.gmra.mxu0 %v98
  %v190 = vpop.f32.mrf.mxu0
  %v191 = vadd.f32 %v61, %v190
  %192 = vmatmul.f32.gmra.mxu0 %v101
  %v193 = vpop.f32.mrf.mxu0
  %v194 = vadd.f32 %v61, %v193
  %195 = vmatmul.f32.gmra.mxu0 %v104
  %v196 = vpop.f32.mrf.mxu0
  %v197 = vadd.f32 %v61, %v196
  %198 = vmatmul.f32.gmra.mxu0 %v107
  %v199 = vpop.f32.mrf.mxu0
  %v200 = vadd.f32 %v61, %v199
  %201 = vmatmul.f32.gmra.mxu0 %v110
  %v202 = vpop.f32.mrf.mxu0
  %v203 = vadd.f32 %v61, %v202
  %204 = vmatmul.f32.gmra.mxu0 %v113
  %v205 = vpop.f32.mrf.mxu0
  %v206 = vadd.f32 %v61, %v205
  %207 = vmatmul.f32.gmra.mxu0 %v116
  %v208 = vpop.f32.mrf.mxu0
  %v209 = vadd.f32 %v61, %v208
  %210 = vmatmul.f32.gmra.mxu0 %v119
  %v211 = vpop.f32.mrf.mxu0
  %v212 = vadd.f32 %v61, %v211
  %213 = vmatmul.f32.gmra.mxu0 %v122
  %v214 = vpop.f32.mrf.mxu0
  %v215 = vadd.f32 %v61, %v214
  %216 = vmatmul.f32.gmra.mxu0 %v125
  %v217 = vpop.f32.mrf.mxu0
  %v218 = vadd.f32 %v61, %v217
  %219 = vmatmul.f32.gmra.mxu0 %v128
  %v220 = vpop.f32.mrf.mxu0
  %v221 = vadd.f32 %v61, %v220
  %222 = vmatmul.f32.gmra.mxu0 %v131
  %v223 = vpop.f32.mrf.mxu0
  %v224 = vadd.f32 %v61, %v223
  %225 = vmatmul.f32.gmra.mxu0 %v134
  %v226 = vpop.f32.mrf.mxu0
  %v227 = vadd.f32 %v61, %v226
  %228 = vdwg.mxu0
  %v229 = vld [vmem:[%s1] sm:$0xff]
  %v230 = vld [vmem:[%s1 + $0x8] sm:$0xff]
  %v231 = vld [vmem:[%s1 + $0x10] sm:$0xff]
  %v232 = vld [vmem:[%s1 + $0x18] sm:$0xff]
  %v233 = vld [vmem:[%s1 + $0x20] sm:$0xff]
  %v234 = vld [vmem:[%s1 + $0x28] sm:$0xff]
  %v235 = vld [vmem:[%s1 + $0x30] sm:$0xff]
  %v236 = vld [vmem:[%s1 + $0x38] sm:$0xff]
  %v237 = vld [vmem:[%s1 + $0x40] sm:$0xff]
  %v238 = vld [vmem:[%s1 + $0x48] sm:$0xff]
  %v239 = vld [vmem:[%s1 + $0x50] sm:$0xff]
  %v240 = vld [vmem:[%s1 + $0x58] sm:$0xff]
  %v241 = vld [vmem:[%s1 + $0x60] sm:$0xff]
  %v242 = vld [vmem:[%s1 + $0x68] sm:$0xff]
  %v243 = vld [vmem:[%s1 + $0x70] sm:$0xff]
  %v244 = vld [vmem:[%s1 + $0x78] sm:$0xff]
  %v245 = vld [vmem:[%s1 + $0x80] sm:$0xff]
  %v246 = vld [vmem:[%s1 + $0x88] sm:$0xff]
  %v247 = vld [vmem:[%s1 + $0x90] sm:$0xff]
  %v248 = vld [vmem:[%s1 + $0x98] sm:$0xff]
  %v249 = vld [vmem:[%s1 + $0xa0] sm:$0xff]
  %v250 = vld [vmem:[%s1 + $0xa8] sm:$0xff]
  %v251 = vld [vmem:[%s1 + $0xb0] sm:$0xff]
  %v252 = vld [vmem:[%s1 + $0xb8] sm:$0xff]
  %v253 = vld [vmem:[%s4] sm:$0xff]
  %v254 = vld [vmem:[%s4 + $0x8] sm:$0xff]
  %v255 = vld [vmem:[%s4 + $0x10] sm:$0xff]
  %v256 = vld [vmem:[%s5] sm:$0x1]
  %v258 = vperm.slane %v256, 0
  %vm260 = vcmask 195584
  %v262 = vsel %vm260, %v229, 0
  %v265 = vsel %vm260, %v230, 0
  %v268 = vsel %vm260, %v231, 0
  %v271 = vsel %vm260, %v232, 0
  %v274 = vsel %vm260, %v233, 0
  %v277 = vsel %vm260, %v234, 0
  %v280 = vsel %vm260, %v235, 0
  %v283 = vsel %vm260, %v236, 0
  %v286 = vsel %vm260, %v237, 0
  %v289 = vsel %vm260, %v238, 0
  %v292 = vsel %vm260, %v239, 0
  %v295 = vsel %vm260, %v240, 0
  %v298 = vsel %vm260, %v241, 0
  %v301 = vsel %vm260, %v242, 0
  %v304 = vsel %vm260, %v243, 0
  %v307 = vsel %vm260, %v244, 0
  %v310 = vsel %vm260, %v245, 0
  %v313 = vsel %vm260, %v246, 0
  %v316 = vsel %vm260, %v247, 0
  %v319 = vsel %vm260, %v248, 0
  %v322 = vsel %vm260, %v249, 0
  %v325 = vsel %vm260, %v250, 0
  %v328 = vsel %vm260, %v251, 0
  %v331 = vsel %vm260, %v252, 0
  %333 = vmatpush.msra.mxu0 0.0
  %334 = vmatpush.msra.mxu0 0.0
  %335 = vmatpush.msra.mxu0 0.0
  %336 = vmatpush.msra.mxu0 0.0
  %337 = vmatpush.msra.mxu0 0.0
  %338 = vmatpush.msra.mxu0 0.0
  %339 = vmatpush.msra.mxu0 0.0
  %340 = vmatpush.msra.mxu0 0.0
  %341 = vmatpush.msra.mxu0 0.0
  %342 = vmatpush.msra.mxu0 0.0
  %343 = vmatpush.msra.mxu0 0.0
  %344 = vmatpush.msra.mxu0 0.0
  %345 = vmatpush.msra.mxu0 0.0
  %346 = vmatpush.msra.mxu0 %v255
  %347 = vmatpush.msra.mxu0 %v254
  %348 = vmatpush.msra.mxu0 %v253
  %349 = vmatmul.f32.gmra.mxu0 %v262
  %v350 = vpop.f32.mrf.mxu0
  %v351 = vadd.f32 %v258, %v350
  %352 = vmatmul.f32.gmra.mxu0 %v265
  %v353 = vpop.f32.mrf.mxu0
  %v354 = vadd.f32 %v258, %v353
  %355 = vmatmul.f32.gmra.mxu0 %v268
  %v356 = vpop.f32.mrf.mxu0
  %v357 = vadd.f32 %v258, %v356
  %358 = vmatmul.f32.gmra.mxu0 %v271
  %v359 = vpop.f32.mrf.mxu0
  %v360 = vadd.f32 %v258, %v359
  %361 = vmatmul.f32.gmra.mxu0 %v274
  %v362 = vpop.f32.mrf.mxu0
  %v363 = vadd.f32 %v258, %v362
  %364 = vmatmul.f32.gmra.mxu0 %v277
  %v365 = vpop.f32.mrf.mxu0
  %v366 = vadd.f32 %v258, %v365
  %367 = vmatmul.f32.gmra.mxu0 %v280
  %v368 = vpop.f32.mrf.mxu0
  %v369 = vadd.f32 %v258, %v368
  %370 = vmatmul.f32.gmra.mxu0 %v283
  %v371 = vpop.f32.mrf.mxu0
  %v372 = vadd.f32 %v258, %v371
  %373 = vmatmul.f32.gmra.mxu0 %v286
  %v374 = vpop.f32.mrf.mxu0
  %v375 = vadd.f32 %v258, %v374
  %376 = vmatmul.f32.gmra.mxu0 %v289
  %v377 = vpop.f32.mrf.mxu0
  %v378 = vadd.f32 %v258, %v377
  %379 = vmatmul.f32.gmra.mxu0 %v292
  %v380 = vpop.f32.mrf.mxu0
  %v381 = vadd.f32 %v258, %v380
  %382 = vmatmul.f32.gmra.mxu0 %v295
  %v383 = vpop.f32.mrf.mxu0
  %v384 = vadd.f32 %v258, %v383
  %385 = vmatmul.f32.gmra.mxu0 %v298
  %v386 = vpop.f32.mrf.mxu0
  %v387 = vadd.f32 %v258, %v386
  %388 = vmatmul.f32.gmra.mxu0 %v301
  %v389 = vpop.f32.mrf.mxu0
  %v390 = vadd.f32 %v258, %v389
  %391 = vmatmul.f32.gmra.mxu0 %v304
  %v392 = vpop.f32.mrf.mxu0
  %v393 = vadd.f32 %v258, %v392
  %394 = vmatmul.f32.gmra.mxu0 %v307
  %v395 = vpop.f32.mrf.mxu0
  %v396 = vadd.f32 %v258, %v395
  %397 = vmatmul.f32.gmra.mxu0 %v310
  %v398 = vpop.f32.mrf.mxu0
  %v399 = vadd.f32 %v258, %v398
  %400 = vmatmul.f32.gmra.mxu0 %v313
  %v401 = vpop.f32.mrf.mxu0
  %v402 = vadd.f32 %v258, %v401
  %403 = vmatmul.f32.gmra.mxu0 %v316
  %v404 = vpop.f32.mrf.mxu0
  %v405 = vadd.f32 %v258, %v404
  %406 = vmatmul.f32.gmra.mxu0 %v319
  %v407 = vpop.f32.mrf.mxu0
  %v408 = vadd.f32 %v258, %v407
  %409 = vmatmul.f32.gmra.mxu0 %v322
  %v410 = vpop.f32.mrf.mxu0
  %v411 = vadd.f32 %v258, %v410
  %412 = vmatmul.f32.gmra.mxu0 %v325
  %v413 = vpop.f32.mrf.mxu0
  %v414 = vadd.f32 %v258, %v413
  %415 = vmatmul.f32.gmra.mxu0 %v328
  %v416 = vpop.f32.mrf.mxu0
  %v417 = vadd.f32 %v258, %v416
  %418 = vmatmul.f32.gmra.mxu0 %v331
  %v419 = vpop.f32.mrf.mxu0
  %v420 = vadd.f32 %v258, %v419
  %421 = vdwg.mxu0
  %v422 = vmax.f32 %v351, 0.0
  %v423 = vmax.f32 %v354, 0.0
  %v424 = vmax.f32 %v357, 0.0
  %v425 = vmax.f32 %v360, 0.0
  %v426 = vmax.f32 %v363, 0.0
  %v427 = vmax.f32 %v366, 0.0
  %v428 = vmax.f32 %v369, 0.0
  %v429 = vmax.f32 %v372, 0.0
  %v430 = vmax.f32 %v375, 0.0
  %v431 = vmax.f32 %v378, 0.0
  %v432 = vmax.f32 %v381, 0.0
  %v433 = vmax.f32 %v384, 0.0
  %v434 = vmax.f32 %v387, 0.0
  %v435 = vmax.f32 %v390, 0.0
  %v436 = vmax.f32 %v393, 0.0
  %v437 = vmax.f32 %v396, 0.0
  %v438 = vmax.f32 %v399, 0.0
  %v439 = vmax.f32 %v402, 0.0
  %v440 = vmax.f32 %v405, 0.0
  %v441 = vmax.f32 %v408, 0.0
  %v442 = vmax.f32 %v411, 0.0
  %v443 = vmax.f32 %v414, 0.0
  %v444 = vmax.f32 %v417, 0.0
  %v445 = vmax.f32 %v420, 0.0
  %v446 = vld [vmem:[%s6] sm:$0x1]
  %v448 = vperm.slane %v446, 0
  %v450 = vmul.f32 %v422, %v448
  %v451 = vmul.f32 %v423, %v448
  %v452 = vmul.f32 %v424, %v448
  %v453 = vmul.f32 %v425, %v448
  %v454 = vmul.f32 %v426, %v448
  %v455 = vmul.f32 %v427, %v448
  %v456 = vmul.f32 %v428, %v448
  %v457 = vmul.f32 %v429, %v448
  %v458 = vmul.f32 %v430, %v448
  %v459 = vmul.f32 %v431, %v448
  %v460 = vmul.f32 %v432, %v448
  %v461 = vmul.f32 %v433, %v448
  %v462 = vmul.f32 %v434, %v448
  %v463 = vmul.f32 %v435, %v448
  %v464 = vmul.f32 %v436, %v448
  %v465 = vmul.f32 %v437, %v448
  %v466 = vmul.f32 %v438, %v448
  %v467 = vmul.f32 %v439, %v448
  %v468 = vmul.f32 %v440, %v448
  %v469 = vmul.f32 %v441, %v448
  %v470 = vmul.f32 %v442, %v448
  %v471 = vmul.f32 %v443, %v448
  %v472 = vmul.f32 %v444, %v448
  %v473 = vmul.f32 %v445, %v448
  %vm474 = vcmask 523264
  %v475 = vsel %vm474, %v450, 0.0
  %476 = vadd.xlane.f32.xlu0 %v475
  %v477 = vpop.xlane.xlu0 %476
  %v478 = vsel %vm474, %v451, 0.0
  %479 = vadd.xlane.f32.xlu0 %v478
  %v480 = vpop.xlane.xlu0 %479
  %v481 = vsel %vm474, %v452, 0.0
  %482 = vadd.xlane.f32.xlu0 %v481
  %v483 = vpop.xlane.xlu0 %482
  %v484 = vsel %vm474, %v453, 0.0
  %485 = vadd.xlane.f32.xlu0 %v484
  %v486 = vpop.xlane.xlu0 %485
  %v487 = vsel %vm474, %v454, 0.0
  %488 = vadd.xlane.f32.xlu0 %v487
  %v489 = vpop.xlane.xlu0 %488
  %v490 = vsel %vm474, %v455, 0.0
  %491 = vadd.xlane.f32.xlu0 %v490
  %v492 = vpop.xlane.xlu0 %491
  %v493 = vsel %vm474, %v456, 0.0
  %494 = vadd.xlane.f32.xlu0 %v493
  %v495 = vpop.xlane.xlu0 %494
  %v496 = vsel %vm474, %v457, 0.0
  %497 = vadd.xlane.f32.xlu0 %v496
  %v498 = vpop.xlane.xlu0 %497
  %v499 = vsel %vm474, %v458, 0.0
  %500 = vadd.xlane.f32.xlu0 %v499
  %v501 = vpop.xlane.xlu0 %500
  %v502 = vsel %vm474, %v459, 0.0
  %503 = vadd.xlane.f32.xlu0 %v502
  %v504 = vpop.xlane.xlu0 %503
  %v505 = vsel %vm474, %v460, 0.0
  %506 = vadd.xlane.f32.xlu0 %v505
  %v507 = vpop.xlane.xlu0 %506
  %v508 = vsel %vm474, %v461, 0.0
  %509 = vadd.xlane.f32.xlu0 %v508
  %v510 = vpop.xlane.xlu0 %509
  %v511 = vsel %vm474, %v462, 0.0
  %512 = vadd.xlane.f32.xlu0 %v511
  %v513 = vpop.xlane.xlu0 %512
  %v514 = vsel %vm474, %v463, 0.0
  %515 = vadd.xlane.f32.xlu0 %v514
  %v516 = vpop.xlane.xlu0 %515
  %v517 = vsel %vm474, %v464, 0.0
  %518 = vadd.xlane.f32.xlu0 %v517
  %v519 = vpop.xlane.xlu0 %518
  %v520 = vsel %vm474, %v465, 0.0
  %521 = vadd.xlane.f32.xlu0 %v520
  %v522 = vpop.xlane.xlu0 %521
  %v523 = vsel %vm474, %v466, 0.0
  %524 = vadd.xlane.f32.xlu0 %v523
  %v525 = vpop.xlane.xlu0 %524
  %v526 = vsel %vm474, %v467, 0.0
  %527 = vadd.xlane.f32.xlu0 %v526
  %v528 = vpop.xlane.xlu0 %527
  %v529 = vsel %vm474, %v468, 0.0
  %530 = vadd.xlane.f32.xlu0 %v529
  %v531 = vpop.xlane.xlu0 %530
  %v532 = vsel %vm474, %v469, 0.0
  %533 = vadd.xlane.f32.xlu0 %v532
  %v534 = vpop.xlane.xlu0 %533
  %v535 = vsel %vm474, %v470, 0.0
  %536 = vadd.xlane.f32.xlu0 %v535
  %v537 = vpop.xlane.xlu0 %536
  %v538 = vsel %vm474, %v471, 0.0
  %539 = vadd.xlane.f32.xlu0 %v538
  %v540 = vpop.xlane.xlu0 %539
  %v541 = vsel %vm474, %v472, 0.0
  %542 = vadd.xlane.f32.xlu0 %v541
  %v543 = vpop.xlane.xlu0 %542
  %v544 = vsel %vm474, %v473, 0.0
  %545 = vadd.xlane.f32.xlu0 %v544
  %v546 = vpop.xlane.xlu0 %545
  %v547 = vld [vmem:[#allocation2] sm:$0x1]
  %v549 = vperm.slane %v547, 0
  %v551 = vadd.f32 %v477, %v549
  %v552 = vadd.f32 %v480, %v549
  %v553 = vadd.f32 %v483, %v549
  %v554 = vadd.f32 %v486, %v549
  %v555 = vadd.f32 %v489, %v549
  %v556 = vadd.f32 %v492, %v549
  %v557 = vadd.f32 %v495, %v549
  %v558 = vadd.f32 %v498, %v549
  %v559 = vadd.f32 %v501, %v549
  %v560 = vadd.f32 %v504, %v549
  %v561 = vadd.f32 %v507, %v549
  %v562 = vadd.f32 %v510, %v549
  %v563 = vadd.f32 %v513, %v549
  %v564 = vadd.f32 %v516, %v549
  %v565 = vadd.f32 %v519, %v549
  %v566 = vadd.f32 %v522, %v549
  %v567 = vadd.f32 %v525, %v549
  %v568 = vadd.f32 %v528, %v549
  %v569 = vadd.f32 %v531, %v549
  %v570 = vadd.f32 %v534, %v549
  %v571 = vadd.f32 %v537, %v549
  %v572 = vadd.f32 %v540, %v549
  %v573 = vadd.f32 %v543, %v549
  %v574 = vadd.f32 %v546, %v549
  %v575 = vxor.u32 %v551, 2147483648
  %v576 = vxor.u32 %v552, 2147483648
  %v577 = vxor.u32 %v553, 2147483648
  %v578 = vxor.u32 %v554, 2147483648
  %v579 = vxor.u32 %v555, 2147483648
  %v580 = vxor.u32 %v556, 2147483648
  %v581 = vxor.u32 %v557, 2147483648
  %v582 = vxor.u32 %v558, 2147483648
  %v583 = vxor.u32 %v559, 2147483648
  %v584 = vxor.u32 %v560, 2147483648
  %v585 = vxor.u32 %v561, 2147483648
  %v586 = vxor.u32 %v562, 2147483648
  %v587 = vxor.u32 %v563, 2147483648
  %v588 = vxor.u32 %v564, 2147483648
  %v589 = vxor.u32 %v565, 2147483648
  %v590 = vxor.u32 %v566, 2147483648
  %v591 = vxor.u32 %v567, 2147483648
  %v592 = vxor.u32 %v568, 2147483648
  %v593 = vxor.u32 %v569, 2147483648
  %v594 = vxor.u32 %v570, 2147483648
  %v595 = vxor.u32 %v571, 2147483648
  %v596 = vxor.u32 %v572, 2147483648
  %v597 = vxor.u32 %v573, 2147483648
  %v598 = vxor.u32 %v574, 2147483648
  %v599 = vmul.f32 %v575, 1.442695
  %v600 = vpow.pop %v599
  %v601 = vmul.f32 %v576, 1.442695
  %v602 = vpow.pop %v601
  %v603 = vmul.f32 %v577, 1.442695
  %v604 = vpow.pop %v603
  %v605 = vmul.f32 %v578, 1.442695
  %v606 = vpow.pop %v605
  %v607 = vmul.f32 %v579, 1.442695
  %v608 = vpow.pop %v607
  %v609 = vmul.f32 %v580, 1.442695
  %v610 = vpow.pop %v609
  %v611 = vmul.f32 %v581, 1.442695
  %v612 = vpow.pop %v611
  %v613 = vmul.f32 %v582, 1.442695
  %v614 = vpow.pop %v613
  %v615 = vmul.f32 %v583, 1.442695
  %v616 = vpow.pop %v615
  %v617 = vmul.f32 %v584, 1.442695
  %v618 = vpow.pop %v617
  %v619 = vmul.f32 %v585, 1.442695
  %v620 = vpow.pop %v619
  %v621 = vmul.f32 %v586, 1.442695
  %v622 = vpow.pop %v621
  %v623 = vmul.f32 %v587, 1.442695
  %v624 = vpow.pop %v623
  %v625 = vmul.f32 %v588, 1.442695
  %v626 = vpow.pop %v625
  %v627 = vmul.f32 %v589, 1.442695
  %v628 = vpow.pop %v627
  %v629 = vmul.f32 %v590, 1.442695
  %v630 = vpow.pop %v629
  %v631 = vmul.f32 %v591, 1.442695
  %v632 = vpow.pop %v631
  %v633 = vmul.f32 %v592, 1.442695
  %v634 = vpow.pop %v633
  %v635 = vmul.f32 %v593, 1.442695
  %v636 = vpow.pop %v635
  %v637 = vmul.f32 %v594, 1.442695
  %v638 = vpow.pop %v637
  %v639 = vmul.f32 %v595, 1.442695
  %v640 = vpow.pop %v639
  %v641 = vmul.f32 %v596, 1.442695
  %v642 = vpow.pop %v641
  %v643 = vmul.f32 %v597, 1.442695
  %v644 = vpow.pop %v643
  %v645 = vmul.f32 %v598, 1.442695
  %v646 = vpow.pop %v645
  %v647 = vadd.f32 %v600, 1.0
  %v648 = vadd.f32 %v602, 1.0
  %v649 = vadd.f32 %v604, 1.0
  %v650 = vadd.f32 %v606, 1.0
  %v651 = vadd.f32 %v608, 1.0
  %v652 = vadd.f32 %v610, 1.0
  %v653 = vadd.f32 %v612, 1.0
  %v654 = vadd.f32 %v614, 1.0
  %v655 = vadd.f32 %v616, 1.0
  %v656 = vadd.f32 %v618, 1.0
  %v657 = vadd.f32 %v620, 1.0
  %v658 = vadd.f32 %v622, 1.0
  %v659 = vadd.f32 %v624, 1.0
  %v660 = vadd.f32 %v626, 1.0
  %v661 = vadd.f32 %v628, 1.0
  %v662 = vadd.f32 %v630, 1.0
  %v663 = vadd.f32 %v632, 1.0
  %v664 = vadd.f32 %v634, 1.0
  %v665 = vadd.f32 %v636, 1.0
  %v666 = vadd.f32 %v638, 1.0
  %v667 = vadd.f32 %v640, 1.0
  %v668 = vadd.f32 %v642, 1.0
  %v669 = vadd.f32 %v644, 1.0
  %v670 = vadd.f32 %v646, 1.0
  %v671 = vrcp.pop %v647
  %v672 = vmul.f32 %v647, %v671
  %v673 = vsub.f32 1.0, %v672
  %v674 = vmul.f32 %v671, %v673
  %v675 = vadd.f32 %v671, %v674
  %vm676 = vweird.f32 %v647
  %vm677 = vweird.f32 %v671
  %vm678 = vmor %vm676, %vm677
  %v679 = vsel %vm678, %v671, %v675
  %v680 = vand.u32 2147483647, %v647
  %vm681 = vcmp.eq.f32.partialorder %v680, 8.507059e+37
  %v682 = vand.u32 %v647, 2147483648
  %v683 = vor.u32 1.1754944e-38, %v682
  %v684 = vsel %vm681, %v683, %v679
  %v685 = vmul.f32 1.0, %v684
  %v686 = vrcp.pop %v648
  %v687 = vmul.f32 %v648, %v686
  %v688 = vsub.f32 1.0, %v687
  %v689 = vmul.f32 %v686, %v688
  %v690 = vadd.f32 %v686, %v689
  %vm691 = vweird.f32 %v648
  %vm692 = vweird.f32 %v686
  %vm693 = vmor %vm691, %vm692
  %v694 = vsel %vm693, %v686, %v690
  %v695 = vand.u32 2147483647, %v648
  %vm696 = vcmp.eq.f32.partialorder %v695, 8.507059e+37
  %v697 = vand.u32 %v648, 2147483648
  %v698 = vor.u32 1.1754944e-38, %v697
  %v699 = vsel %vm696, %v698, %v694
  %v700 = vmul.f32 1.0, %v699
  %v701 = vrcp.pop %v649
  %v702 = vmul.f32 %v649, %v701
  %v703 = vsub.f32 1.0, %v702
  %v704 = vmul.f32 %v701, %v703
  %v705 = vadd.f32 %v701, %v704
  %vm706 = vweird.f32 %v649
  %vm707 = vweird.f32 %v701
  %vm708 = vmor %vm706, %vm707
  %v709 = vsel %vm708, %v701, %v705
  %v710 = vand.u32 2147483647, %v649
  %vm711 = vcmp.eq.f32.partialorder %v710, 8.507059e+37
  %v712 = vand.u32 %v649, 2147483648
  %v713 = vor.u32 1.1754944e-38, %v712
  %v714 = vsel %vm711, %v713, %v709
  %v715 = vmul.f32 1.0, %v714
  %v716 = vrcp.pop %v650
  %v717 = vmul.f32 %v650, %v716
  %v718 = vsub.f32 1.0, %v717
  %v719 = vmul.f32 %v716, %v718
  %v720 = vadd.f32 %v716, %v719
  %vm721 = vweird.f32 %v650
  %vm722 = vweird.f32 %v716
  %vm723 = vmor %vm721, %vm722
  %v724 = vsel %vm723, %v716, %v720
  %v725 = vand.u32 2147483647, %v650
  %vm726 = vcmp.eq.f32.partialorder %v725, 8.507059e+37
  %v727 = vand.u32 %v650, 2147483648
  %v728 = vor.u32 1.1754944e-38, %v727
  %v729 = vsel %vm726, %v728, %v724
  %v730 = vmul.f32 1.0, %v729
  %v731 = vrcp.pop %v651
  %v732 = vmul.f32 %v651, %v731
  %v733 = vsub.f32 1.0, %v732
  %v734 = vmul.f32 %v731, %v733
  %v735 = vadd.f32 %v731, %v734
  %vm736 = vweird.f32 %v651
  %vm737 = vweird.f32 %v731
  %vm738 = vmor %vm736, %vm737
  %v739 = vsel %vm738, %v731, %v735
  %v740 = vand.u32 2147483647, %v651
  %vm741 = vcmp.eq.f32.partialorder %v740, 8.507059e+37
  %v742 = vand.u32 %v651, 2147483648
  %v743 = vor.u32 1.1754944e-38, %v742
  %v744 = vsel %vm741, %v743, %v739
  %v745 = vmul.f32 1.0, %v744
  %v746 = vrcp.pop %v652
  %v747 = vmul.f32 %v652, %v746
  %v748 = vsub.f32 1.0, %v747
  %v749 = vmul.f32 %v746, %v748
  %v750 = vadd.f32 %v746, %v749
  %vm751 = vweird.f32 %v652
  %vm752 = vweird.f32 %v746
  %vm753 = vmor %vm751, %vm752
  %v754 = vsel %vm753, %v746, %v750
  %v755 = vand.u32 2147483647, %v652
  %vm756 = vcmp.eq.f32.partialorder %v755, 8.507059e+37
  %v757 = vand.u32 %v652, 2147483648
  %v758 = vor.u32 1.1754944e-38, %v757
  %v759 = vsel %vm756, %v758, %v754
  %v760 = vmul.f32 1.0, %v759
  %v761 = vrcp.pop %v653
  %v762 = vmul.f32 %v653, %v761
  %v763 = vsub.f32 1.0, %v762
  %v764 = vmul.f32 %v761, %v763
  %v765 = vadd.f32 %v761, %v764
  %vm766 = vweird.f32 %v653
  %vm767 = vweird.f32 %v761
  %vm768 = vmor %vm766, %vm767
  %v769 = vsel %vm768, %v761, %v765
  %v770 = vand.u32 2147483647, %v653
  %vm771 = vcmp.eq.f32.partialorder %v770, 8.507059e+37
  %v772 = vand.u32 %v653, 2147483648
  %v773 = vor.u32 1.1754944e-38, %v772
  %v774 = vsel %vm771, %v773, %v769
  %v775 = vmul.f32 1.0, %v774
  %v776 = vrcp.pop %v654
  %v777 = vmul.f32 %v654, %v776
  %v778 = vsub.f32 1.0, %v777
  %v779 = vmul.f32 %v776, %v778
  %v780 = vadd.f32 %v776, %v779
  %vm781 = vweird.f32 %v654
  %vm782 = vweird.f32 %v776
  %vm783 = vmor %vm781, %vm782
  %v784 = vsel %vm783, %v776, %v780
  %v785 = vand.u32 2147483647, %v654
  %vm786 = vcmp.eq.f32.partialorder %v785, 8.507059e+37
  %v787 = vand.u32 %v654, 2147483648
  %v788 = vor.u32 1.1754944e-38, %v787
  %v789 = vsel %vm786, %v788, %v784
  %v790 = vmul.f32 1.0, %v789
  %v791 = vrcp.pop %v655
  %v792 = vmul.f32 %v655, %v791
  %v793 = vsub.f32 1.0, %v792
  %v794 = vmul.f32 %v791, %v793
  %v795 = vadd.f32 %v791, %v794
  %vm796 = vweird.f32 %v655
  %vm797 = vweird.f32 %v791
  %vm798 = vmor %vm796, %vm797
  %v799 = vsel %vm798, %v791, %v795
  %v800 = vand.u32 2147483647, %v655
  %vm801 = vcmp.eq.f32.partialorder %v800, 8.507059e+37
  %v802 = vand.u32 %v655, 2147483648
  %v803 = vor.u32 1.1754944e-38, %v802
  %v804 = vsel %vm801, %v803, %v799
  %v805 = vmul.f32 1.0, %v804
  %v806 = vrcp.pop %v656
  %v807 = vmul.f32 %v656, %v806
  %v808 = vsub.f32 1.0, %v807
  %v809 = vmul.f32 %v806, %v808
  %v810 = vadd.f32 %v806, %v809
  %vm811 = vweird.f32 %v656
  %vm812 = vweird.f32 %v806
  %vm813 = vmor %vm811, %vm812
  %v814 = vsel %vm813, %v806, %v810
  %v815 = vand.u32 2147483647, %v656
  %vm816 = vcmp.eq.f32.partialorder %v815, 8.507059e+37
  %v817 = vand.u32 %v656, 2147483648
  %v818 = vor.u32 1.1754944e-38, %v817
  %v819 = vsel %vm816, %v818, %v814
  %v820 = vmul.f32 1.0, %v819
  %v821 = vrcp.pop %v657
  %v822 = vmul.f32 %v657, %v821
  %v823 = vsub.f32 1.0, %v822
  %v824 = vmul.f32 %v821, %v823
  %v825 = vadd.f32 %v821, %v824
  %vm826 = vweird.f32 %v657
  %vm827 = vweird.f32 %v821
  %vm828 = vmor %vm826, %vm827
  %v829 = vsel %vm828, %v821, %v825
  %v830 = vand.u32 2147483647, %v657
  %vm831 = vcmp.eq.f32.partialorder %v830, 8.507059e+37
  %v832 = vand.u32 %v657, 2147483648
  %v833 = vor.u32 1.1754944e-38, %v832
  %v834 = vsel %vm831, %v833, %v829
  %v835 = vmul.f32 1.0, %v834
  %v836 = vrcp.pop %v658
  %v837 = vmul.f32 %v658, %v836
  %v838 = vsub.f32 1.0, %v837
  %v839 = vmul.f32 %v836, %v838
  %v840 = vadd.f32 %v836, %v839
  %vm841 = vweird.f32 %v658
  %vm842 = vweird.f32 %v836
  %vm843 = vmor %vm841, %vm842
  %v844 = vsel %vm843, %v836, %v840
  %v845 = vand.u32 2147483647, %v658
  %vm846 = vcmp.eq.f32.partialorder %v845, 8.507059e+37
  %v847 = vand.u32 %v658, 2147483648
  %v848 = vor.u32 1.1754944e-38, %v847
  %v849 = vsel %vm846, %v848, %v844
  %v850 = vmul.f32 1.0, %v849
  %v851 = vrcp.pop %v659
  %v852 = vmul.f32 %v659, %v851
  %v853 = vsub.f32 1.0, %v852
  %v854 = vmul.f32 %v851, %v853
  %v855 = vadd.f32 %v851, %v854
  %vm856 = vweird.f32 %v659
  %vm857 = vweird.f32 %v851
  %vm858 = vmor %vm856, %vm857
  %v859 = vsel %vm858, %v851, %v855
  %v860 = vand.u32 2147483647, %v659
  %vm861 = vcmp.eq.f32.partialorder %v860, 8.507059e+37
  %v862 = vand.u32 %v659, 2147483648
  %v863 = vor.u32 1.1754944e-38, %v862
  %v864 = vsel %vm861, %v863, %v859
  %v865 = vmul.f32 1.0, %v864
  %v866 = vrcp.pop %v660
  %v867 = vmul.f32 %v660, %v866
  %v868 = vsub.f32 1.0, %v867
  %v869 = vmul.f32 %v866, %v868
  %v870 = vadd.f32 %v866, %v869
  %vm871 = vweird.f32 %v660
  %vm872 = vweird.f32 %v866
  %vm873 = vmor %vm871, %vm872
  %v874 = vsel %vm873, %v866, %v870
  %v875 = vand.u32 2147483647, %v660
  %vm876 = vcmp.eq.f32.partialorder %v875, 8.507059e+37
  %v877 = vand.u32 %v660, 2147483648
  %v878 = vor.u32 1.1754944e-38, %v877
  %v879 = vsel %vm876, %v878, %v874
  %v880 = vmul.f32 1.0, %v879
  %v881 = vrcp.pop %v661
  %v882 = vmul.f32 %v661, %v881
  %v883 = vsub.f32 1.0, %v882
  %v884 = vmul.f32 %v881, %v883
  %v885 = vadd.f32 %v881, %v884
  %vm886 = vweird.f32 %v661
  %vm887 = vweird.f32 %v881
  %vm888 = vmor %vm886, %vm887
  %v889 = vsel %vm888, %v881, %v885
  %v890 = vand.u32 2147483647, %v661
  %vm891 = vcmp.eq.f32.partialorder %v890, 8.507059e+37
  %v892 = vand.u32 %v661, 2147483648
  %v893 = vor.u32 1.1754944e-38, %v892
  %v894 = vsel %vm891, %v893, %v889
  %v895 = vmul.f32 1.0, %v894
  %v896 = vrcp.pop %v662
  %v897 = vmul.f32 %v662, %v896
  %v898 = vsub.f32 1.0, %v897
  %v899 = vmul.f32 %v896, %v898
  %v900 = vadd.f32 %v896, %v899
  %vm901 = vweird.f32 %v662
  %vm902 = vweird.f32 %v896
  %vm903 = vmor %vm901, %vm902
  %v904 = vsel %vm903, %v896, %v900
  %v905 = vand.u32 2147483647, %v662
  %vm906 = vcmp.eq.f32.partialorder %v905, 8.507059e+37
  %v907 = vand.u32 %v662, 2147483648
  %v908 = vor.u32 1.1754944e-38, %v907
  %v909 = vsel %vm906, %v908, %v904
  %v910 = vmul.f32 1.0, %v909
  %v911 = vrcp.pop %v663
  %v912 = vmul.f32 %v663, %v911
  %v913 = vsub.f32 1.0, %v912
  %v914 = vmul.f32 %v911, %v913
  %v915 = vadd.f32 %v911, %v914
  %vm916 = vweird.f32 %v663
  %vm917 = vweird.f32 %v911
  %vm918 = vmor %vm916, %vm917
  %v919 = vsel %vm918, %v911, %v915
  %v920 = vand.u32 2147483647, %v663
  %vm921 = vcmp.eq.f32.partialorder %v920, 8.507059e+37
  %v922 = vand.u32 %v663, 2147483648
  %v923 = vor.u32 1.1754944e-38, %v922
  %v924 = vsel %vm921, %v923, %v919
  %v925 = vmul.f32 1.0, %v924
  %v926 = vrcp.pop %v664
  %v927 = vmul.f32 %v664, %v926
  %v928 = vsub.f32 1.0, %v927
  %v929 = vmul.f32 %v926, %v928
  %v930 = vadd.f32 %v926, %v929
  %vm931 = vweird.f32 %v664
  %vm932 = vweird.f32 %v926
  %vm933 = vmor %vm931, %vm932
  %v934 = vsel %vm933, %v926, %v930
  %v935 = vand.u32 2147483647, %v664
  %vm936 = vcmp.eq.f32.partialorder %v935, 8.507059e+37
  %v937 = vand.u32 %v664, 2147483648
  %v938 = vor.u32 1.1754944e-38, %v937
  %v939 = vsel %vm936, %v938, %v934
  %v940 = vmul.f32 1.0, %v939
  %v941 = vrcp.pop %v665
  %v942 = vmul.f32 %v665, %v941
  %v943 = vsub.f32 1.0, %v942
  %v944 = vmul.f32 %v941, %v943
  %v945 = vadd.f32 %v941, %v944
  %vm946 = vweird.f32 %v665
  %vm947 = vweird.f32 %v941
  %vm948 = vmor %vm946, %vm947
  %v949 = vsel %vm948, %v941, %v945
  %v950 = vand.u32 2147483647, %v665
  %vm951 = vcmp.eq.f32.partialorder %v950, 8.507059e+37
  %v952 = vand.u32 %v665, 2147483648
  %v953 = vor.u32 1.1754944e-38, %v952
  %v954 = vsel %vm951, %v953, %v949
  %v955 = vmul.f32 1.0, %v954
  %v956 = vrcp.pop %v666
  %v957 = vmul.f32 %v666, %v956
  %v958 = vsub.f32 1.0, %v957
  %v959 = vmul.f32 %v956, %v958
  %v960 = vadd.f32 %v956, %v959
  %vm961 = vweird.f32 %v666
  %vm962 = vweird.f32 %v956
  %vm963 = vmor %vm961, %vm962
  %v964 = vsel %vm963, %v956, %v960
  %v965 = vand.u32 2147483647, %v666
  %vm966 = vcmp.eq.f32.partialorder %v965, 8.507059e+37
  %v967 = vand.u32 %v666, 2147483648
  %v968 = vor.u32 1.1754944e-38, %v967
  %v969 = vsel %vm966, %v968, %v964
  %v970 = vmul.f32 1.0, %v969
  %v971 = vrcp.pop %v667
  %v972 = vmul.f32 %v667, %v971
  %v973 = vsub.f32 1.0, %v972
  %v974 = vmul.f32 %v971, %v973
  %v975 = vadd.f32 %v971, %v974
  %vm976 = vweird.f32 %v667
  %vm977 = vweird.f32 %v971
  %vm978 = vmor %vm976, %vm977
  %v979 = vsel %vm978, %v971, %v975
  %v980 = vand.u32 2147483647, %v667
  %vm981 = vcmp.eq.f32.partialorder %v980, 8.507059e+37
  %v982 = vand.u32 %v667, 2147483648
  %v983 = vor.u32 1.1754944e-38, %v982
  %v984 = vsel %vm981, %v983, %v979
  %v985 = vmul.f32 1.0, %v984
  %v986 = vrcp.pop %v668
  %v987 = vmul.f32 %v668, %v986
  %v988 = vsub.f32 1.0, %v987
  %v989 = vmul.f32 %v986, %v988
  %v990 = vadd.f32 %v986, %v989
  %vm991 = vweird.f32 %v668
  %vm992 = vweird.f32 %v986
  %vm993 = vmor %vm991, %vm992
  %v994 = vsel %vm993, %v986, %v990
  %v995 = vand.u32 2147483647, %v668
  %vm996 = vcmp.eq.f32.partialorder %v995, 8.507059e+37
  %v997 = vand.u32 %v668, 2147483648
  %v998 = vor.u32 1.1754944e-38, %v997
  %v999 = vsel %vm996, %v998, %v994
  %v1000 = vmul.f32 1.0, %v999
  %v1001 = vrcp.pop %v669
  %v1002 = vmul.f32 %v669, %v1001
  %v1003 = vsub.f32 1.0, %v1002
  %v1004 = vmul.f32 %v1001, %v1003
  %v1005 = vadd.f32 %v1001, %v1004
  %vm1006 = vweird.f32 %v669
  %vm1007 = vweird.f32 %v1001
  %vm1008 = vmor %vm1006, %vm1007
  %v1009 = vsel %vm1008, %v1001, %v1005
  %v1010 = vand.u32 2147483647, %v669
  %vm1011 = vcmp.eq.f32.partialorder %v1010, 8.507059e+37
  %v1012 = vand.u32 %v669, 2147483648
  %v1013 = vor.u32 1.1754944e-38, %v1012
  %v1014 = vsel %vm1011, %v1013, %v1009
  %v1015 = vmul.f32 1.0, %v1014
  %v1016 = vrcp.pop %v670
  %v1017 = vmul.f32 %v670, %v1016
  %v1018 = vsub.f32 1.0, %v1017
  %v1019 = vmul.f32 %v1016, %v1018
  %v1020 = vadd.f32 %v1016, %v1019
  %vm1021 = vweird.f32 %v670
  %vm1022 = vweird.f32 %v1016
  %vm1023 = vmor %vm1021, %vm1022
  %v1024 = vsel %vm1023, %v1016, %v1020
  %v1025 = vand.u32 2147483647, %v670
  %vm1026 = vcmp.eq.f32.partialorder %v1025, 8.507059e+37
  %v1027 = vand.u32 %v670, 2147483648
  %v1028 = vor.u32 1.1754944e-38, %v1027
  %v1029 = vsel %vm1026, %v1028, %v1024
  %v1030 = vmul.f32 1.0, %v1029
  %1032 = vset.pattern.permute.xlu0 0
  %1033 = vperm.xlu0 %1032, %v685
  %v1034 = vpop.permute.xlu0 %1033
  %1037 = vset.pattern.permute.xlu0 0
  %1038 = vperm.xlu0 %1037, %v700
  %v1039 = vpop.permute.xlu0 %1038
  %1042 = vset.pattern.permute.xlu0 0
  %1043 = vperm.xlu0 %1042, %v715
  %v1044 = vpop.permute.xlu0 %1043
  %1047 = vset.pattern.permute.xlu0 0
  %1048 = vperm.xlu0 %1047, %v730
  %v1049 = vpop.permute.xlu0 %1048
  %1052 = vset.pattern.permute.xlu0 0
  %1053 = vperm.xlu0 %1052, %v745
  %v1054 = vpop.permute.xlu0 %1053
  %1057 = vset.pattern.permute.xlu0 0
  %1058 = vperm.xlu0 %1057, %v760
  %v1059 = vpop.permute.xlu0 %1058
  %1062 = vset.pattern.permute.xlu0 0
  %1063 = vperm.xlu0 %1062, %v775
  %v1064 = vpop.permute.xlu0 %1063
  %1067 = vset.pattern.permute.xlu0 0
  %1068 = vperm.xlu0 %1067, %v790
  %v1069 = vpop.permute.xlu0 %1068
  %1072 = vset.pattern.permute.xlu0 0
  %1073 = vperm.xlu0 %1072, %v805
  %v1074 = vpop.permute.xlu0 %1073
  %1077 = vset.pattern.permute.xlu0 0
  %1078 = vperm.xlu0 %1077, %v820
  %v1079 = vpop.permute.xlu0 %1078
  %1082 = vset.pattern.permute.xlu0 0
  %1083 = vperm.xlu0 %1082, %v835
  %v1084 = vpop.permute.xlu0 %1083
  %1087 = vset.pattern.permute.xlu0 0
  %1088 = vperm.xlu0 %1087, %v850
  %v1089 = vpop.permute.xlu0 %1088
  %1092 = vset.pattern.permute.xlu0 0
  %1093 = vperm.xlu0 %1092, %v865
  %v1094 = vpop.permute.xlu0 %1093
  %1097 = vset.pattern.permute.xlu0 0
  %1098 = vperm.xlu0 %1097, %v880
  %v1099 = vpop.permute.xlu0 %1098
  %1102 = vset.pattern.permute.xlu0 0
  %1103 = vperm.xlu0 %1102, %v895
  %v1104 = vpop.permute.xlu0 %1103
  %1107 = vset.pattern.permute.xlu0 0
  %1108 = vperm.xlu0 %1107, %v910
  %v1109 = vpop.permute.xlu0 %1108
  %1112 = vset.pattern.permute.xlu0 0
  %1113 = vperm.xlu0 %1112, %v925
  %v1114 = vpop.permute.xlu0 %1113
  %1117 = vset.pattern.permute.xlu0 0
  %1118 = vperm.xlu0 %1117, %v940
  %v1119 = vpop.permute.xlu0 %1118
  %1122 = vset.pattern.permute.xlu0 0
  %1123 = vperm.xlu0 %1122, %v955
  %v1124 = vpop.permute.xlu0 %1123
  %1127 = vset.pattern.permute.xlu0 0
  %1128 = vperm.xlu0 %1127, %v970
  %v1129 = vpop.permute.xlu0 %1128
  %1132 = vset.pattern.permute.xlu0 0
  %1133 = vperm.xlu0 %1132, %v985
  %v1134 = vpop.permute.xlu0 %1133
  %1137 = vset.pattern.permute.xlu0 0
  %1138 = vperm.xlu0 %1137, %v1000
  %v1139 = vpop.permute.xlu0 %1138
  %1142 = vset.pattern.permute.xlu0 0
  %1143 = vperm.xlu0 %1142, %v1015
  %v1144 = vpop.permute.xlu0 %1143
  %1147 = vset.pattern.permute.xlu0 0
  %1148 = vperm.xlu0 %1147, %v1030
  %v1149 = vpop.permute.xlu0 %1148
  %v1151 = vmul.f32 %v1034, %v158
  %v1152 = vmul.f32 %v1039, %v161
  %v1153 = vmul.f32 %v1044, %v164
  %v1154 = vmul.f32 %v1049, %v167
  %v1155 = vmul.f32 %v1054, %v170
  %v1156 = vmul.f32 %v1059, %v173
  %v1157 = vmul.f32 %v1064, %v176
  %v1158 = vmul.f32 %v1069, %v179
  %v1159 = vmul.f32 %v1074, %v182
  %v1160 = vmul.f32 %v1079, %v185
  %v1161 = vmul.f32 %v1084, %v188
  %v1162 = vmul.f32 %v1089, %v191
  %v1163 = vmul.f32 %v1094, %v194
  %v1164 = vmul.f32 %v1099, %v197
  %v1165 = vmul.f32 %v1104, %v200
  %v1166 = vmul.f32 %v1109, %v203
  %v1167 = vmul.f32 %v1114, %v206
  %v1168 = vmul.f32 %v1119, %v209
  %v1169 = vmul.f32 %v1124, %v212
  %v1170 = vmul.f32 %v1129, %v215
  %v1171 = vmul.f32 %v1134, %v218
  %v1172 = vmul.f32 %v1139, %v221
  %v1173 = vmul.f32 %v1144, %v224
  %v1174 = vmul.f32 %v1149, %v227
  %vm1175 = vcmask 130048
  %1176 = vst.msk [vmem:[%s8] sm:$0xff] %vm1175, %v158
  %1177 = vst.msk [vmem:[%s8 + $0x8] sm:$0xff] %vm1175, %v161
  %1178 = vst.msk [vmem:[%s8 + $0x10] sm:$0xff] %vm1175, %v164
  %1179 = vst.msk [vmem:[%s8 + $0x18] sm:$0xff] %vm1175, %v167
  %1180 = vst.msk [vmem:[%s8 + $0x20] sm:$0xff] %vm1175, %v170
  %1181 = vst.msk [vmem:[%s8 + $0x28] sm:$0xff] %vm1175, %v173
  %1182 = vst.msk [vmem:[%s8 + $0x30] sm:$0xff] %vm1175, %v176
  %1183 = vst.msk [vmem:[%s8 + $0x38] sm:$0xff] %vm1175, %v179
  %1184 = vst.msk [vmem:[%s8 + $0x40] sm:$0xff] %vm1175, %v182
  %1185 = vst.msk [vmem:[%s8 + $0x48] sm:$0xff] %vm1175, %v185
  %1186 = vst.msk [vmem:[%s8 + $0x50] sm:$0xff] %vm1175, %v188
  %1187 = vst.msk [vmem:[%s8 + $0x58] sm:$0xff] %vm1175, %v191
  %1188 = vst.msk [vmem:[%s8 + $0x60] sm:$0xff] %vm1175, %v194
  %1189 = vst.msk [vmem:[%s8 + $0x68] sm:$0xff] %vm1175, %v197
  %1190 = vst.msk [vmem:[%s8 + $0x70] sm:$0xff] %vm1175, %v200
  %1191 = vst.msk [vmem:[%s8 + $0x78] sm:$0xff] %vm1175, %v203
  %1192 = vst.msk [vmem:[%s8 + $0x80] sm:$0xff] %vm1175, %v206
  %1193 = vst.msk [vmem:[%s8 + $0x88] sm:$0xff] %vm1175, %v209
  %1194 = vst.msk [vmem:[%s8 + $0x90] sm:$0xff] %vm1175, %v212
  %1195 = vst.msk [vmem:[%s8 + $0x98] sm:$0xff] %vm1175, %v215
  %1196 = vst.msk [vmem:[%s8 + $0xa0] sm:$0xff] %vm1175, %v218
  %1197 = vst.msk [vmem:[%s8 + $0xa8] sm:$0xff] %vm1175, %v221
  %1198 = vst.msk [vmem:[%s8 + $0xb0] sm:$0xff] %vm1175, %v224
  %1199 = vst.msk [vmem:[%s8 + $0xb8] sm:$0xff] %vm1175, %v227
  %1200 = vst.msk [vmem:[%s9] sm:$0xff] %vm1175, %v1151
  %1201 = vst.msk [vmem:[%s9 + $0x8] sm:$0xff] %vm1175, %v1152
  %1202 = vst.msk [vmem:[%s9 + $0x10] sm:$0xff] %vm1175, %v1153
  %1203 = vst.msk [vmem:[%s9 + $0x18] sm:$0xff] %vm1175, %v1154
  %1204 = vst.msk [vmem:[%s9 + $0x20] sm:$0xff] %vm1175, %v1155
  %1205 = vst.msk [vmem:[%s9 + $0x28] sm:$0xff] %vm1175, %v1156
  %1206 = vst.msk [vmem:[%s9 + $0x30] sm:$0xff] %vm1175, %v1157
  %1207 = vst.msk [vmem:[%s9 + $0x38] sm:$0xff] %vm1175, %v1158
  %1208 = vst.msk [vmem:[%s9 + $0x40] sm:$0xff] %vm1175, %v1159
  %1209 = vst.msk [vmem:[%s9 + $0x48] sm:$0xff] %vm1175, %v1160
  %1210 = vst.msk [vmem:[%s9 + $0x50] sm:$0xff] %vm1175, %v1161
  %1211 = vst.msk [vmem:[%s9 + $0x58] sm:$0xff] %vm1175, %v1162
  %1212 = vst.msk [vmem:[%s9 + $0x60] sm:$0xff] %vm1175, %v1163
  %1213 = vst.msk [vmem:[%s9 + $0x68] sm:$0xff] %vm1175, %v1164
  %1214 = vst.msk [vmem:[%s9 + $0x70] sm:$0xff] %vm1175, %v1165
  %1215 = vst.msk [vmem:[%s9 + $0x78] sm:$0xff] %vm1175, %v1166
  %1216 = vst.msk [vmem:[%s9 + $0x80] sm:$0xff] %vm1175, %v1167
  %1217 = vst.msk [vmem:[%s9 + $0x88] sm:$0xff] %vm1175, %v1168
  %1218 = vst.msk [vmem:[%s9 + $0x90] sm:$0xff] %vm1175, %v1169
  %1219 = vst.msk [vmem:[%s9 + $0x98] sm:$0xff] %vm1175, %v1170
  %1220 = vst.msk [vmem:[%s9 + $0xa0] sm:$0xff] %vm1175, %v1171
  %1221 = vst.msk [vmem:[%s9 + $0xa8] sm:$0xff] %vm1175, %v1172
  %1222 = vst.msk [vmem:[%s9 + $0xb0] sm:$0xff] %vm1175, %v1173
  %1223 = vst.msk [vmem:[%s9 + $0xb8] sm:$0xff] %vm1175, %v1174
  %v1224 = vsub.f32 %v158, %v1151
  %v1225 = vsub.f32 %v161, %v1152
  %v1226 = vsub.f32 %v164, %v1153
  %v1227 = vsub.f32 %v167, %v1154
  %v1228 = vsub.f32 %v170, %v1155
  %v1229 = vsub.f32 %v173, %v1156
  %v1230 = vsub.f32 %v176, %v1157
  %v1231 = vsub.f32 %v179, %v1158
  %v1232 = vsub.f32 %v182, %v1159
  %v1233 = vsub.f32 %v185, %v1160
  %v1234 = vsub.f32 %v188, %v1161
  %v1235 = vsub.f32 %v191, %v1162
  %v1236 = vsub.f32 %v194, %v1163
  %v1237 = vsub.f32 %v197, %v1164
  %v1238 = vsub.f32 %v200, %v1165
  %v1239 = vsub.f32 %v203, %v1166
  %v1240 = vsub.f32 %v206, %v1167
  %v1241 = vsub.f32 %v209, %v1168
  %v1242 = vsub.f32 %v212, %v1169
  %v1243 = vsub.f32 %v215, %v1170
  %v1244 = vsub.f32 %v218, %v1171
  %v1245 = vsub.f32 %v221, %v1172
  %v1246 = vsub.f32 %v224, %v1173
  %v1247 = vsub.f32 %v227, %v1174
  %1248 = vst.msk [vmem:[%s10] sm:$0xff] %vm1175, %v1224
  %1249 = vst.msk [vmem:[%s10 + $0x8] sm:$0xff] %vm1175, %v1225
  %1250 = vst.msk [vmem:[%s10 + $0x10] sm:$0xff] %vm1175, %v1226
  %1251 = vst.msk [vmem:[%s10 + $0x18] sm:$0xff] %vm1175, %v1227
  %1252 = vst.msk [vmem:[%s10 + $0x20] sm:$0xff] %vm1175, %v1228
  %1253 = vst.msk [vmem:[%s10 + $0x28] sm:$0xff] %vm1175, %v1229
  %1254 = vst.msk [vmem:[%s10 + $0x30] sm:$0xff] %vm1175, %v1230
  %1255 = vst.msk [vmem:[%s10 + $0x38] sm:$0xff] %vm1175, %v1231
  %1256 = vst.msk [vmem:[%s10 + $0x40] sm:$0xff] %vm1175, %v1232
  %1257 = vst.msk [vmem:[%s10 + $0x48] sm:$0xff] %vm1175, %v1233
  %1258 = vst.msk [vmem:[%s10 + $0x50] sm:$0xff] %vm1175, %v1234
  %1259 = vst.msk [vmem:[%s10 + $0x58] sm:$0xff] %vm1175, %v1235
  %1260 = vst.msk [vmem:[%s10 + $0x60] sm:$0xff] %vm1175, %v1236
  %1261 = vst.msk [vmem:[%s10 + $0x68] sm:$0xff] %vm1175, %v1237
  %1262 = vst.msk [vmem:[%s10 + $0x70] sm:$0xff] %vm1175, %v1238
  %1263 = vst.msk [vmem:[%s10 + $0x78] sm:$0xff] %vm1175, %v1239
  %1264 = vst.msk [vmem:[%s10 + $0x80] sm:$0xff] %vm1175, %v1240
  %1265 = vst.msk [vmem:[%s10 + $0x88] sm:$0xff] %vm1175, %v1241
  %1266 = vst.msk [vmem:[%s10 + $0x90] sm:$0xff] %vm1175, %v1242
  %1267 = vst.msk [vmem:[%s10 + $0x98] sm:$0xff] %vm1175, %v1243
  %1268 = vst.msk [vmem:[%s10 + $0xa0] sm:$0xff] %vm1175, %v1244
  %1269 = vst.msk [vmem:[%s10 + $0xa8] sm:$0xff] %vm1175, %v1245
  %1270 = vst.msk [vmem:[%s10 + $0xb0] sm:$0xff] %vm1175, %v1246
  %1271 = vst.msk [vmem:[%s10 + $0xb8] sm:$0xff] %vm1175, %v1247
  // Predicated region
  $region34: #{sfadnet_forward.9} parent=0 // pred_check
    _
  $region35: #{sfadnet_forward.9} parent=0 // pred_check_branch
    %1273 = sbr.rel (0) target = $region37
  $region36: #{sfadnet_forward.9} parent=0 // pred_region
    _
  $region37: #{sfadnet_forward.9} parent=0 // pred_fallthru
    _
  // Predicated region
  $region38: #{sfadnet_forward.9} parent=0 // pred_check
    _
  $region39: #{sfadnet_forward.9} parent=0 // pred_check_branch
    %1275 = sbr.rel (0) target = $region41
  $region40: #{sfadnet_forward.9} parent=0 // pred_region
    _
  $region41: #{sfadnet_forward.9} parent=0 // pred_fallthru
    _
  // Predicated region
  $region42: #{sfadnet_forward.9} parent=0 // pred_check
    _
  $region43: #{sfadnet_forward.9} parent=0 // pred_check_branch
    %1277 = sbr.rel (0) target = $region45
  $region44: #{sfadnet_forward.9} parent=0 // pred_region
    _
  $region45: #{sfadnet_forward.9} parent=0 // pred_fallthru
    _
  // Predicated region
  $region46: #{sfadnet_forward.9} parent=0 // pred_check
    _
  $region47: #{sfadnet_forward.9} parent=0 // pred_check_branch
    %1279 = sbr.rel (0) target = $region49
  $region48: #{sfadnet_forward.9} parent=0 // pred_region
    _
  $region49: #{sfadnet_forward.9} parent=0 // pred_fallthru
    _
  // Predicated region
  $region50: #{sfadnet_forward.9} parent=0 // pred_check
    _
  $region51: #{sfadnet_forward.9} parent=0 // pred_check_branch
    %1281 = sbr.rel (0) target = $region53
  $region52: #{sfadnet_forward.9} parent=0 // pred_region
    _
  $region53: #{sfadnet_forward.9} parent=0 // pred_fallthru
    _
  // Predicated region
  $region54: #{sfadnet_forward.9} parent=0 // pred_check
    _
  $region55: #{sfadnet_forward.9} parent=0 // pred_check_branch
    %1283 = sbr.rel (0) target = $region57
  $region56: #{sfadnet_forward.9} parent=0 // pred_region
    _
  $region57: #{sfadnet_forward.9} parent=0 // pred_fallthru
    _

// kernel: sfadnet_forward.10
$region0: #{sfadnet_forward.10}
  #allocation0 [shape = 'u32[]', space=smem, size = 0x4, offset = 0x4, fixed_abs, tag = 'smem constant byte address 0x4 - core index']
  #allocation1 [shape = 'u32[72,128]{1,0:T(1,128)}', space=vmem, size = 0x9000, scoped, tag = 'internal scratch']
  %s0 = inlined_call_operand.vmem [shape: f32[2,8,24], index: 0, kind: input, shape index: {}]
  %s1 = inlined_call_operand.vmem [shape: f32[2,8,24], index: 1, kind: input, shape index: {}]
  %s2 = inlined_call_operand.vmem [shape: f32[24,8], index: 2, kind: input, shape index: {}]
  %s3 = inlined_call_operand.vmem [shape: f32[1,8], index: 3, kind: input, shape index: {}]
  %s4 = inlined_call_operand.vmem [shape: f32[24,8], index: 4, kind: input, shape index: {}]
  %s5 = inlined_call_operand.vmem [shape: f32[1,8], index: 5, kind: input, shape index: {}]
  %s6 = inlined_call_operand.vmem [shape: f32[2,8,8], index: 6, kind: output, shape index: {0}]
  %s7 = inlined_call_operand.vmem [shape: f32[2,8,8], index: 7, kind: output, shape index: {1}]
  %8 = xla_tuple %s6, %s7
  %s9 = sld [smem:[#allocation0]]
  $region65: #{sfadnet_forward.10} parent=0
    _
  %s11 = ssub.s32 1, %s9
  %s12 = scalar_select 0, %s11, %s9
  loop: start=0, step=1, limit=4
  $region2: #{sfadnet_forward.10} parent=0 // loop_pre_header
    _
  $region3: #{sfadnet_forward.10} parent=0 // loop_header
    %s14 = sphi 0, %s18
    %p15 = scmp.ge.s32.totalorder %s14, 4
    %s24 = sphi 0, %s26
    %s27 = sphi 0, %s24
    %s28 = sphi 0, %s27
    %s44 = sphi 0, %s28
    %s50 = sphi 0, %s52
    %s53 = sphi 0, %s50
    %s54 = sphi 0, %s53
    %s70 = sphi 0, %s54
    %s74 = sphi 0, %s74
    %s76 = sphi 0, %s74
    %s77 = sphi 0, %s76
    %s91 = sphi 0, %s77
    %s95 = sphi 0, %s95
    %s97 = sphi 0, %s95
    %s98 = sphi 0, %s97
    %s112 = sphi 0, %s98
    %s116 = sphi 0, %s116
    %s118 = sphi 0, %s116
    %s119 = sphi 0, %s118
    %s133 = sphi 0, %s119
    %s137 = sphi 0, %s137
    %s139 = sphi 0, %s137
    %s140 = sphi 0, %s139
    %s154 = sphi 0, %s140
    %s160 = sphi 0, %s162
    %s163 = sphi 0, %s160
    %s164 = sphi 0, %s163
    %s180 = sphi 0, %s164
    %s186 = sphi 0, %s188
    %s189 = sphi 0, %s186
    %s190 = sphi 0, %s189
    %s206 = sphi 0, %s190
  $region4: #{sfadnet_forward.10} parent=0 // loop_header_branch
    %17 = sbr.rel (%p15) target = $region8
  $region5: #{sfadnet_forward.10} parent=0 // loop_body
    %s19 = ssub.s32 %s14, 1
    %s20 = ssub.s32 %s14, 2
    %s21 = sadd.s32 %s14, 1
    %s22 = ssub.s32 %s14, %s21
    %p23 = scmp.eq.s32.totalorder %s22, 0
    %s25 = sadd.s32 %s24, 1
    %s26 = scalar_select %p23, %s24, %s25
    %p29 = pneg %p23
    %p30 = scmp.eq.s32.totalorder %s14, 1
    %p31 = por %p29, %p30
    %p32 = scmp.ne.s32.totalorder %s24, %s27
    %p33 = scmp.eq.s32.totalorder %s14, 0
    %p34 = por %p32, %p33
    %p35 = scmp.ne.s32.totalorder %s24, %s27
    %p36 = scmp.eq.s32.totalorder %s19, 1
    %p37 = por %p35, %p36
    %p38 = scmp.ne.s32.totalorder %s27, %s28
    %p39 = scmp.eq.s32.totalorder %s19, 0
    %p40 = por %p38, %p39
    %p41 = scmp.ne.s32.totalorder %s27, %s28
    %p42 = scmp.eq.s32.totalorder %s20, 1
    %p43 = por %p41, %p42
    %p45 = scmp.ne.s32.totalorder %s28, %s44
    %p46 = scmp.eq.s32.totalorder %s20, 0
    %p47 = por %p45, %p46
    %s48 = ssub.s32 %s14, %s21
    %p49 = scmp.eq.s32.totalorder %s48, 0
    %s51 = sadd.s32 %s50, 1
    %s52 = scalar_select %p49, %s50, %s51
    %p55 = pneg %p49
    %p56 = scmp.eq.s32.totalorder %s14, 1
    %p57 = por %p55, %p56
    %p58 = scmp.ne.s32.totalorder %s50, %s53
    %p59 = scmp.eq.s32.totalorder %s14, 0
    %p60 = por %p58, %p59
    %p61 = scmp.ne.s32.totalorder %s50, %s53
    %p62 = scmp.eq.s32.totalorder %s19, 1
    %p63 = por %p61, %p62
    %p64 = scmp.ne.s32.totalorder %s53, %s54
    %p65 = scmp.eq.s32.totalorder %s19, 0
    %p66 = por %p64, %p65
    %p67 = scmp.ne.s32.totalorder %s53, %s54
    %p68 = scmp.eq.s32.totalorder %s20, 1
    %p69 = por %p67, %p68
    %p71 = scmp.ne.s32.totalorder %s54, %s70
    %p72 = scmp.eq.s32.totalorder %s20, 0
    %p73 = por %p71, %p72
    %s75 = sadd.s32 %s74, 1
    %p78 = scmp.eq.s32.totalorder %s14, 1
    %p79 = scmp.ne.s32.totalorder %s74, %s76
    %p80 = scmp.eq.s32.totalorder %s14, 0
    %p81 = por %p79, %p80
    %p82 = scmp.ne.s32.totalorder %s74, %s76
    %p83 = scmp.eq.s32.totalorder %s19, 1
    %p84 = por %p82, %p83
    %p85 = scmp.ne.s32.totalorder %s76, %s77
    %p86 = scmp.eq.s32.totalorder %s19, 0
    %p87 = por %p85, %p86
    %p88 = scmp.ne.s32.totalorder %s76, %s77
    %p89 = scmp.eq.s32.totalorder %s20, 1
    %p90 = por %p88, %p89
    %p92 = scmp.ne.s32.totalorder %s77, %s91
    %p93 = scmp.eq.s32.totalorder %s20, 0
    %p94 = por %p92, %p93
    %s96 = sadd.s32 %s95, 1
    %p99 = scmp.eq.s32.totalorder %s14, 1
    %p100 = scmp.ne.s32.totalorder %s95, %s97
    %p101 = scmp.eq.s32.totalorder %s14, 0
    %p102 = por %p100, %p101
    %p103 = scmp.ne.s32.totalorder %s95, %s97
    %p104 = scmp.eq.s32.totalorder %s19, 1
    %p105 = por %p103, %p104
    %p106 = scmp.ne.s32.totalorder %s97, %s98
    %p107 = scmp.eq.s32.totalorder %s19, 0
    %p108 = por %p106, %p107
    %p109 = scmp.ne.s32.totalorder %s97, %s98
    %p110 = scmp.eq.s32.totalorder %s20, 1
    %p111 = por %p109, %p110
    %p113 = scmp.ne.s32.totalorder %s98, %s112
    %p114 = scmp.eq.s32.totalorder %s20, 0
    %p115 = por %p113, %p114
    %s117 = sadd.s32 %s116, 1
    %p120 = scmp.eq.s32.totalorder %s14, 1
    %p121 = scmp.ne.s32.totalorder %s116, %s118
    %p122 = scmp.eq.s32.totalorder %s14, 0
    %p123 = por %p121, %p122
    %p124 = scmp.ne.s32.totalorder %s116, %s118
    %p125 = scmp.eq.s32.totalorder %s19, 1
    %p126 = por %p124, %p125
    %p127 = scmp.ne.s32.totalorder %s118, %s119
    %p128 = scmp.eq.s32.totalorder %s19, 0
    %p129 = por %p127, %p128
    %p130 = scmp.ne.s32.totalorder %s118, %s119
    %p131 = scmp.eq.s32.totalorder %s20, 1
    %p132 = por %p130, %p131
    %p134 = scmp.ne.s32.totalorder %s119, %s133
    %p135 = scmp.eq.s32.totalorder %s20, 0
    %p136 = por %p134, %p135
    %s138 = sadd.s32 %s137, 1
    %p141 = scmp.eq.s32.totalorder %s14, 1
    %p142 = scmp.ne.s32.totalorder %s137, %s139
    %p143 = scmp.eq.s32.totalorder %s14, 0
    %p144 = por %p142, %p143
    %p145 = scmp.ne.s32.totalorder %s137, %s139
    %p146 = scmp.eq.s32.totalorder %s19, 1
    %p147 = por %p145, %p146
    %p148 = scmp.ne.s32.totalorder %s139, %s140
    %p149 = scmp.eq.s32.totalorder %s19, 0
    %p150 = por %p148, %p149
    %p151 = scmp.ne.s32.totalorder %s139, %s140
    %p152 = scmp.eq.s32.totalorder %s20, 1
    %p153 = por %p151, %p152
    %p155 = scmp.ne.s32.totalorder %s140, %s154
    %p156 = scmp.eq.s32.totalorder %s20, 0
    %p157 = por %p155, %p156
    %s158 = ssub.s32 %s14, %s21
    %p159 = scmp.eq.s32.totalorder %s158, 0
    %s161 = sadd.s32 %s160, 1
    %s162 = scalar_select %p159, %s160, %s161
    %p165 = pneg %p159
    %p166 = scmp.eq.s32.totalorder %s14, 1
    %p167 = por %p165, %p166
    %p168 = scmp.ne.s32.totalorder %s160, %s163
    %p169 = scmp.eq.s32.totalorder %s14, 0
    %p170 = por %p168, %p169
    %p171 = scmp.ne.s32.totalorder %s160, %s163
    %p172 = scmp.eq.s32.totalorder %s19, 1
    %p173 = por %p171, %p172
    %p174 = scmp.ne.s32.totalorder %s163, %s164
    %p175 = scmp.eq.s32.totalorder %s19, 0
    %p176 = por %p174, %p175
    %p177 = scmp.ne.s32.totalorder %s163, %s164
    %p178 = scmp.eq.s32.totalorder %s20, 1
    %p179 = por %p177, %p178
    %p181 = scmp.ne.s32.totalorder %s164, %s180
    %p182 = scmp.eq.s32.totalorder %s20, 0
    %p183 = por %p181, %p182
    %s184 = ssub.s32 %s14, %s21
    %p185 = scmp.eq.s32.totalorder %s184, 0
    %s187 = sadd.s32 %s186, 1
    %s188 = scalar_select %p185, %s186, %s187
    %p191 = pneg %p185
    %p192 = scmp.eq.s32.totalorder %s14, 1
    %p193 = por %p191, %p192
    %p194 = scmp.ne.s32.totalorder %s186, %s189
    %p195 = scmp.eq.s32.totalorder %s14, 0
    %p196 = por %p194, %p195
    %p197 = scmp.ne.s32.totalorder %s186, %s189
    %p198 = scmp.eq.s32.totalorder %s19, 1
    %p199 = por %p197, %p198
    %p200 = scmp.ne.s32.totalorder %s189, %s190
    %p201 = scmp.eq.s32.totalorder %s19, 0
    %p202 = por %p200, %p201
    %p203 = scmp.ne.s32.totalorder %s189, %s190
    %p204 = scmp.eq.s32.totalorder %s20, 1
    %p205 = por %p203, %p204
    %p207 = scmp.ne.s32.totalorder %s190, %s206
    %p208 = scmp.eq.s32.totalorder %s20, 0
    %p209 = por %p207, %p208
    %p210 = scmp.le.s32.totalorder 1, %s14
    %p211 = scmp.lt.s32.totalorder %s14, 3
    %p212 = pnand %p210, %p211
    %p213 = pneg %p212
    // Predicated region
    $region9: #{sfadnet_forward.10} parent=5 // pred_check
      _
    $region10: #{sfadnet_forward.10} parent=5 // pred_check_branch
      %215 = sbr.rel (%p212) target = $region12
    $region11: #{sfadnet_forward.10} parent=5 // pred_region
      %s216 = ssub.s32 %s14, 1
      // Predicated region
      $region13: #{sfadnet_forward.10} parent=11 // pred_check
        %p217 = pneg %p87
      $region14: #{sfadnet_forward.10} parent=11 // pred_check_branch
        %219 = sbr.rel (%p217) target = $region16
      $region15: #{sfadnet_forward.10} parent=11 // pred_region
        _
      $region16: #{sfadnet_forward.10} parent=11 // pred_fallthru
        _
      // Predicated region
      $region17: #{sfadnet_forward.10} parent=11 // pred_check
        %p220 = pneg %p108
      $region18: #{sfadnet_forward.10} parent=11 // pred_check_branch
        %222 = sbr.rel (%p220) target = $region20
      $region19: #{sfadnet_forward.10} parent=11 // pred_region
        _
      $region20: #{sfadnet_forward.10} parent=11 // pred_fallthru
        _
      // Predicated region
      $region21: #{sfadnet_forward.10} parent=11 // pred_check
        %p223 = pneg %p129
      $region22: #{sfadnet_forward.10} parent=11 // pred_check_branch
        %225 = sbr.rel (%p223) target = $region24
      $region23: #{sfadnet_forward.10} parent=11 // pred_region
        _
      $region24: #{sfadnet_forward.10} parent=11 // pred_fallthru
        _
      // Predicated region
      $region25: #{sfadnet_forward.10} parent=11 // pred_check
        %p226 = pneg %p150
      $region26: #{sfadnet_forward.10} parent=11 // pred_check_branch
        %228 = sbr.rel (%p226) target = $region28
      $region27: #{sfadnet_forward.10} parent=11 // pred_region
        _
      $region28: #{sfadnet_forward.10} parent=11 // pred_fallthru
        _
    $region12: #{sfadnet_forward.10} parent=5 // pred_fallthru
      _
    %p229 = scmp.lt.s32.totalorder %s14, 2
    // Predicated region
    $region29: #{sfadnet_forward.10} parent=5 // pred_check
      %p230 = pneg %p229
    $region30: #{sfadnet_forward.10} parent=5 // pred_check_branch
      %232 = sbr.rel (%p230) target = $region32
    $region31: #{sfadnet_forward.10} parent=5 // pred_region
      // Predicated region
      $region33: #{sfadnet_forward.10} parent=31 // pred_check
        %p233 = pneg %p34
      $region34: #{sfadnet_forward.10} parent=31 // pred_check_branch
        %235 = sbr.rel (%p233) target = $region36
      $region35: #{sfadnet_forward.10} parent=31 // pred_region
        %p236 = scmp.lt.s32.totalorder %s14, 1
        %s237 = scalar_select %p236, %s14, 1
        %s238 = smul.addr %s237, 8
        %s239 = scalar_lea.vmem %s0, %s238
      $region36: #{sfadnet_forward.10} parent=31 // pred_fallthru
        _
      // Predicated region
      $region37: #{sfadnet_forward.10} parent=31 // pred_check
        %p240 = pneg %p60
      $region38: #{sfadnet_forward.10} parent=31 // pred_check_branch
        %242 = sbr.rel (%p240) target = $region40
      $region39: #{sfadnet_forward.10} parent=31 // pred_region
        %p243 = scmp.lt.s32.totalorder %s14, 1
        %s244 = scalar_select %p243, %s14, 1
        %s245 = smul.addr %s244, 8
        %s246 = scalar_lea.vmem %s1, %s245
      $region40: #{sfadnet_forward.10} parent=31 // pred_fallthru
        _
    $region32: #{sfadnet_forward.10} parent=5 // pred_fallthru
      _
    %p247 = scmp.le.s32.totalorder 1, %s14
    %p248 = scmp.lt.s32.totalorder %s14, 3
    %p249 = pnand %p247, %p248
    %p250 = pneg %p249
    // Predicated region
    $region41: #{sfadnet_forward.10} parent=5 // pred_check
      _
    $region42: #{sfadnet_forward.10} parent=5 // pred_check_branch
      %252 = sbr.rel (%p249) target = $region44
    $region43: #{sfadnet_forward.10} parent=5 // pred_region
      %s253 = ssub.s32 %s14, 1
      %p254 = scmp.lt.s32.totalorder %s19, 1
      %s255 = scalar_select %p254, %s19, 1
      %s256 = smul.addr %s255, 8
      %s257 = scalar_lea.vmem %s0, %s256
      %p258 = pneg %p40
      %p259 = pneg %p37
      %p260 = scmp.lt.s32.totalorder %s19, 1
      %s261 = scalar_select %p260, %s19, 1
      %s262 = smul.addr %s261, 8
      %s263 = scalar_lea.vmem %s1, %s262
      %p264 = pneg %p66
      %p265 = pneg %p63
      %p266 = pneg %p87
      %p267 = pneg %p84
      %p268 = pneg %p108
      %p269 = pneg %p105
      %p270 = pneg %p129
      %p271 = pneg %p126
      %p272 = pneg %p150
      %p273 = pneg %p147
      %p274 = pneg %p176
      %p275 = pneg %p173
      %p276 = scmp.lt.s32.totalorder %s19, 1
      %s277 = scalar_select %p276, %s19, 1
      %s278 = smul.addr %s277, 8
      %s279 = scalar_lea.vmem %s6, %s278
      %p280 = pneg %p202
      %p281 = pneg %p199
      %p282 = scmp.lt.s32.totalorder %s19, 1
      %s283 = scalar_select %p282, %s19, 1
      %s284 = smul.addr %s283, 8
      %s285 = scalar_lea.vmem %s7, %s284
      %p286 = scmp.lt.s32.totalorder %s19, 1
      %s287 = scalar_select %p286, %s19, 1
      %s288 = smul.addr %s287, 8
      %s289 = scalar_lea.vmem %s0, %s288
      %p290 = scmp.lt.s32.totalorder %s19, 1
      %s291 = scalar_select %p290, %s19, 1
      %s292 = smul.addr %s291, 8
      %s293 = scalar_lea.vmem %s1, %s292
      %p294 = scmp.lt.s32.totalorder %s19, 1
      %s295 = scalar_select %p294, %s19, 1
      %s296 = smul.addr %s295, 8
      %s297 = scalar_lea.vmem %s6, %s296
      %p298 = scmp.lt.s32.totalorder %s19, 1
      %s299 = scalar_select %p298, %s19, 1
      %s300 = smul.addr %s299, 8
      %s301 = scalar_lea.vmem %s7, %s300
      %v302 = vld [vmem:[%s289] sm:$0xff]
      %v303 = vld [vmem:[%s293] sm:$0xff]
      %v304 = vld [vmem:[%s2] sm:$0xff]
      %v305 = vld [vmem:[%s2 + $0x8] sm:$0xff]
      %v306 = vld [vmem:[%s2 + $0x10] sm:$0xff]
      %v307 = vld [vmem:[%s3] sm:$0x1]
      %v309 = vperm.slane %v307, 0
      %vm311 = vcmask 195584
      %v313 = vsel %vm311, %v302, 0
      %315 = vmatpush.msra.mxu0 0.0
      %316 = vmatpush.msra.mxu0 0.0
      %317 = vmatpush.msra.mxu0 0.0
      %318 = vmatpush.msra.mxu0 0.0
      %319 = vmatpush.msra.mxu0 0.0
      %320 = vmatpush.msra.mxu0 0.0
      %321 = vmatpush.msra.mxu0 0.0
      %322 = vmatpush.msra.mxu0 0.0
      %323 = vmatpush.msra.mxu0 0.0
      %324 = vmatpush.msra.mxu0 0.0
      %325 = vmatpush.msra.mxu0 0.0
      %326 = vmatpush.msra.mxu0 0.0
      %327 = vmatpush.msra.mxu0 0.0
      %328 = vmatpush.msra.mxu0 %v306
      %329 = vmatpush.msra.mxu0 %v305
      %330 = vmatpush.msra.mxu0 %v304
      %331 = vmatmul.f32.gmra.mxu0 %v313
      %v332 = vpop.f32.mrf.mxu0
      %v333 = vadd.f32 %v309, %v332
      %334 = vdwg.mxu0
      %v335 = vmul.f32 %v333, 3.0
      %v336 = vtanh.pop %v335
      %v337 = vld [vmem:[%s4] sm:$0xff]
      %v338 = vld [vmem:[%s4 + $0x8] sm:$0xff]
      %v339 = vld [vmem:[%s4 + $0x10] sm:$0xff]
      %v340 = vld [vmem:[%s5] sm:$0x1]
      %v342 = vperm.slane %v340, 0
      %v345 = vsel %vm311, %v303, 0
      %347 = vmatpush.msra.mxu0 0.0
      %348 = vmatpush.msra.mxu0 0.0
      %349 = vmatpush.msra.mxu0 0.0
      %350 = vmatpush.msra.mxu0 0.0
      %351 = vmatpush.msra.mxu0 0.0
      %352 = vmatpush.msra.mxu0 0.0
      %353 = vmatpush.msra.mxu0 0.0
      %354 = vmatpush.msra.mxu0 0.0
      %355 = vmatpush.msra.mxu0 0.0
      %356 = vmatpush.msra.mxu0 0.0
      %357 = vmatpush.msra.mxu0 0.0
      %358 = vmatpush.msra.mxu0 0.0
      %359 = vmatpush.msra.mxu0 0.0
      %360 = vmatpush.msra.mxu0 %v339
      %361 = vmatpush.msra.mxu0 %v338
      %362 = vmatpush.msra.mxu0 %v337
      %363 = vmatmul.f32.gmra.mxu0 %v345
      %v364 = vpop.f32.mrf.mxu0
      %v365 = vadd.f32 %v342, %v364
      %366 = vdwg.mxu0
      %v367 = vmul.f32 %v365, 3.0
      %v368 = vtanh.pop %v367
      %vm369 = vcmask 64512
      %v371 = vsel %vm369, %v336, 0
      %v374 = vsel %vm369, %v368, 0
      %376 = vmatpush.xpose.msra.mxu0 0.0
      %377 = vmatpush.xpose.msra.mxu0 0.0
      %378 = vmatpush.xpose.msra.mxu0 0.0
      %379 = vmatpush.xpose.msra.mxu0 0.0
      %380 = vmatpush.xpose.msra.mxu0 0.0
      %381 = vmatpush.xpose.msra.mxu0 0.0
      %382 = vmatpush.xpose.msra.mxu0 0.0
      %383 = vmatpush.xpose.msra.mxu0 0.0
      %384 = vmatpush.xpose.msra.mxu0 0.0
      %385 = vmatpush.xpose.msra.mxu0 0.0
      %386 = vmatpush.xpose.msra.mxu0 0.0
      %387 = vmatpush.xpose.msra.mxu0 0.0
      %388 = vmatpush.xpose.msra.mxu0 0.0
      %389 = vmatpush.xpose.msra.mxu0 0.0
      %390 = vmatpush.xpose.msra.mxu0 0.0
      %391 = vmatpush.xpose.msra.mxu0 %v374
      %392 = vmatmul.f32.gmra.mxu0 %v371
      %v393 = vpop.f32.mrf.mxu0
      %v394 = vadd.f32 0.0, %v393
      %395 = vdwg.mxu0
      %v396 = vmul.f32 %v394, 3.0
      %v397 = vtanh.pop %v396
      %v398 = vmax.f32 %v397, 0.0
      %399 = vmatpush.xpose.msra.mxu0 0.0
      %400 = vmatpush.xpose.msra.mxu0 0.0
      %401 = vmatpush.xpose.msra.mxu0 0.0
      %402 = vmatpush.xpose.msra.mxu0 0.0
      %403 = vmatpush.xpose.msra.mxu0 0.0
      %404 = vmatpush.xpose.msra.mxu0 0.0
      %405 = vmatpush.xpose.msra.mxu0 0.0
      %406 = vmatpush.xpose.msra.mxu0 0.0
      %407 = vmatpush.xpose.msra.mxu0 0.0
      %408 = vmatpush.xpose.msra.mxu0 0.0
      %409 = vmatpush.xpose.msra.mxu0 0.0
      %410 = vmatpush.xpose.msra.mxu0 0.0
      %411 = vmatpush.xpose.msra.mxu0 0.0
      %412 = vmatpush.xpose.msra.mxu0 0.0
      %413 = vmatpush.xpose.msra.mxu0 0.0
      %414 = vmatpush.xpose.msra.mxu0 %v371
      %415 = vmatmul.f32.gmra.mxu0 %v374
      %v416 = vpop.f32.mrf.mxu0
      %v417 = vadd.f32 0.0, %v416
      %418 = vdwg.mxu0
      %v419 = vmul.f32 %v417, 3.0
      %v420 = vtanh.pop %v419
      %v421 = vmax.f32 %v420, 0.0
      %v422 = vlaneseq
      %v423 = vshrl.u32 %v422, 7
      %v424 = vlaneseq
      %v425 = vand.u32 %v424, 127
      %vm426 = vcmp.eq.s32.totalorder %v423, %v425
      %v427 = vsel %vm426, 1, 0
      %v428 = vcvt.s32.f32 %v427
      %v429 = vadd.f32 %v398, %v428
      %v430 = vadd.f32 %v421, %v428
      %v431 = vsel %vm369, %v429, 0.0
      %432 = vadd.xlane.f32.xlu0 %v431
      %v433 = vpop.xlane.xlu0 %432
      %v434 = vrcp.pop %v433
      %v435 = vmul.f32 %v433, %v434
      %v436 = vsub.f32 1.0, %v435
      %v437 = vmul.f32 %v434, %v436
      %v438 = vadd.f32 %v434, %v437
      %vm439 = vweird.f32 %v433
      %vm440 = vweird.f32 %v434
      %vm441 = vmor %vm439, %vm440
      %v442 = vsel %vm441, %v434, %v438
      %v443 = vand.u32 2147483647, %v433
      %vm444 = vcmp.eq.f32.partialorder %v443, 8.507059e+37
      %v445 = vand.u32 %v433, 2147483648
      %v446 = vor.u32 1.1754944e-38, %v445
      %v447 = vsel %vm444, %v446, %v442
      %v448 = vmul.f32 %v429, %v447
      %449 = vst.msk [vmem:[%s297] sm:$0xff] %vm369, %v448
      %v450 = vsel %vm369, %v430, 0.0
      %451 = vadd.xlane.f32.xlu0 %v450
      %v452 = vpop.xlane.xlu0 %451
      %v453 = vrcp.pop %v452
      %v454 = vmul.f32 %v452, %v453
      %v455 = vsub.f32 1.0, %v454
      %v456 = vmul.f32 %v453, %v455
      %v457 = vadd.f32 %v453, %v456
      %vm458 = vweird.f32 %v452
      %vm459 = vweird.f32 %v453
      %vm460 = vmor %vm458, %vm459
      %v461 = vsel %vm460, %v453, %v457
      %v462 = vand.u32 2147483647, %v452
      %vm463 = vcmp.eq.f32.partialorder %v462, 8.507059e+37
      %v464 = vand.u32 %v452, 2147483648
      %v465 = vor.u32 1.1754944e-38, %v464
      %v466 = vsel %vm463, %v465, %v461
      %v467 = vmul.f32 %v430, %v466
      %468 = vst.msk [vmem:[%s301] sm:$0xff] %vm369, %v467
      %p469 = scmp.lt.s32.totalorder %s19, 1
      %s470 = scalar_select %p469, %s19, 1
      %s471 = smul.addr %s470, 8
      %s472 = scalar_lea.vmem %s6, %s471
      %p473 = scmp.lt.s32.totalorder %s19, 1
      %s474 = scalar_select %p473, %s19, 1
      %s475 = smul.addr %s474, 8
      %s476 = scalar_lea.vmem %s7, %s475
      // Predicated region
      $region45: #{sfadnet_forward.10} parent=43 // pred_check
        %p477 = pneg %p173
      $region46: #{sfadnet_forward.10} parent=43 // pred_check_branch
        %479 = sbr.rel (%p477) target = $region48
      $region47: #{sfadnet_forward.10} parent=43 // pred_region
        _
      $region48: #{sfadnet_forward.10} parent=43 // pred_fallthru
        _
      // Predicated region
      $region49: #{sfadnet_forward.10} parent=43 // pred_check
        %p480 = pneg %p199
      $region50: #{sfadnet_forward.10} parent=43 // pred_check_branch
        %482 = sbr.rel (%p480) target = $region52
      $region51: #{sfadnet_forward.10} parent=43 // pred_region
        _
      $region52: #{sfadnet_forward.10} parent=43 // pred_fallthru
        _
    $region44: #{sfadnet_forward.10} parent=5 // pred_fallthru
      _
    %p483 = scmp.le.s32.totalorder 2, %s14
    // Predicated region
    $region53: #{sfadnet_forward.10} parent=5 // pred_check
      %p484 = pneg %p483
    $region54: #{sfadnet_forward.10} parent=5 // pred_check_branch
      %486 = sbr.rel (%p484) target = $region56
    $region55: #{sfadnet_forward.10} parent=5 // pred_region
      %s487 = ssub.s32 %s14, 2
      // Predicated region
      $region57: #{sfadnet_forward.10} parent=55 // pred_check
        %p488 = pneg %p179
      $region58: #{sfadnet_forward.10} parent=55 // pred_check_branch
        %490 = sbr.rel (%p488) target = $region60
      $region59: #{sfadnet_forward.10} parent=55 // pred_region
        %p491 = scmp.lt.s32.totalorder %s20, 1
        %s492 = scalar_select %p491, %s20, 1
        %s493 = smul.addr %s492, 8
        %s494 = scalar_lea.vmem %s6, %s493
      $region60: #{sfadnet_forward.10} parent=55 // pred_fallthru
        _
      // Predicated region
      $region61: #{sfadnet_forward.10} parent=55 // pred_check
        %p495 = pneg %p205
      $region62: #{sfadnet_forward.10} parent=55 // pred_check_branch
        %497 = sbr.rel (%p495) target = $region64
      $region63: #{sfadnet_forward.10} parent=55 // pred_region
        %p498 = scmp.lt.s32.totalorder %s20, 1
        %s499 = scalar_select %p498, %s20, 1
        %s500 = smul.addr %s499, 8
        %s501 = scalar_lea.vmem %s7, %s500
      $region64: #{sfadnet_forward.10} parent=55 // pred_fallthru
        _
    $region56: #{sfadnet_forward.10} parent=5 // pred_fallthru
      _
  $region6: #{sfadnet_forward.10} parent=0 // loop_footer
    %s18 = sadd.s32 1, %s14
  $region7: #{sfadnet_forward.10} parent=0 // loop_footer_branch
    %13 = sbr.rel target = $region3
  $region8: #{sfadnet_forward.10} parent=0 // loop_exit
    _

// kernel: sfadnet_forward.13
$region0: #{sfadnet_forward.13}
  #allocation0 [shape = 'u32[]', space=smem, size = 0x4, offset = 0x4, fixed_abs, tag = 'smem constant byte address 0x4 - core index']
  #allocation1 [shape = 'u32[72,128]{1,0:T(1,128)}', space=vmem, size = 0x9000, scoped, tag = 'internal scratch']
  %s0 = inlined_call_operand.vmem [shape: f32[2,8,512], index: 0, kind: input, shape index: {}]
  %s1 = inlined_call_operand.vmem [shape: f32[2,8,8], index: 1, kind: input, shape index: {}]
  %s2 = inlined_call_operand.vmem [shape: f32[2,8,8], index: 2, kind: input, shape index: {}]
  %s3 = inlined_call_operand.vmem [shape: f32[2,4,8,512], index: 3, kind: output, shape index: {}]
  %s4 = sld [smem:[#allocation0]]
  $region45: #{sfadnet_forward.13} parent=0
    _
  %s6 = ssub.s32 1, %s4
  %s7 = scalar_select 0, %s6, %s4
  loop: start=0, step=1, limit=4
  $region2: #{sfadnet_forward.13} parent=0 // loop_pre_header
    _
  $region3: #{sfadnet_forward.13} parent=0 // loop_header
    %s9 = sphi 0, %s13
    %p10 = scmp.ge.s32.totalorder %s9, 4
    %s19 = sphi 0, %s21
    %s22 = sphi 0, %s19
    %s23 = sphi 0, %s22
    %s39 = sphi 0, %s23
    %s45 = sphi 0, %s47
    %s48 = sphi 0, %s45
    %s49 = sphi 0, %s48
    %s65 = sphi 0, %s49
    %s71 = sphi 0, %s73
    %s74 = sphi 0, %s71
    %s75 = sphi 0, %s74
    %s91 = sphi 0, %s75
    %s97 = sphi 0, %s99
    %s100 = sphi 0, %s97
    %s101 = sphi 0, %s100
    %s117 = sphi 0, %s101
  $region4: #{sfadnet_forward.13} parent=0 // loop_header_branch
    %12 = sbr.rel (%p10) target = $region8
  $region5: #{sfadnet_forward.13} parent=0 // loop_body
    %s14 = ssub.s32 %s9, 1
    %s15 = ssub.s32 %s9, 2
    %s16 = sadd.s32 %s9, 1
    %s17 = ssub.s32 %s9, %s16
    %p18 = scmp.eq.s32.totalorder %s17, 0
    %s20 = sadd.s32 %s19, 1
    %s21 = scalar_select %p18, %s19, %s20
    %p24 = pneg %p18
    %p25 = scmp.eq.s32.totalorder %s9, 1
    %p26 = por %p24, %p25
    %p27 = scmp.ne.s32.totalorder %s19, %s22
    %p28 = scmp.eq.s32.totalorder %s9, 0
    %p29 = por %p27, %p28
    %p30 = scmp.ne.s32.totalorder %s19, %s22
    %p31 = scmp.eq.s32.totalorder %s14, 1
    %p32 = por %p30, %p31
    %p33 = scmp.ne.s32.totalorder %s22, %s23
    %p34 = scmp.eq.s32.totalorder %s14, 0
    %p35 = por %p33, %p34
    %p36 = scmp.ne.s32.totalorder %s22, %s23
    %p37 = scmp.eq.s32.totalorder %s15, 1
    %p38 = por %p36, %p37
    %p40 = scmp.ne.s32.totalorder %s23, %s39
    %p41 = scmp.eq.s32.totalorder %s15, 0
    %p42 = por %p40, %p41
    %s43 = ssub.s32 %s9, %s16
    %p44 = scmp.eq.s32.totalorder %s43, 0
    %s46 = sadd.s32 %s45, 1
    %s47 = scalar_select %p44, %s45, %s46
    %p50 = pneg %p44
    %p51 = scmp.eq.s32.totalorder %s9, 1
    %p52 = por %p50, %p51
    %p53 = scmp.ne.s32.totalorder %s45, %s48
    %p54 = scmp.eq.s32.totalorder %s9, 0
    %p55 = por %p53, %p54
    %p56 = scmp.ne.s32.totalorder %s45, %s48
    %p57 = scmp.eq.s32.totalorder %s14, 1
    %p58 = por %p56, %p57
    %p59 = scmp.ne.s32.totalorder %s48, %s49
    %p60 = scmp.eq.s32.totalorder %s14, 0
    %p61 = por %p59, %p60
    %p62 = scmp.ne.s32.totalorder %s48, %s49
    %p63 = scmp.eq.s32.totalorder %s15, 1
    %p64 = por %p62, %p63
    %p66 = scmp.ne.s32.totalorder %s49, %s65
    %p67 = scmp.eq.s32.totalorder %s15, 0
    %p68 = por %p66, %p67
    %s69 = ssub.s32 %s9, %s16
    %p70 = scmp.eq.s32.totalorder %s69, 0
    %s72 = sadd.s32 %s71, 1
    %s73 = scalar_select %p70, %s71, %s72
    %p76 = pneg %p70
    %p77 = scmp.eq.s32.totalorder %s9, 1
    %p78 = por %p76, %p77
    %p79 = scmp.ne.s32.totalorder %s71, %s74
    %p80 = scmp.eq.s32.totalorder %s9, 0
    %p81 = por %p79, %p80
    %p82 = scmp.ne.s32.totalorder %s71, %s74
    %p83 = scmp.eq.s32.totalorder %s14, 1
    %p84 = por %p82, %p83
    %p85 = scmp.ne.s32.totalorder %s74, %s75
    %p86 = scmp.eq.s32.totalorder %s14, 0
    %p87 = por %p85, %p86
    %p88 = scmp.ne.s32.totalorder %s74, %s75
    %p89 = scmp.eq.s32.totalorder %s15, 1
    %p90 = por %p88, %p89
    %p92 = scmp.ne.s32.totalorder %s75, %s91
    %p93 = scmp.eq.s32.totalorder %s15, 0
    %p94 = por %p92, %p93
    %s95 = ssub.s32 %s9, %s16
    %p96 = scmp.eq.s32.totalorder %s95, 0
    %s98 = sadd.s32 %s97, 1
    %s99 = scalar_select %p96, %s97, %s98
    %p102 = pneg %p96
    %p103 = scmp.eq.s32.totalorder %s9, 1
    %p104 = por %p102, %p103
    %p105 = scmp.ne.s32.totalorder %s97, %s100
    %p106 = scmp.eq.s32.totalorder %s9, 0
    %p107 = por %p105, %p106
    %p108 = scmp.ne.s32.totalorder %s97, %s100
    %p109 = scmp.eq.s32.totalorder %s14, 1
    %p110 = por %p108, %p109
    %p111 = scmp.ne.s32.totalorder %s100, %s101
    %p112 = scmp.eq.s32.totalorder %s14, 0
    %p113 = por %p111, %p112
    %p114 = scmp.ne.s32.totalorder %s100, %s101
    %p115 = scmp.eq.s32.totalorder %s15, 1
    %p116 = por %p114, %p115
    %p118 = scmp.ne.s32.totalorder %s101, %s117
    %p119 = scmp.eq.s32.totalorder %s15, 0
    %p120 = por %p118, %p119
    %p121 = scmp.le.s32.totalorder 1, %s9
    %p122 = scmp.lt.s32.totalorder %s9, 3
    %p123 = pnand %p121, %p122
    %p124 = pneg %p123
    // Predicated region
    $region9: #{sfadnet_forward.13} parent=5 // pred_check
      _
    $region10: #{sfadnet_forward.13} parent=5 // pred_check_branch
      %126 = sbr.rel (%p123) target = $region12
    $region11: #{sfadnet_forward.13} parent=5 // pred_region
      %s127 = ssub.s32 %s9, 1
    $region12: #{sfadnet_forward.13} parent=5 // pred_fallthru
      _
    %p128 = scmp.lt.s32.totalorder %s9, 2
    // Predicated region
    $region13: #{sfadnet_forward.13} parent=5 // pred_check
      %p129 = pneg %p128
    $region14: #{sfadnet_forward.13} parent=5 // pred_check_branch
      %131 = sbr.rel (%p129) target = $region16
    $region15: #{sfadnet_forward.13} parent=5 // pred_region
      // Predicated region
      $region17: #{sfadnet_forward.13} parent=15 // pred_check
        %p132 = pneg %p29
      $region18: #{sfadnet_forward.13} parent=15 // pred_check_branch
        %134 = sbr.rel (%p132) target = $region20
      $region19: #{sfadnet_forward.13} parent=15 // pred_region
        %p135 = scmp.lt.s32.totalorder %s9, 1
        %s136 = scalar_select %p135, %s9, 1
        %s137 = smul.addr %s136, 4
        %s138 = smul.addr %s137, 8
        %s139 = scalar_lea.vmem %s0, %s138
      $region20: #{sfadnet_forward.13} parent=15 // pred_fallthru
        _
      // Predicated region
      $region21: #{sfadnet_forward.13} parent=15 // pred_check
        %p140 = pneg %p55
      $region22: #{sfadnet_forward.13} parent=15 // pred_check_branch
        %142 = sbr.rel (%p140) target = $region24
      $region23: #{sfadnet_forward.13} parent=15 // pred_region
        %p143 = scmp.lt.s32.totalorder %s9, 1
        %s144 = scalar_select %p143, %s9, 1
        %s145 = smul.addr %s144, 8
        %s146 = scalar_lea.vmem %s1, %s145
      $region24: #{sfadnet_forward.13} parent=15 // pred_fallthru
        _
      // Predicated region
      $region25: #{sfadnet_forward.13} parent=15 // pred_check
        %p147 = pneg %p81
      $region26: #{sfadnet_forward.13} parent=15 // pred_check_branch
        %149 = sbr.rel (%p147) target = $region28
      $region27: #{sfadnet_forward.13} parent=15 // pred_region
        %p150 = scmp.lt.s32.totalorder %s9, 1
        %s151 = scalar_select %p150, %s9, 1
        %s152 = smul.addr %s151, 8
        %s153 = scalar_lea.vmem %s2, %s152
      $region28: #{sfadnet_forward.13} parent=15 // pred_fallthru
        _
    $region16: #{sfadnet_forward.13} parent=5 // pred_fallthru
      _
    %p154 = scmp.le.s32.totalorder 1, %s9
    %p155 = scmp.lt.s32.totalorder %s9, 3
    %p156 = pnand %p154, %p155
    %p157 = pneg %p156
    // Predicated region
    $region29: #{sfadnet_forward.13} parent=5 // pred_check
      _
    $region30: #{sfadnet_forward.13} parent=5 // pred_check_branch
      %159 = sbr.rel (%p156) target = $region32
    $region31: #{sfadnet_forward.13} parent=5 // pred_region
      %s160 = ssub.s32 %s9, 1
      %p161 = scmp.lt.s32.totalorder %s14, 1
      %s162 = scalar_select %p161, %s14, 1
      %s163 = smul.addr %s162, 4
      %s164 = smul.addr %s163, 8
      %s165 = scalar_lea.vmem %s0, %s164
      %p166 = pneg %p35
      %p167 = pneg %p32
      %p168 = scmp.lt.s32.totalorder %s14, 1
      %s169 = scalar_select %p168, %s14, 1
      %s170 = smul.addr %s169, 8
      %s171 = scalar_lea.vmem %s1, %s170
      %p172 = pneg %p61
      %p173 = pneg %p58
      %p174 = scmp.lt.s32.totalorder %s14, 1
      %s175 = scalar_select %p174, %s14, 1
      %s176 = smul.addr %s175, 8
      %s177 = scalar_lea.vmem %s2, %s176
      %p178 = pneg %p87
      %p179 = pneg %p84
      %p180 = pneg %p113
      %p181 = pneg %p110
      %p182 = scmp.lt.s32.totalorder %s14, 1
      %s183 = scalar_select %p182, %s14, 1
      %s184 = smul.addr %s183, 16
      %s185 = smul.addr %s184, 8
      %s186 = scalar_lea.vmem %s3, %s185
      %p187 = scmp.lt.s32.totalorder %s14, 1
      %s188 = scalar_select %p187, %s14, 1
      %s189 = smul.addr %s188, 4
      %s190 = smul.addr %s189, 8
      %s191 = scalar_lea.vmem %s0, %s190
      %p192 = scmp.lt.s32.totalorder %s14, 1
      %s193 = scalar_select %p192, %s14, 1
      %s194 = smul.addr %s193, 8
      %s195 = scalar_lea.vmem %s1, %s194
      %p196 = scmp.lt.s32.totalorder %s14, 1
      %s197 = scalar_select %p196, %s14, 1
      %s198 = smul.addr %s197, 8
      %s199 = scalar_lea.vmem %s2, %s198
      %p200 = scmp.lt.s32.totalorder %s14, 1
      %s201 = scalar_select %p200, %s14, 1
      %s202 = smul.addr %s201, 16
      %s203 = smul.addr %s202, 8
      %s204 = scalar_lea.vmem %s3, %s203
      %v205 = vld [vmem:[%s191] sm:$0xff]
      %v206 = vld [vmem:[%s191 + $0x8] sm:$0xff]
      %v207 = vld [vmem:[%s191 + $0x10] sm:$0xff]
      %v208 = vld [vmem:[%s191 + $0x18] sm:$0xff]
      %v209 = vld [vmem:[%s195] sm:$0xff]
      %v210 = vld [vmem:[%s199] sm:$0xff]
      %v211 = vmul.f32 %v205, 0.05
      %v212 = vmul.f32 %v206, 0.05
      %v213 = vmul.f32 %v207, 0.05
      %v214 = vmul.f32 %v208, 0.05
      %vm215 = vcmask 64512
      %v217 = vsel %vm215, %v209, 0
      %219 = vmatpush.msra.mxu0 0.0
      %220 = vmatpush.msra.mxu0 0.0
      %221 = vmatpush.msra.mxu0 0.0
      %222 = vmatpush.msra.mxu0 0.0
      %223 = vmatpush.msra.mxu0 0.0
      %224 = vmatpush.msra.mxu0 0.0
      %225 = vmatpush.msra.mxu0 0.0
      %226 = vmatpush.msra.mxu0 0.0
      %227 = vmatpush.msra.mxu0 0.0
      %228 = vmatpush.msra.mxu0 0.0
      %229 = vmatpush.msra.mxu0 0.0
      %230 = vmatpush.msra.mxu0 0.0
      %231 = vmatpush.msra.mxu0 0.0
      %232 = vmatpush.msra.mxu0 0.0
      %233 = vmatpush.msra.mxu0 0.0
      %234 = vmatpush.msra.mxu0 %v205
      %235 = vmatmul.f32.gmra.mxu0 %v217
      %v236 = vpop.f32.mrf.mxu0
      %v237 = vadd.f32 0.0, %v236
      %238 = vdwg.mxu0
      %239 = vmatpush.msra.mxu0 0.0
      %240 = vmatpush.msra.mxu0 0.0
      %241 = vmatpush.msra.mxu0 0.0
      %242 = vmatpush.msra.mxu0 0.0
      %243 = vmatpush.msra.mxu0 0.0
      %244 = vmatpush.msra.mxu0 0.0
      %245 = vmatpush.msra.mxu0 0.0
      %246 = vmatpush.msra.mxu0 0.0
      %247 = vmatpush.msra.mxu0 0.0
      %248 = vmatpush.msra.mxu0 0.0
      %249 = vmatpush.msra.mxu0 0.0
      %250 = vmatpush.msra.mxu0 0.0
      %251 = vmatpush.msra.mxu0 0.0
      %252 = vmatpush.msra.mxu0 0.0
      %253 = vmatpush.msra.mxu0 0.0
      %254 = vmatpush.msra.mxu0 %v206
      %255 = vmatmul.f32.gmra.mxu0 %v217
      %v256 = vpop.f32.mrf.mxu0
      %v257 = vadd.f32 0.0, %v256
      %258 = vdwg.mxu0
      %259 = vmatpush.msra.mxu0 0.0
      %260 = vmatpush.msra.mxu0 0.0
      %261 = vmatpush.msra.mxu0 0.0
      %262 = vmatpush.msra.mxu0 0.0
      %263 = vmatpush.msra.mxu0 0.0
      %264 = vmatpush.msra.mxu0 0.0
      %265 = vmatpush.msra.mxu0 0.0
      %266 = vmatpush.msra.mxu0 0.0
      %267 = vmatpush.msra.mxu0 0.0
      %268 = vmatpush.msra.mxu0 0.0
      %269 = vmatpush.msra.mxu0 0.0
      %270 = vmatpush.msra.mxu0 0.0
      %271 = vmatpush.msra.mxu0 0.0
      %272 = vmatpush.msra.mxu0 0.0
      %273 = vmatpush.msra.mxu0 0.0
      %274 = vmatpush.msra.mxu0 %v207
      %275 = vmatmul.f32.gmra.mxu0 %v217
      %v276 = vpop.f32.mrf.mxu0
      %v277 = vadd.f32 0.0, %v276
      %278 = vdwg.mxu0
      %279 = vmatpush.msra.mxu0 0.0
      %280 = vmatpush.msra.mxu0 0.0
      %281 = vmatpush.msra.mxu0 0.0
      %282 = vmatpush.msra.mxu0 0.0
      %283 = vmatpush.msra.mxu0 0.0
      %284 = vmatpush.msra.mxu0 0.0
      %285 = vmatpush.msra.mxu0 0.0
      %286 = vmatpush.msra.mxu0 0.0
      %287 = vmatpush.msra.mxu0 0.0
      %288 = vmatpush.msra.mxu0 0.0
      %289 = vmatpush.msra.mxu0 0.0
      %290 = vmatpush.msra.mxu0 0.0
      %291 = vmatpush.msra.mxu0 0.0
      %292 = vmatpush.msra.mxu0 0.0
      %293 = vmatpush.msra.mxu0 0.0
      %294 = vmatpush.msra.mxu0 %v208
      %295 = vmatmul.f32.gmra.mxu0 %v217
      %v296 = vpop.f32.mrf.mxu0
      %v297 = vadd.f32 0.0, %v296
      %298 = vdwg.mxu0
      %v299 = vmul.f32 %v237, 0.95
      %v300 = vmul.f32 %v257, 0.95
      %v301 = vmul.f32 %v277, 0.95
      %v302 = vmul.f32 %v297, 0.95
      %v303 = vadd.f32 %v211, %v299
      %v304 = vadd.f32 %v212, %v300
      %v305 = vadd.f32 %v213, %v301
      %v306 = vadd.f32 %v214, %v302
      %307 = vmatpush.msra.mxu0 0.0
      %308 = vmatpush.msra.mxu0 0.0
      %309 = vmatpush.msra.mxu0 0.0
      %310 = vmatpush.msra.mxu0 0.0
      %311 = vmatpush.msra.mxu0 0.0
      %312 = vmatpush.msra.mxu0 0.0
      %313 = vmatpush.msra.mxu0 0.0
      %314 = vmatpush.msra.mxu0 0.0
      %315 = vmatpush.msra.mxu0 0.0
      %316 = vmatpush.msra.mxu0 0.0
      %317 = vmatpush.msra.mxu0 0.0
      %318 = vmatpush.msra.mxu0 0.0
      %319 = vmatpush.msra.mxu0 0.0
      %320 = vmatpush.msra.mxu0 0.0
      %321 = vmatpush.msra.mxu0 0.0
      %322 = vmatpush.msra.mxu0 %v303
      %323 = vmatmul.f32.gmra.mxu0 %v217
      %v324 = vpop.f32.mrf.mxu0
      %v325 = vadd.f32 0.0, %v324
      %326 = vdwg.mxu0
      %327 = vmatpush.msra.mxu0 0.0
      %328 = vmatpush.msra.mxu0 0.0
      %329 = vmatpush.msra.mxu0 0.0
      %330 = vmatpush.msra.mxu0 0.0
      %331 = vmatpush.msra.mxu0 0.0
      %332 = vmatpush.msra.mxu0 0.0
      %333 = vmatpush.msra.mxu0 0.0
      %334 = vmatpush.msra.mxu0 0.0
      %335 = vmatpush.msra.mxu0 0.0
      %336 = vmatpush.msra.mxu0 0.0
      %337 = vmatpush.msra.mxu0 0.0
      %338 = vmatpush.msra.mxu0 0.0
      %339 = vmatpush.msra.mxu0 0.0
      %340 = vmatpush.msra.mxu0 0.0
      %341 = vmatpush.msra.mxu0 0.0
      %342 = vmatpush.msra.mxu0 %v304
      %343 = vmatmul.f32.gmra.mxu0 %v217
      %v344 = vpop.f32.mrf.mxu0
      %v345 = vadd.f32 0.0, %v344
      %346 = vdwg.mxu0
      %347 = vmatpush.msra.mxu0 0.0
      %348 = vmatpush.msra.mxu0 0.0
      %349 = vmatpush.msra.mxu0 0.0
      %350 = vmatpush.msra.mxu0 0.0
      %351 = vmatpush.msra.mxu0 0.0
      %352 = vmatpush.msra.mxu0 0.0
      %353 = vmatpush.msra.mxu0 0.0
      %354 = vmatpush.msra.mxu0 0.0
      %355 = vmatpush.msra.mxu0 0.0
      %356 = vmatpush.msra.mxu0 0.0
      %357 = vmatpush.msra.mxu0 0.0
      %358 = vmatpush.msra.mxu0 0.0
      %359 = vmatpush.msra.mxu0 0.0
      %360 = vmatpush.msra.mxu0 0.0
      %361 = vmatpush.msra.mxu0 0.0
      %362 = vmatpush.msra.mxu0 %v305
      %363 = vmatmul.f32.gmra.mxu0 %v217
      %v364 = vpop.f32.mrf.mxu0
      %v365 = vadd.f32 0.0, %v364
      %366 = vdwg.mxu0
      %367 = vmatpush.msra.mxu0 0.0
      %368 = vmatpush.msra.mxu0 0.0
      %369 = vmatpush.msra.mxu0 0.0
      %370 = vmatpush.msra.mxu0 0.0
      %371 = vmatpush.msra.mxu0 0.0
      %372 = vmatpush.msra.mxu0 0.0
      %373 = vmatpush.msra.mxu0 0.0
      %374 = vmatpush.msra.mxu0 0.0
      %375 = vmatpush.msra.mxu0 0.0
      %376 = vmatpush.msra.mxu0 0.0
      %377 = vmatpush.msra.mxu0 0.0
      %378 = vmatpush.msra.mxu0 0.0
      %379 = vmatpush.msra.mxu0 0.0
      %380 = vmatpush.msra.mxu0 0.0
      %381 = vmatpush.msra.mxu0 0.0
      %382 = vmatpush.msra.mxu0 %v306
      %383 = vmatmul.f32.gmra.mxu0 %v217
      %v384 = vpop.f32.mrf.mxu0
      %v385 = vadd.f32 0.0, %v384
      %386 = vdwg.mxu0
      %v387 = vmul.f32 %v325, 0.95
      %v388 = vmul.f32 %v345, 0.95
      %v389 = vmul.f32 %v365, 0.95
      %v390 = vmul.f32 %v385, 0.95
      %v391 = vadd.f32 %v211, %v387
      %v392 = vadd.f32 %v212, %v388
      %v393 = vadd.f32 %v213, %v389
      %v394 = vadd.f32 %v214, %v390
      %v396 = vsel %vm215, %v210, 0
      %398 = vmatpush.msra.mxu0 0.0
      %399 = vmatpush.msra.mxu0 0.0
      %400 = vmatpush.msra.mxu0 0.0
      %401 = vmatpush.msra.mxu0 0.0
      %402 = vmatpush.msra.mxu0 0.0
      %403 = vmatpush.msra.mxu0 0.0
      %404 = vmatpush.msra.mxu0 0.0
      %405 = vmatpush.msra.mxu0 0.0
      %406 = vmatpush.msra.mxu0 0.0
      %407 = vmatpush.msra.mxu0 0.0
      %408 = vmatpush.msra.mxu0 0.0
      %409 = vmatpush.msra.mxu0 0.0
      %410 = vmatpush.msra.mxu0 0.0
      %411 = vmatpush.msra.mxu0 0.0
      %412 = vmatpush.msra.mxu0 0.0
      %413 = vmatpush.msra.mxu0 %v205
      %414 = vmatmul.f32.gmra.mxu0 %v396
      %v415 = vpop.f32.mrf.mxu0
      %v416 = vadd.f32 0.0, %v415
      %417 = vdwg.mxu0
      %418 = vmatpush.msra.mxu0 0.0
      %419 = vmatpush.msra.mxu0 0.0
      %420 = vmatpush.msra.mxu0 0.0
      %421 = vmatpush.msra.mxu0 0.0
      %422 = vmatpush.msra.mxu0 0.0
      %423 = vmatpush.msra.mxu0 0.0
      %424 = vmatpush.msra.mxu0 0.0
      %425 = vmatpush.msra.mxu0 0.0
      %426 = vmatpush.msra.mxu0 0.0
      %427 = vmatpush.msra.mxu0 0.0
      %428 = vmatpush.msra.mxu0 0.0
      %429 = vmatpush.msra.mxu0 0.0
      %430 = vmatpush.msra.mxu0 0.0
      %431 = vmatpush.msra.mxu0 0.0
      %432 = vmatpush.msra.mxu0 0.0
      %433 = vmatpush.msra.mxu0 %v206
      %434 = vmatmul.f32.gmra.mxu0 %v396
      %v435 = vpop.f32.mrf.mxu0
      %v436 = vadd.f32 0.0, %v435
      %437 = vdwg.mxu0
      %438 = vmatpush.msra.mxu0 0.0
      %439 = vmatpush.msra.mxu0 0.0
      %440 = vmatpush.msra.mxu0 0.0
      %441 = vmatpush.msra.mxu0 0.0
      %442 = vmatpush.msra.mxu0 0.0
      %443 = vmatpush.msra.mxu0 0.0
      %444 = vmatpush.msra.mxu0 0.0
      %445 = vmatpush.msra.mxu0 0.0
      %446 = vmatpush.msra.mxu0 0.0
      %447 = vmatpush.msra.mxu0 0.0
      %448 = vmatpush.msra.mxu0 0.0
      %449 = vmatpush.msra.mxu0 0.0
      %450 = vmatpush.msra.mxu0 0.0
      %451 = vmatpush.msra.mxu0 0.0
      %452 = vmatpush.msra.mxu0 0.0
      %453 = vmatpush.msra.mxu0 %v207
      %454 = vmatmul.f32.gmra.mxu0 %v396
      %v455 = vpop.f32.mrf.mxu0
      %v456 = vadd.f32 0.0, %v455
      %457 = vdwg.mxu0
      %458 = vmatpush.msra.mxu0 0.0
      %459 = vmatpush.msra.mxu0 0.0
      %460 = vmatpush.msra.mxu0 0.0
      %461 = vmatpush.msra.mxu0 0.0
      %462 = vmatpush.msra.mxu0 0.0
      %463 = vmatpush.msra.mxu0 0.0
      %464 = vmatpush.msra.mxu0 0.0
      %465 = vmatpush.msra.mxu0 0.0
      %466 = vmatpush.msra.mxu0 0.0
      %467 = vmatpush.msra.mxu0 0.0
      %468 = vmatpush.msra.mxu0 0.0
      %469 = vmatpush.msra.mxu0 0.0
      %470 = vmatpush.msra.mxu0 0.0
      %471 = vmatpush.msra.mxu0 0.0
      %472 = vmatpush.msra.mxu0 0.0
      %473 = vmatpush.msra.mxu0 %v208
      %474 = vmatmul.f32.gmra.mxu0 %v396
      %v475 = vpop.f32.mrf.mxu0
      %v476 = vadd.f32 0.0, %v475
      %477 = vdwg.mxu0
      %v478 = vmul.f32 %v416, 0.95
      %v479 = vmul.f32 %v436, 0.95
      %v480 = vmul.f32 %v456, 0.95
      %v481 = vmul.f32 %v476, 0.95
      %v482 = vadd.f32 %v211, %v478
      %v483 = vadd.f32 %v212, %v479
      %v484 = vadd.f32 %v213, %v480
      %v485 = vadd.f32 %v214, %v481
      %486 = vmatpush.msra.mxu0 0.0
      %487 = vmatpush.msra.mxu0 0.0
      %488 = vmatpush.msra.mxu0 0.0
      %489 = vmatpush.msra.mxu0 0.0
      %490 = vmatpush.msra.mxu0 0.0
      %491 = vmatpush.msra.mxu0 0.0
      %492 = vmatpush.msra.mxu0 0.0
      %493 = vmatpush.msra.mxu0 0.0
      %494 = vmatpush.msra.mxu0 0.0
      %495 = vmatpush.msra.mxu0 0.0
      %496 = vmatpush.msra.mxu0 0.0
      %497 = vmatpush.msra.mxu0 0.0
      %498 = vmatpush.msra.mxu0 0.0
      %499 = vmatpush.msra.mxu0 0.0
      %500 = vmatpush.msra.mxu0 0.0
      %501 = vmatpush.msra.mxu0 %v482
      %502 = vmatmul.f32.gmra.mxu0 %v396
      %v503 = vpop.f32.mrf.mxu0
      %v504 = vadd.f32 0.0, %v503
      %505 = vdwg.mxu0
      %506 = vmatpush.msra.mxu0 0.0
      %507 = vmatpush.msra.mxu0 0.0
      %508 = vmatpush.msra.mxu0 0.0
      %509 = vmatpush.msra.mxu0 0.0
      %510 = vmatpush.msra.mxu0 0.0
      %511 = vmatpush.msra.mxu0 0.0
      %512 = vmatpush.msra.mxu0 0.0
      %513 = vmatpush.msra.mxu0 0.0
      %514 = vmatpush.msra.mxu0 0.0
      %515 = vmatpush.msra.mxu0 0.0
      %516 = vmatpush.msra.mxu0 0.0
      %517 = vmatpush.msra.mxu0 0.0
      %518 = vmatpush.msra.mxu0 0.0
      %519 = vmatpush.msra.mxu0 0.0
      %520 = vmatpush.msra.mxu0 0.0
      %521 = vmatpush.msra.mxu0 %v483
      %522 = vmatmul.f32.gmra.mxu0 %v396
      %v523 = vpop.f32.mrf.mxu0
      %v524 = vadd.f32 0.0, %v523
      %525 = vdwg.mxu0
      %526 = vmatpush.msra.mxu0 0.0
      %527 = vmatpush.msra.mxu0 0.0
      %528 = vmatpush.msra.mxu0 0.0
      %529 = vmatpush.msra.mxu0 0.0
      %530 = vmatpush.msra.mxu0 0.0
      %531 = vmatpush.msra.mxu0 0.0
      %532 = vmatpush.msra.mxu0 0.0
      %533 = vmatpush.msra.mxu0 0.0
      %534 = vmatpush.msra.mxu0 0.0
      %535 = vmatpush.msra.mxu0 0.0
      %536 = vmatpush.msra.mxu0 0.0
      %537 = vmatpush.msra.mxu0 0.0
      %538 = vmatpush.msra.mxu0 0.0
      %539 = vmatpush.msra.mxu0 0.0
      %540 = vmatpush.msra.mxu0 0.0
      %541 = vmatpush.msra.mxu0 %v484
      %542 = vmatmul.f32.gmra.mxu0 %v396
      %v543 = vpop.f32.mrf.mxu0
      %v544 = vadd.f32 0.0, %v543
      %545 = vdwg.mxu0
      %546 = vmatpush.msra.mxu0 0.0
      %547 = vmatpush.msra.mxu0 0.0
      %548 = vmatpush.msra.mxu0 0.0
      %549 = vmatpush.msra.mxu0 0.0
      %550 = vmatpush.msra.mxu0 0.0
      %551 = vmatpush.msra.mxu0 0.0
      %552 = vmatpush.msra.mxu0 0.0
      %553 = vmatpush.msra.mxu0 0.0
      %554 = vmatpush.msra.mxu0 0.0
      %555 = vmatpush.msra.mxu0 0.0
      %556 = vmatpush.msra.mxu0 0.0
      %557 = vmatpush.msra.mxu0 0.0
      %558 = vmatpush.msra.mxu0 0.0
      %559 = vmatpush.msra.mxu0 0.0
      %560 = vmatpush.msra.mxu0 0.0
      %561 = vmatpush.msra.mxu0 %v485
      %562 = vmatmul.f32.gmra.mxu0 %v396
      %v563 = vpop.f32.mrf.mxu0
      %v564 = vadd.f32 0.0, %v563
      %565 = vdwg.mxu0
      %v566 = vmul.f32 %v504, 0.95
      %v567 = vmul.f32 %v524, 0.95
      %v568 = vmul.f32 %v544, 0.95
      %v569 = vmul.f32 %v564, 0.95
      %v570 = vadd.f32 %v211, %v566
      %v571 = vadd.f32 %v212, %v567
      %v572 = vadd.f32 %v213, %v568
      %v573 = vadd.f32 %v214, %v569
      %574 = vst [vmem:[%s204] sm:$0xff] %v303
      %575 = vst [vmem:[%s204 + $0x8] sm:$0xff] %v304
      %576 = vst [vmem:[%s204 + $0x10] sm:$0xff] %v305
      %577 = vst [vmem:[%s204 + $0x18] sm:$0xff] %v306
      %s578 = scalar_lea.vmem %s204, 32
      %579 = vst [vmem:[%s578] sm:$0xff] %v391
      %580 = vst [vmem:[%s578 + $0x8] sm:$0xff] %v392
      %581 = vst [vmem:[%s578 + $0x10] sm:$0xff] %v393
      %582 = vst [vmem:[%s578 + $0x18] sm:$0xff] %v394
      %s583 = scalar_lea.vmem %s204, 64
      %584 = vst [vmem:[%s583] sm:$0xff] %v482
      %585 = vst [vmem:[%s583 + $0x8] sm:$0xff] %v483
      %586 = vst [vmem:[%s583 + $0x10] sm:$0xff] %v484
      %587 = vst [vmem:[%s583 + $0x18] sm:$0xff] %v485
      %s588 = scalar_lea.vmem %s204, 96
      %589 = vst [vmem:[%s588] sm:$0xff] %v570
      %590 = vst [vmem:[%s588 + $0x8] sm:$0xff] %v571
      %591 = vst [vmem:[%s588 + $0x10] sm:$0xff] %v572
      %592 = vst [vmem:[%s588 + $0x18] sm:$0xff] %v573
      %p593 = scmp.lt.s32.totalorder %s14, 1
      %s594 = scalar_select %p593, %s14, 1
      %s595 = smul.addr %s594, 16
      %s596 = smul.addr %s595, 8
      %s597 = scalar_lea.vmem %s3, %s596
      // Predicated region
      $region33: #{sfadnet_forward.13} parent=31 // pred_check
        %p598 = pneg %p110
      $region34: #{sfadnet_forward.13} parent=31 // pred_check_branch
        %600 = sbr.rel (%p598) target = $region36
      $region35: #{sfadnet_forward.13} parent=31 // pred_region
        _
      $region36: #{sfadnet_forward.13} parent=31 // pred_fallthru
        _
    $region32: #{sfadnet_forward.13} parent=5 // pred_fallthru
      _
    %p601 = scmp.le.s32.totalorder 2, %s9
    // Predicated region
    $region37: #{sfadnet_forward.13} parent=5 // pred_check
      %p602 = pneg %p601
    $region38: #{sfadnet_forward.13} parent=5 // pred_check_branch
      %604 = sbr.rel (%p602) target = $region40
    $region39: #{sfadnet_forward.13} parent=5 // pred_region
      %s605 = ssub.s32 %s9, 2
      // Predicated region
      $region41: #{sfadnet_forward.13} parent=39 // pred_check
        %p606 = pneg %p116
      $region42: #{sfadnet_forward.13} parent=39 // pred_check_branch
        %608 = sbr.rel (%p606) target = $region44
      $region43: #{sfadnet_forward.13} parent=39 // pred_region
        %p609 = scmp.lt.s32.totalorder %s15, 1
        %s610 = scalar_select %p609, %s15, 1
        %s611 = smul.addr %s610, 16
        %s612 = smul.addr %s611, 8
        %s613 = scalar_lea.vmem %s3, %s612
      $region44: #{sfadnet_forward.13} parent=39 // pred_fallthru
        _
    $region40: #{sfadnet_forward.13} parent=5 // pred_fallthru
      _
  $region6: #{sfadnet_forward.13} parent=0 // loop_footer
    %s13 = sadd.s32 1, %s9
  $region7: #{sfadnet_forward.13} parent=0 // loop_footer_branch
    %8 = sbr.rel target = $region3
  $region8: #{sfadnet_forward.13} parent=0 // loop_exit
    _

// kernel: sfadnet_forward.15
$region0: #{sfadnet_forward.15}
  #allocation0 [shape = 'u32[]', space=smem, size = 0x4, offset = 0x4, fixed_abs, tag = 'smem constant byte address 0x4 - core index']
  #allocation1 [shape = 'u32[72,128]{1,0:T(1,128)}', space=vmem, size = 0x9000, scoped, tag = 'internal scratch']
  %s0 = inlined_call_operand.vmem [shape: f32[512,160], index: 0, kind: input, shape index: {}]
  %s1 = inlined_call_operand.vmem [shape: f32[160,64], index: 1, kind: input, shape index: {}]
  %s2 = inlined_call_operand.vmem [shape: f32[1,64], index: 2, kind: input, shape index: {}]
  %s3 = inlined_call_operand.vmem [shape: f32[512,64], index: 3, kind: output, shape index: {}]
  %s4 = sld [smem:[#allocation0]]
  $region22: #{sfadnet_forward.15} parent=0
    _
  %s6 = ssub.s32 1, %s4
  %s7 = scalar_select 0, %s6, %s4
  // Predicated region
  $region2: #{sfadnet_forward.15} parent=0 // pred_check
    _
  $region3: #{sfadnet_forward.15} parent=0 // pred_check_branch
    %9 = sbr.rel (0) target = $region5
  $region4: #{sfadnet_forward.15} parent=0 // pred_region
    _
  $region5: #{sfadnet_forward.15} parent=0 // pred_fallthru
    _
  // Predicated region
  $region6: #{sfadnet_forward.15} parent=0 // pred_check
    _
  $region7: #{sfadnet_forward.15} parent=0 // pred_check_branch
    %11 = sbr.rel (0) target = $region9
  $region8: #{sfadnet_forward.15} parent=0 // pred_region
    _
  $region9: #{sfadnet_forward.15} parent=0 // pred_fallthru
    _
  // Predicated region
  $region10: #{sfadnet_forward.15} parent=0 // pred_check
    _
  $region11: #{sfadnet_forward.15} parent=0 // pred_check_branch
    %13 = sbr.rel (0) target = $region13
  $region12: #{sfadnet_forward.15} parent=0 // pred_region
    _
  $region13: #{sfadnet_forward.15} parent=0 // pred_fallthru
    _
  %v14 = vld [vmem:[%s0] sm:$0xff]
  %v15 = vld [vmem:[%s0 + $0x8] sm:$0xff]
  %v16 = vld [vmem:[%s0 + $0x10] sm:$0xff]
  %v17 = vld [vmem:[%s0 + $0x18] sm:$0xff]
  %v18 = vld [vmem:[%s0 + $0x20] sm:$0xff]
  %v19 = vld [vmem:[%s0 + $0x28] sm:$0xff]
  %v20 = vld [vmem:[%s0 + $0x30] sm:$0xff]
  %v21 = vld [vmem:[%s0 + $0x38] sm:$0xff]
  %v22 = vld [vmem:[%s0 + $0x40] sm:$0xff]
  %v23 = vld [vmem:[%s0 + $0x48] sm:$0xff]
  %v24 = vld [vmem:[%s0 + $0x50] sm:$0xff]
  %v25 = vld [vmem:[%s0 + $0x58] sm:$0xff]
  %v26 = vld [vmem:[%s0 + $0x60] sm:$0xff]
  %v27 = vld [vmem:[%s0 + $0x68] sm:$0xff]
  %v28 = vld [vmem:[%s0 + $0x70] sm:$0xff]
  %v29 = vld [vmem:[%s0 + $0x78] sm:$0xff]
  %v30 = vld [vmem:[%s0 + $0x80] sm:$0xff]
  %v31 = vld [vmem:[%s0 + $0x88] sm:$0xff]
  %v32 = vld [vmem:[%s0 + $0x90] sm:$0xff]
  %v33 = vld [vmem:[%s0 + $0x98] sm:$0xff]
  %v34 = vld [vmem:[%s0 + $0xa0] sm:$0xff]
  %v35 = vld [vmem:[%s0 + $0xa8] sm:$0xff]
  %v36 = vld [vmem:[%s0 + $0xb0] sm:$0xff]
  %v37 = vld [vmem:[%s0 + $0xb8] sm:$0xff]
  %v38 = vld [vmem:[%s0 + $0xc0] sm:$0xff]
  %v39 = vld [vmem:[%s0 + $0xc8] sm:$0xff]
  %v40 = vld [vmem:[%s0 + $0xd0] sm:$0xff]
  %v41 = vld [vmem:[%s0 + $0xd8] sm:$0xff]
  %v42 = vld [vmem:[%s0 + $0xe0] sm:$0xff]
  %v43 = vld [vmem:[%s0 + $0xe8] sm:$0xff]
  %v44 = vld [vmem:[%s0 + $0xf0] sm:$0xff]
  %v45 = vld [vmem:[%s0 + $0xf8] sm:$0xff]
  %v46 = vld [vmem:[%s0 + $0x100] sm:$0xff]
  %v47 = vld [vmem:[%s0 + $0x108] sm:$0xff]
  %v48 = vld [vmem:[%s0 + $0x110] sm:$0xff]
  %v49 = vld [vmem:[%s0 + $0x118] sm:$0xff]
  %v50 = vld [vmem:[%s0 + $0x120] sm:$0xff]
  %v51 = vld [vmem:[%s0 + $0x128] sm:$0xff]
  %v52 = vld [vmem:[%s0 + $0x130] sm:$0xff]
  %v53 = vld [vmem:[%s0 + $0x138] sm:$0xff]
  %v54 = vld [vmem:[%s0 + $0x140] sm:$0xff]
  %v55 = vld [vmem:[%s0 + $0x148] sm:$0xff]
  %v56 = vld [vmem:[%s0 + $0x150] sm:$0xff]
  %v57 = vld [vmem:[%s0 + $0x158] sm:$0xff]
  %v58 = vld [vmem:[%s0 + $0x160] sm:$0xff]
  %v59 = vld [vmem:[%s0 + $0x168] sm:$0xff]
  %v60 = vld [vmem:[%s0 + $0x170] sm:$0xff]
  %v61 = vld [vmem:[%s0 + $0x178] sm:$0xff]
  %v62 = vld [vmem:[%s0 + $0x180] sm:$0xff]
  %v63 = vld [vmem:[%s0 + $0x188] sm:$0xff]
  %v64 = vld [vmem:[%s0 + $0x190] sm:$0xff]
  %v65 = vld [vmem:[%s0 + $0x198] sm:$0xff]
  %v66 = vld [vmem:[%s0 + $0x1a0] sm:$0xff]
  %v67 = vld [vmem:[%s0 + $0x1a8] sm:$0xff]
  %v68 = vld [vmem:[%s0 + $0x1b0] sm:$0xff]
  %v69 = vld [vmem:[%s0 + $0x1b8] sm:$0xff]
  %v70 = vld [vmem:[%s0 + $0x1c0] sm:$0xff]
  %v71 = vld [vmem:[%s0 + $0x1c8] sm:$0xff]
  %v72 = vld [vmem:[%s0 + $0x1d0] sm:$0xff]
  %v73 = vld [vmem:[%s0 + $0x1d8] sm:$0xff]
  %v74 = vld [vmem:[%s0 + $0x1e0] sm:$0xff]
  %v75 = vld [vmem:[%s0 + $0x1e8] sm:$0xff]
  %v76 = vld [vmem:[%s0 + $0x1f0] sm:$0xff]
  %v77 = vld [vmem:[%s0 + $0x1f8] sm:$0xff]
  %v78 = vld [vmem:[%s0 + $0x200] sm:$0xff]
  %v79 = vld [vmem:[%s0 + $0x208] sm:$0xff]
  %v80 = vld [vmem:[%s0 + $0x210] sm:$0xff]
  %v81 = vld [vmem:[%s0 + $0x218] sm:$0xff]
  %v82 = vld [vmem:[%s0 + $0x220] sm:$0xff]
  %v83 = vld [vmem:[%s0 + $0x228] sm:$0xff]
  %v84 = vld [vmem:[%s0 + $0x230] sm:$0xff]
  %v85 = vld [vmem:[%s0 + $0x238] sm:$0xff]
  %v86 = vld [vmem:[%s0 + $0x240] sm:$0xff]
  %v87 = vld [vmem:[%s0 + $0x248] sm:$0xff]
  %v88 = vld [vmem:[%s0 + $0x250] sm:$0xff]
  %v89 = vld [vmem:[%s0 + $0x258] sm:$0xff]
  %v90 = vld [vmem:[%s0 + $0x260] sm:$0xff]
  %v91 = vld [vmem:[%s0 + $0x268] sm:$0xff]
  %v92 = vld [vmem:[%s0 + $0x270] sm:$0xff]
  %v93 = vld [vmem:[%s0 + $0x278] sm:$0xff]
  %v94 = vld [vmem:[%s0 + $0x280] sm:$0xff]
  %v95 = vld [vmem:[%s0 + $0x288] sm:$0xff]
  %v96 = vld [vmem:[%s0 + $0x290] sm:$0xff]
  %v97 = vld [vmem:[%s0 + $0x298] sm:$0xff]
  %v98 = vld [vmem:[%s0 + $0x2a0] sm:$0xff]
  %v99 = vld [vmem:[%s0 + $0x2a8] sm:$0xff]
  %v100 = vld [vmem:[%s0 + $0x2b0] sm:$0xff]
  %v101 = vld [vmem:[%s0 + $0x2b8] sm:$0xff]
  %v102 = vld [vmem:[%s0 + $0x2c0] sm:$0xff]
  %v103 = vld [vmem:[%s0 + $0x2c8] sm:$0xff]
  %v104 = vld [vmem:[%s0 + $0x2d0] sm:$0xff]
  %v105 = vld [vmem:[%s0 + $0x2d8] sm:$0xff]
  %v106 = vld [vmem:[%s0 + $0x2e0] sm:$0xff]
  %v107 = vld [vmem:[%s0 + $0x2e8] sm:$0xff]
  %v108 = vld [vmem:[%s0 + $0x2f0] sm:$0xff]
  %v109 = vld [vmem:[%s0 + $0x2f8] sm:$0xff]
  %v110 = vld [vmem:[%s0 + $0x300] sm:$0xff]
  %v111 = vld [vmem:[%s0 + $0x308] sm:$0xff]
  %v112 = vld [vmem:[%s0 + $0x310] sm:$0xff]
  %v113 = vld [vmem:[%s0 + $0x318] sm:$0xff]
  %v114 = vld [vmem:[%s0 + $0x320] sm:$0xff]
  %v115 = vld [vmem:[%s0 + $0x328] sm:$0xff]
  %v116 = vld [vmem:[%s0 + $0x330] sm:$0xff]
  %v117 = vld [vmem:[%s0 + $0x338] sm:$0xff]
  %v118 = vld [vmem:[%s0 + $0x340] sm:$0xff]
  %v119 = vld [vmem:[%s0 + $0x348] sm:$0xff]
  %v120 = vld [vmem:[%s0 + $0x350] sm:$0xff]
  %v121 = vld [vmem:[%s0 + $0x358] sm:$0xff]
  %v122 = vld [vmem:[%s0 + $0x360] sm:$0xff]
  %v123 = vld [vmem:[%s0 + $0x368] sm:$0xff]
  %v124 = vld [vmem:[%s0 + $0x370] sm:$0xff]
  %v125 = vld [vmem:[%s0 + $0x378] sm:$0xff]
  %v126 = vld [vmem:[%s0 + $0x380] sm:$0xff]
  %v127 = vld [vmem:[%s0 + $0x388] sm:$0xff]
  %v128 = vld [vmem:[%s0 + $0x390] sm:$0xff]
  %v129 = vld [vmem:[%s0 + $0x398] sm:$0xff]
  %v130 = vld [vmem:[%s0 + $0x3a0] sm:$0xff]
  %v131 = vld [vmem:[%s0 + $0x3a8] sm:$0xff]
  %v132 = vld [vmem:[%s0 + $0x3b0] sm:$0xff]
  %v133 = vld [vmem:[%s0 + $0x3b8] sm:$0xff]
  %v134 = vld [vmem:[%s0 + $0x3c0] sm:$0xff]
  %v135 = vld [vmem:[%s0 + $0x3c8] sm:$0xff]
  %v136 = vld [vmem:[%s0 + $0x3d0] sm:$0xff]
  %v137 = vld [vmem:[%s0 + $0x3d8] sm:$0xff]
  %v138 = vld [vmem:[%s0 + $0x3e0] sm:$0xff]
  %v139 = vld [vmem:[%s0 + $0x3e8] sm:$0xff]
  %v140 = vld [vmem:[%s0 + $0x3f0] sm:$0xff]
  %v141 = vld [vmem:[%s0 + $0x3f8] sm:$0xff]
  %v142 = vld [vmem:[%s1] sm:$0xff]
  %v143 = vld [vmem:[%s1 + $0x8] sm:$0xff]
  %v144 = vld [vmem:[%s1 + $0x10] sm:$0xff]
  %v145 = vld [vmem:[%s1 + $0x18] sm:$0xff]
  %v146 = vld [vmem:[%s1 + $0x20] sm:$0xff]
  %v147 = vld [vmem:[%s1 + $0x28] sm:$0xff]
  %v148 = vld [vmem:[%s1 + $0x30] sm:$0xff]
  %v149 = vld [vmem:[%s1 + $0x38] sm:$0xff]
  %v150 = vld [vmem:[%s1 + $0x40] sm:$0xff]
  %v151 = vld [vmem:[%s1 + $0x48] sm:$0xff]
  %v152 = vld [vmem:[%s1 + $0x50] sm:$0xff]
  %v153 = vld [vmem:[%s1 + $0x58] sm:$0xff]
  %v154 = vld [vmem:[%s1 + $0x60] sm:$0xff]
  %v155 = vld [vmem:[%s1 + $0x68] sm:$0xff]
  %v156 = vld [vmem:[%s1 + $0x70] sm:$0xff]
  %v157 = vld [vmem:[%s1 + $0x78] sm:$0xff]
  %v158 = vld [vmem:[%s1 + $0x80] sm:$0xff]
  %v159 = vld [vmem:[%s1 + $0x88] sm:$0xff]
  %v160 = vld [vmem:[%s1 + $0x90] sm:$0xff]
  %v161 = vld [vmem:[%s1 + $0x98] sm:$0xff]
  %v162 = vld [vmem:[%s2] sm:$0x1]
  %v164 = vperm.slane %v162, 0
  %vm166 = vcmask 261120
  %v168 = vsel %vm166, %v15, 0
  %v171 = vsel %vm166, %v17, 0
  %v174 = vsel %vm166, %v19, 0
  %v177 = vsel %vm166, %v21, 0
  %v180 = vsel %vm166, %v23, 0
  %v183 = vsel %vm166, %v25, 0
  %v186 = vsel %vm166, %v27, 0
  %v189 = vsel %vm166, %v29, 0
  %v192 = vsel %vm166, %v31, 0
  %v195 = vsel %vm166, %v33, 0
  %v198 = vsel %vm166, %v35, 0
  %v201 = vsel %vm166, %v37, 0
  %v204 = vsel %vm166, %v39, 0
  %v207 = vsel %vm166, %v41, 0
  %v210 = vsel %vm166, %v43, 0
  %v213 = vsel %vm166, %v45, 0
  %v216 = vsel %vm166, %v47, 0
  %v219 = vsel %vm166, %v49, 0
  %v222 = vsel %vm166, %v51, 0
  %v225 = vsel %vm166, %v53, 0
  %v228 = vsel %vm166, %v55, 0
  %v231 = vsel %vm166, %v57, 0
  %v234 = vsel %vm166, %v59, 0
  %v237 = vsel %vm166, %v61, 0
  %v240 = vsel %vm166, %v63, 0
  %v243 = vsel %vm166, %v65, 0
  %v246 = vsel %vm166, %v67, 0
  %v249 = vsel %vm166, %v69, 0
  %v252 = vsel %vm166, %v71, 0
  %v255 = vsel %vm166, %v73, 0
  %v258 = vsel %vm166, %v75, 0
  %v261 = vsel %vm166, %v77, 0
  %v264 = vsel %vm166, %v79, 0
  %v267 = vsel %vm166, %v81, 0
  %v270 = vsel %vm166, %v83, 0
  %v273 = vsel %vm166, %v85, 0
  %v276 = vsel %vm166, %v87, 0
  %v279 = vsel %vm166, %v89, 0
  %v282 = vsel %vm166, %v91, 0
  %v285 = vsel %vm166, %v93, 0
  %v288 = vsel %vm166, %v95, 0
  %v291 = vsel %vm166, %v97, 0
  %v294 = vsel %vm166, %v99, 0
  %v297 = vsel %vm166, %v101, 0
  %v300 = vsel %vm166, %v103, 0
  %v303 = vsel %vm166, %v105, 0
  %v306 = vsel %vm166, %v107, 0
  %v309 = vsel %vm166, %v109, 0
  %v312 = vsel %vm166, %v111, 0
  %v315 = vsel %vm166, %v113, 0
  %v318 = vsel %vm166, %v115, 0
  %v321 = vsel %vm166, %v117, 0
  %v324 = vsel %vm166, %v119, 0
  %v327 = vsel %vm166, %v121, 0
  %v330 = vsel %vm166, %v123, 0
  %v333 = vsel %vm166, %v125, 0
  %v336 = vsel %vm166, %v127, 0
  %v339 = vsel %vm166, %v129, 0
  %v342 = vsel %vm166, %v131, 0
  %v345 = vsel %vm166, %v133, 0
  %v348 = vsel %vm166, %v135, 0
  %v351 = vsel %vm166, %v137, 0
  %v354 = vsel %vm166, %v139, 0
  %v357 = vsel %vm166, %v141, 0
  %359 = vmatpush.msra.mxu0 %v157
  %360 = vmatpush.msra.mxu0 %v156
  %361 = vmatpush.msra.mxu0 %v155
  %362 = vmatpush.msra.mxu0 %v154
  %363 = vmatpush.msra.mxu0 %v153
  %364 = vmatpush.msra.mxu0 %v152
  %365 = vmatpush.msra.mxu0 %v151
  %366 = vmatpush.msra.mxu0 %v150
  %367 = vmatpush.msra.mxu0 %v149
  %368 = vmatpush.msra.mxu0 %v148
  %369 = vmatpush.msra.mxu0 %v147
  %370 = vmatpush.msra.mxu0 %v146
  %371 = vmatpush.msra.mxu0 %v145
  %372 = vmatpush.msra.mxu0 %v144
  %373 = vmatpush.msra.mxu0 %v143
  %374 = vmatpush.msra.mxu0 %v142
  %375 = vmatmul.f32.gmra.mxu0 %v14
  %v376 = vpop.f32.mrf.mxu0
  %v377 = vadd.f32 %v164, %v376
  %378 = vmatmul.f32.gmra.mxu0 %v16
  %v379 = vpop.f32.mrf.mxu0
  %v380 = vadd.f32 %v164, %v379
  %381 = vmatmul.f32.gmra.mxu0 %v18
  %v382 = vpop.f32.mrf.mxu0
  %v383 = vadd.f32 %v164, %v382
  %384 = vmatmul.f32.gmra.mxu0 %v20
  %v385 = vpop.f32.mrf.mxu0
  %v386 = vadd.f32 %v164, %v385
  %387 = vmatmul.f32.gmra.mxu0 %v22
  %v388 = vpop.f32.mrf.mxu0
  %v389 = vadd.f32 %v164, %v388
  %390 = vmatmul.f32.gmra.mxu0 %v24
  %v391 = vpop.f32.mrf.mxu0
  %v392 = vadd.f32 %v164, %v391
  %393 = vmatmul.f32.gmra.mxu0 %v26
  %v394 = vpop.f32.mrf.mxu0
  %v395 = vadd.f32 %v164, %v394
  %396 = vmatmul.f32.gmra.mxu0 %v28
  %v397 = vpop.f32.mrf.mxu0
  %v398 = vadd.f32 %v164, %v397
  %399 = vmatmul.f32.gmra.mxu0 %v30
  %v400 = vpop.f32.mrf.mxu0
  %v401 = vadd.f32 %v164, %v400
  %402 = vmatmul.f32.gmra.mxu0 %v32
  %v403 = vpop.f32.mrf.mxu0
  %v404 = vadd.f32 %v164, %v403
  %405 = vmatmul.f32.gmra.mxu0 %v34
  %v406 = vpop.f32.mrf.mxu0
  %v407 = vadd.f32 %v164, %v406
  %408 = vmatmul.f32.gmra.mxu0 %v36
  %v409 = vpop.f32.mrf.mxu0
  %v410 = vadd.f32 %v164, %v409
  %411 = vmatmul.f32.gmra.mxu0 %v38
  %v412 = vpop.f32.mrf.mxu0
  %v413 = vadd.f32 %v164, %v412
  %414 = vmatmul.f32.gmra.mxu0 %v40
  %v415 = vpop.f32.mrf.mxu0
  %v416 = vadd.f32 %v164, %v415
  %417 = vmatmul.f32.gmra.mxu0 %v42
  %v418 = vpop.f32.mrf.mxu0
  %v419 = vadd.f32 %v164, %v418
  %420 = vmatmul.f32.gmra.mxu0 %v44
  %v421 = vpop.f32.mrf.mxu0
  %v422 = vadd.f32 %v164, %v421
  %423 = vmatmul.f32.gmra.mxu0 %v46
  %v424 = vpop.f32.mrf.mxu0
  %v425 = vadd.f32 %v164, %v424
  %426 = vmatmul.f32.gmra.mxu0 %v48
  %v427 = vpop.f32.mrf.mxu0
  %v428 = vadd.f32 %v164, %v427
  %429 = vmatmul.f32.gmra.mxu0 %v50
  %v430 = vpop.f32.mrf.mxu0
  %v431 = vadd.f32 %v164, %v430
  %432 = vmatmul.f32.gmra.mxu0 %v52
  %v433 = vpop.f32.mrf.mxu0
  %v434 = vadd.f32 %v164, %v433
  %435 = vmatmul.f32.gmra.mxu0 %v54
  %v436 = vpop.f32.mrf.mxu0
  %v437 = vadd.f32 %v164, %v436
  %438 = vmatmul.f32.gmra.mxu0 %v56
  %v439 = vpop.f32.mrf.mxu0
  %v440 = vadd.f32 %v164, %v439
  %441 = vmatmul.f32.gmra.mxu0 %v58
  %v442 = vpop.f32.mrf.mxu0
  %v443 = vadd.f32 %v164, %v442
  %444 = vmatmul.f32.gmra.mxu0 %v60
  %v445 = vpop.f32.mrf.mxu0
  %v446 = vadd.f32 %v164, %v445
  %447 = vmatmul.f32.gmra.mxu0 %v62
  %v448 = vpop.f32.mrf.mxu0
  %v449 = vadd.f32 %v164, %v448
  %450 = vmatmul.f32.gmra.mxu0 %v64
  %v451 = vpop.f32.mrf.mxu0
  %v452 = vadd.f32 %v164, %v451
  %453 = vmatmul.f32.gmra.mxu0 %v66
  %v454 = vpop.f32.mrf.mxu0
  %v455 = vadd.f32 %v164, %v454
  %456 = vmatmul.f32.gmra.mxu0 %v68
  %v457 = vpop.f32.mrf.mxu0
  %v458 = vadd.f32 %v164, %v457
  %459 = vmatmul.f32.gmra.mxu0 %v70
  %v460 = vpop.f32.mrf.mxu0
  %v461 = vadd.f32 %v164, %v460
  %462 = vmatmul.f32.gmra.mxu0 %v72
  %v463 = vpop.f32.mrf.mxu0
  %v464 = vadd.f32 %v164, %v463
  %465 = vmatmul.f32.gmra.mxu0 %v74
  %v466 = vpop.f32.mrf.mxu0
  %v467 = vadd.f32 %v164, %v466
  %468 = vmatmul.f32.gmra.mxu0 %v76
  %v469 = vpop.f32.mrf.mxu0
  %v470 = vadd.f32 %v164, %v469
  %471 = vmatmul.f32.gmra.mxu0 %v78
  %v472 = vpop.f32.mrf.mxu0
  %v473 = vadd.f32 %v164, %v472
  %474 = vmatmul.f32.gmra.mxu0 %v80
  %v475 = vpop.f32.mrf.mxu0
  %v476 = vadd.f32 %v164, %v475
  %477 = vmatmul.f32.gmra.mxu0 %v82
  %v478 = vpop.f32.mrf.mxu0
  %v479 = vadd.f32 %v164, %v478
  %480 = vmatmul.f32.gmra.mxu0 %v84
  %v481 = vpop.f32.mrf.mxu0
  %v482 = vadd.f32 %v164, %v481
  %483 = vmatmul.f32.gmra.mxu0 %v86
  %v484 = vpop.f32.mrf.mxu0
  %v485 = vadd.f32 %v164, %v484
  %486 = vmatmul.f32.gmra.mxu0 %v88
  %v487 = vpop.f32.mrf.mxu0
  %v488 = vadd.f32 %v164, %v487
  %489 = vmatmul.f32.gmra.mxu0 %v90
  %v490 = vpop.f32.mrf.mxu0
  %v491 = vadd.f32 %v164, %v490
  %492 = vmatmul.f32.gmra.mxu0 %v92
  %v493 = vpop.f32.mrf.mxu0
  %v494 = vadd.f32 %v164, %v493
  %495 = vmatmul.f32.gmra.mxu0 %v94
  %v496 = vpop.f32.mrf.mxu0
  %v497 = vadd.f32 %v164, %v496
  %498 = vmatmul.f32.gmra.mxu0 %v96
  %v499 = vpop.f32.mrf.mxu0
  %v500 = vadd.f32 %v164, %v499
  %501 = vmatmul.f32.gmra.mxu0 %v98
  %v502 = vpop.f32.mrf.mxu0
  %v503 = vadd.f32 %v164, %v502
  %504 = vmatmul.f32.gmra.mxu0 %v100
  %v505 = vpop.f32.mrf.mxu0
  %v506 = vadd.f32 %v164, %v505
  %507 = vmatmul.f32.gmra.mxu0 %v102
  %v508 = vpop.f32.mrf.mxu0
  %v509 = vadd.f32 %v164, %v508
  %510 = vmatmul.f32.gmra.mxu0 %v104
  %v511 = vpop.f32.mrf.mxu0
  %v512 = vadd.f32 %v164, %v511
  %513 = vmatmul.f32.gmra.mxu0 %v106
  %v514 = vpop.f32.mrf.mxu0
  %v515 = vadd.f32 %v164, %v514
  %516 = vmatmul.f32.gmra.mxu0 %v108
  %v517 = vpop.f32.mrf.mxu0
  %v518 = vadd.f32 %v164, %v517
  %519 = vmatmul.f32.gmra.mxu0 %v110
  %v520 = vpop.f32.mrf.mxu0
  %v521 = vadd.f32 %v164, %v520
  %522 = vmatmul.f32.gmra.mxu0 %v112
  %v523 = vpop.f32.mrf.mxu0
  %v524 = vadd.f32 %v164, %v523
  %525 = vmatmul.f32.gmra.mxu0 %v114
  %v526 = vpop.f32.mrf.mxu0
  %v527 = vadd.f32 %v164, %v526
  %528 = vmatmul.f32.gmra.mxu0 %v116
  %v529 = vpop.f32.mrf.mxu0
  %v530 = vadd.f32 %v164, %v529
  %531 = vmatmul.f32.gmra.mxu0 %v118
  %v532 = vpop.f32.mrf.mxu0
  %v533 = vadd.f32 %v164, %v532
  %534 = vmatmul.f32.gmra.mxu0 %v120
  %v535 = vpop.f32.mrf.mxu0
  %v536 = vadd.f32 %v164, %v535
  %537 = vmatmul.f32.gmra.mxu0 %v122
  %v538 = vpop.f32.mrf.mxu0
  %v539 = vadd.f32 %v164, %v538
  %540 = vmatmul.f32.gmra.mxu0 %v124
  %v541 = vpop.f32.mrf.mxu0
  %v542 = vadd.f32 %v164, %v541
  %543 = vmatmul.f32.gmra.mxu0 %v126
  %v544 = vpop.f32.mrf.mxu0
  %v545 = vadd.f32 %v164, %v544
  %546 = vmatmul.f32.gmra.mxu0 %v128
  %v547 = vpop.f32.mrf.mxu0
  %v548 = vadd.f32 %v164, %v547
  %549 = vmatmul.f32.gmra.mxu0 %v130
  %v550 = vpop.f32.mrf.mxu0
  %v551 = vadd.f32 %v164, %v550
  %552 = vmatmul.f32.gmra.mxu0 %v132
  %v553 = vpop.f32.mrf.mxu0
  %v554 = vadd.f32 %v164, %v553
  %555 = vmatmul.f32.gmra.mxu0 %v134
  %v556 = vpop.f32.mrf.mxu0
  %v557 = vadd.f32 %v164, %v556
  %558 = vmatmul.f32.gmra.mxu0 %v136
  %v559 = vpop.f32.mrf.mxu0
  %v560 = vadd.f32 %v164, %v559
  %561 = vmatmul.f32.gmra.mxu0 %v138
  %v562 = vpop.f32.mrf.mxu0
  %v563 = vadd.f32 %v164, %v562
  %564 = vmatmul.f32.gmra.mxu0 %v140
  %v565 = vpop.f32.mrf.mxu0
  %v566 = vadd.f32 %v164, %v565
  %567 = vdwg.mxu0
  %568 = vmatpush.msra.mxu0 0.0
  %569 = vmatpush.msra.mxu0 0.0
  %570 = vmatpush.msra.mxu0 0.0
  %571 = vmatpush.msra.mxu0 0.0
  %572 = vmatpush.msra.mxu0 0.0
  %573 = vmatpush.msra.mxu0 0.0
  %574 = vmatpush.msra.mxu0 0.0
  %575 = vmatpush.msra.mxu0 0.0
  %576 = vmatpush.msra.mxu0 0.0
  %577 = vmatpush.msra.mxu0 0.0
  %578 = vmatpush.msra.mxu0 0.0
  %579 = vmatpush.msra.mxu0 0.0
  %580 = vmatpush.msra.mxu0 %v161
  %581 = vmatpush.msra.mxu0 %v160
  %582 = vmatpush.msra.mxu0 %v159
  %583 = vmatpush.msra.mxu0 %v158
  %584 = vmatmul.f32.gmra.mxu0 %v168
  %v585 = vpop.f32.mrf.mxu0
  %v586 = vadd.f32 %v377, %v585
  %587 = vmatmul.f32.gmra.mxu0 %v171
  %v588 = vpop.f32.mrf.mxu0
  %v589 = vadd.f32 %v380, %v588
  %590 = vmatmul.f32.gmra.mxu0 %v174
  %v591 = vpop.f32.mrf.mxu0
  %v592 = vadd.f32 %v383, %v591
  %593 = vmatmul.f32.gmra.mxu0 %v177
  %v594 = vpop.f32.mrf.mxu0
  %v595 = vadd.f32 %v386, %v594
  %596 = vmatmul.f32.gmra.mxu0 %v180
  %v597 = vpop.f32.mrf.mxu0
  %v598 = vadd.f32 %v389, %v597
  %599 = vmatmul.f32.gmra.mxu0 %v183
  %v600 = vpop.f32.mrf.mxu0
  %v601 = vadd.f32 %v392, %v600
  %602 = vmatmul.f32.gmra.mxu0 %v186
  %v603 = vpop.f32.mrf.mxu0
  %v604 = vadd.f32 %v395, %v603
  %605 = vmatmul.f32.gmra.mxu0 %v189
  %v606 = vpop.f32.mrf.mxu0
  %v607 = vadd.f32 %v398, %v606
  %608 = vmatmul.f32.gmra.mxu0 %v192
  %v609 = vpop.f32.mrf.mxu0
  %v610 = vadd.f32 %v401, %v609
  %611 = vmatmul.f32.gmra.mxu0 %v195
  %v612 = vpop.f32.mrf.mxu0
  %v613 = vadd.f32 %v404, %v612
  %614 = vmatmul.f32.gmra.mxu0 %v198
  %v615 = vpop.f32.mrf.mxu0
  %v616 = vadd.f32 %v407, %v615
  %617 = vmatmul.f32.gmra.mxu0 %v201
  %v618 = vpop.f32.mrf.mxu0
  %v619 = vadd.f32 %v410, %v618
  %620 = vmatmul.f32.gmra.mxu0 %v204
  %v621 = vpop.f32.mrf.mxu0
  %v622 = vadd.f32 %v413, %v621
  %623 = vmatmul.f32.gmra.mxu0 %v207
  %v624 = vpop.f32.mrf.mxu0
  %v625 = vadd.f32 %v416, %v624
  %626 = vmatmul.f32.gmra.mxu0 %v210
  %v627 = vpop.f32.mrf.mxu0
  %v628 = vadd.f32 %v419, %v627
  %629 = vmatmul.f32.gmra.mxu0 %v213
  %v630 = vpop.f32.mrf.mxu0
  %v631 = vadd.f32 %v422, %v630
  %632 = vmatmul.f32.gmra.mxu0 %v216
  %v633 = vpop.f32.mrf.mxu0
  %v634 = vadd.f32 %v425, %v633
  %635 = vmatmul.f32.gmra.mxu0 %v219
  %v636 = vpop.f32.mrf.mxu0
  %v637 = vadd.f32 %v428, %v636
  %638 = vmatmul.f32.gmra.mxu0 %v222
  %v639 = vpop.f32.mrf.mxu0
  %v640 = vadd.f32 %v431, %v639
  %641 = vmatmul.f32.gmra.mxu0 %v225
  %v642 = vpop.f32.mrf.mxu0
  %v643 = vadd.f32 %v434, %v642
  %644 = vmatmul.f32.gmra.mxu0 %v228
  %v645 = vpop.f32.mrf.mxu0
  %v646 = vadd.f32 %v437, %v645
  %647 = vmatmul.f32.gmra.mxu0 %v231
  %v648 = vpop.f32.mrf.mxu0
  %v649 = vadd.f32 %v440, %v648
  %650 = vmatmul.f32.gmra.mxu0 %v234
  %v651 = vpop.f32.mrf.mxu0
  %v652 = vadd.f32 %v443, %v651
  %653 = vmatmul.f32.gmra.mxu0 %v237
  %v654 = vpop.f32.mrf.mxu0
  %v655 = vadd.f32 %v446, %v654
  %656 = vmatmul.f32.gmra.mxu0 %v240
  %v657 = vpop.f32.mrf.mxu0
  %v658 = vadd.f32 %v449, %v657
  %659 = vmatmul.f32.gmra.mxu0 %v243
  %v660 = vpop.f32.mrf.mxu0
  %v661 = vadd.f32 %v452, %v660
  %662 = vmatmul.f32.gmra.mxu0 %v246
  %v663 = vpop.f32.mrf.mxu0
  %v664 = vadd.f32 %v455, %v663
  %665 = vmatmul.f32.gmra.mxu0 %v249
  %v666 = vpop.f32.mrf.mxu0
  %v667 = vadd.f32 %v458, %v666
  %668 = vmatmul.f32.gmra.mxu0 %v252
  %v669 = vpop.f32.mrf.mxu0
  %v670 = vadd.f32 %v461, %v669
  %671 = vmatmul.f32.gmra.mxu0 %v255
  %v672 = vpop.f32.mrf.mxu0
  %v673 = vadd.f32 %v464, %v672
  %674 = vmatmul.f32.gmra.mxu0 %v258
  %v675 = vpop.f32.mrf.mxu0
  %v676 = vadd.f32 %v467, %v675
  %677 = vmatmul.f32.gmra.mxu0 %v261
  %v678 = vpop.f32.mrf.mxu0
  %v679 = vadd.f32 %v470, %v678
  %680 = vmatmul.f32.gmra.mxu0 %v264
  %v681 = vpop.f32.mrf.mxu0
  %v682 = vadd.f32 %v473, %v681
  %683 = vmatmul.f32.gmra.mxu0 %v267
  %v684 = vpop.f32.mrf.mxu0
  %v685 = vadd.f32 %v476, %v684
  %686 = vmatmul.f32.gmra.mxu0 %v270
  %v687 = vpop.f32.mrf.mxu0
  %v688 = vadd.f32 %v479, %v687
  %689 = vmatmul.f32.gmra.mxu0 %v273
  %v690 = vpop.f32.mrf.mxu0
  %v691 = vadd.f32 %v482, %v690
  %692 = vmatmul.f32.gmra.mxu0 %v276
  %v693 = vpop.f32.mrf.mxu0
  %v694 = vadd.f32 %v485, %v693
  %695 = vmatmul.f32.gmra.mxu0 %v279
  %v696 = vpop.f32.mrf.mxu0
  %v697 = vadd.f32 %v488, %v696
  %698 = vmatmul.f32.gmra.mxu0 %v282
  %v699 = vpop.f32.mrf.mxu0
  %v700 = vadd.f32 %v491, %v699
  %701 = vmatmul.f32.gmra.mxu0 %v285
  %v702 = vpop.f32.mrf.mxu0
  %v703 = vadd.f32 %v494, %v702
  %704 = vmatmul.f32.gmra.mxu0 %v288
  %v705 = vpop.f32.mrf.mxu0
  %v706 = vadd.f32 %v497, %v705
  %707 = vmatmul.f32.gmra.mxu0 %v291
  %v708 = vpop.f32.mrf.mxu0
  %v709 = vadd.f32 %v500, %v708
  %710 = vmatmul.f32.gmra.mxu0 %v294
  %v711 = vpop.f32.mrf.mxu0
  %v712 = vadd.f32 %v503, %v711
  %713 = vmatmul.f32.gmra.mxu0 %v297
  %v714 = vpop.f32.mrf.mxu0
  %v715 = vadd.f32 %v506, %v714
  %716 = vmatmul.f32.gmra.mxu0 %v300
  %v717 = vpop.f32.mrf.mxu0
  %v718 = vadd.f32 %v509, %v717
  %719 = vmatmul.f32.gmra.mxu0 %v303
  %v720 = vpop.f32.mrf.mxu0
  %v721 = vadd.f32 %v512, %v720
  %722 = vmatmul.f32.gmra.mxu0 %v306
  %v723 = vpop.f32.mrf.mxu0
  %v724 = vadd.f32 %v515, %v723
  %725 = vmatmul.f32.gmra.mxu0 %v309
  %v726 = vpop.f32.mrf.mxu0
  %v727 = vadd.f32 %v518, %v726
  %728 = vmatmul.f32.gmra.mxu0 %v312
  %v729 = vpop.f32.mrf.mxu0
  %v730 = vadd.f32 %v521, %v729
  %731 = vmatmul.f32.gmra.mxu0 %v315
  %v732 = vpop.f32.mrf.mxu0
  %v733 = vadd.f32 %v524, %v732
  %734 = vmatmul.f32.gmra.mxu0 %v318
  %v735 = vpop.f32.mrf.mxu0
  %v736 = vadd.f32 %v527, %v735
  %737 = vmatmul.f32.gmra.mxu0 %v321
  %v738 = vpop.f32.mrf.mxu0
  %v739 = vadd.f32 %v530, %v738
  %740 = vmatmul.f32.gmra.mxu0 %v324
  %v741 = vpop.f32.mrf.mxu0
  %v742 = vadd.f32 %v533, %v741
  %743 = vmatmul.f32.gmra.mxu0 %v327
  %v744 = vpop.f32.mrf.mxu0
  %v745 = vadd.f32 %v536, %v744
  %746 = vmatmul.f32.gmra.mxu0 %v330
  %v747 = vpop.f32.mrf.mxu0
  %v748 = vadd.f32 %v539, %v747
  %749 = vmatmul.f32.gmra.mxu0 %v333
  %v750 = vpop.f32.mrf.mxu0
  %v751 = vadd.f32 %v542, %v750
  %752 = vmatmul.f32.gmra.mxu0 %v336
  %v753 = vpop.f32.mrf.mxu0
  %v754 = vadd.f32 %v545, %v753
  %755 = vmatmul.f32.gmra.mxu0 %v339
  %v756 = vpop.f32.mrf.mxu0
  %v757 = vadd.f32 %v548, %v756
  %758 = vmatmul.f32.gmra.mxu0 %v342
  %v759 = vpop.f32.mrf.mxu0
  %v760 = vadd.f32 %v551, %v759
  %761 = vmatmul.f32.gmra.mxu0 %v345
  %v762 = vpop.f32.mrf.mxu0
  %v763 = vadd.f32 %v554, %v762
  %764 = vmatmul.f32.gmra.mxu0 %v348
  %v765 = vpop.f32.mrf.mxu0
  %v766 = vadd.f32 %v557, %v765
  %767 = vmatmul.f32.gmra.mxu0 %v351
  %v768 = vpop.f32.mrf.mxu0
  %v769 = vadd.f32 %v560, %v768
  %770 = vmatmul.f32.gmra.mxu0 %v354
  %v771 = vpop.f32.mrf.mxu0
  %v772 = vadd.f32 %v563, %v771
  %773 = vmatmul.f32.gmra.mxu0 %v357
  %v774 = vpop.f32.mrf.mxu0
  %v775 = vadd.f32 %v566, %v774
  %776 = vdwg.mxu0
  %vm777 = vcmask 523264
  %778 = vst.msk [vmem:[%s3] sm:$0xff] %vm777, %v586
  %779 = vst.msk [vmem:[%s3 + $0x8] sm:$0xff] %vm777, %v589
  %780 = vst.msk [vmem:[%s3 + $0x10] sm:$0xff] %vm777, %v592
  %781 = vst.msk [vmem:[%s3 + $0x18] sm:$0xff] %vm777, %v595
  %782 = vst.msk [vmem:[%s3 + $0x20] sm:$0xff] %vm777, %v598
  %783 = vst.msk [vmem:[%s3 + $0x28] sm:$0xff] %vm777, %v601
  %784 = vst.msk [vmem:[%s3 + $0x30] sm:$0xff] %vm777, %v604
  %785 = vst.msk [vmem:[%s3 + $0x38] sm:$0xff] %vm777, %v607
  %786 = vst.msk [vmem:[%s3 + $0x40] sm:$0xff] %vm777, %v610
  %787 = vst.msk [vmem:[%s3 + $0x48] sm:$0xff] %vm777, %v613
  %788 = vst.msk [vmem:[%s3 + $0x50] sm:$0xff] %vm777, %v616
  %789 = vst.msk [vmem:[%s3 + $0x58] sm:$0xff] %vm777, %v619
  %790 = vst.msk [vmem:[%s3 + $0x60] sm:$0xff] %vm777, %v622
  %791 = vst.msk [vmem:[%s3 + $0x68] sm:$0xff] %vm777, %v625
  %792 = vst.msk [vmem:[%s3 + $0x70] sm:$0xff] %vm777, %v628
  %793 = vst.msk [vmem:[%s3 + $0x78] sm:$0xff] %vm777, %v631
  %794 = vst.msk [vmem:[%s3 + $0x80] sm:$0xff] %vm777, %v634
  %795 = vst.msk [vmem:[%s3 + $0x88] sm:$0xff] %vm777, %v637
  %796 = vst.msk [vmem:[%s3 + $0x90] sm:$0xff] %vm777, %v640
  %797 = vst.msk [vmem:[%s3 + $0x98] sm:$0xff] %vm777, %v643
  %798 = vst.msk [vmem:[%s3 + $0xa0] sm:$0xff] %vm777, %v646
  %799 = vst.msk [vmem:[%s3 + $0xa8] sm:$0xff] %vm777, %v649
  %800 = vst.msk [vmem:[%s3 + $0xb0] sm:$0xff] %vm777, %v652
  %801 = vst.msk [vmem:[%s3 + $0xb8] sm:$0xff] %vm777, %v655
  %802 = vst.msk [vmem:[%s3 + $0xc0] sm:$0xff] %vm777, %v658
  %803 = vst.msk [vmem:[%s3 + $0xc8] sm:$0xff] %vm777, %v661
  %804 = vst.msk [vmem:[%s3 + $0xd0] sm:$0xff] %vm777, %v664
  %805 = vst.msk [vmem:[%s3 + $0xd8] sm:$0xff] %vm777, %v667
  %806 = vst.msk [vmem:[%s3 + $0xe0] sm:$0xff] %vm777, %v670
  %807 = vst.msk [vmem:[%s3 + $0xe8] sm:$0xff] %vm777, %v673
  %808 = vst.msk [vmem:[%s3 + $0xf0] sm:$0xff] %vm777, %v676
  %809 = vst.msk [vmem:[%s3 + $0xf8] sm:$0xff] %vm777, %v679
  %810 = vst.msk [vmem:[%s3 + $0x100] sm:$0xff] %vm777, %v682
  %811 = vst.msk [vmem:[%s3 + $0x108] sm:$0xff] %vm777, %v685
  %812 = vst.msk [vmem:[%s3 + $0x110] sm:$0xff] %vm777, %v688
  %813 = vst.msk [vmem:[%s3 + $0x118] sm:$0xff] %vm777, %v691
  %814 = vst.msk [vmem:[%s3 + $0x120] sm:$0xff] %vm777, %v694
  %815 = vst.msk [vmem:[%s3 + $0x128] sm:$0xff] %vm777, %v697
  %816 = vst.msk [vmem:[%s3 + $0x130] sm:$0xff] %vm777, %v700
  %817 = vst.msk [vmem:[%s3 + $0x138] sm:$0xff] %vm777, %v703
  %818 = vst.msk [vmem:[%s3 + $0x140] sm:$0xff] %vm777, %v706
  %819 = vst.msk [vmem:[%s3 + $0x148] sm:$0xff] %vm777, %v709
  %820 = vst.msk [vmem:[%s3 + $0x150] sm:$0xff] %vm777, %v712
  %821 = vst.msk [vmem:[%s3 + $0x158] sm:$0xff] %vm777, %v715
  %822 = vst.msk [vmem:[%s3 + $0x160] sm:$0xff] %vm777, %v718
  %823 = vst.msk [vmem:[%s3 + $0x168] sm:$0xff] %vm777, %v721
  %824 = vst.msk [vmem:[%s3 + $0x170] sm:$0xff] %vm777, %v724
  %825 = vst.msk [vmem:[%s3 + $0x178] sm:$0xff] %vm777, %v727
  %826 = vst.msk [vmem:[%s3 + $0x180] sm:$0xff] %vm777, %v730
  %827 = vst.msk [vmem:[%s3 + $0x188] sm:$0xff] %vm777, %v733
  %828 = vst.msk [vmem:[%s3 + $0x190] sm:$0xff] %vm777, %v736
  %829 = vst.msk [vmem:[%s3 + $0x198] sm:$0xff] %vm777, %v739
  %830 = vst.msk [vmem:[%s3 + $0x1a0] sm:$0xff] %vm777, %v742
  %831 = vst.msk [vmem:[%s3 + $0x1a8] sm:$0xff] %vm777, %v745
  %832 = vst.msk [vmem:[%s3 + $0x1b0] sm:$0xff] %vm777, %v748
  %833 = vst.msk [vmem:[%s3 + $0x1b8] sm:$0xff] %vm777, %v751
  %834 = vst.msk [vmem:[%s3 + $0x1c0] sm:$0xff] %vm777, %v754
  %835 = vst.msk [vmem:[%s3 + $0x1c8] sm:$0xff] %vm777, %v757
  %836 = vst.msk [vmem:[%s3 + $0x1d0] sm:$0xff] %vm777, %v760
  %837 = vst.msk [vmem:[%s3 + $0x1d8] sm:$0xff] %vm777, %v763
  %838 = vst.msk [vmem:[%s3 + $0x1e0] sm:$0xff] %vm777, %v766
  %839 = vst.msk [vmem:[%s3 + $0x1e8] sm:$0xff] %vm777, %v769
  %840 = vst.msk [vmem:[%s3 + $0x1f0] sm:$0xff] %vm777, %v772
  %841 = vst.msk [vmem:[%s3 + $0x1f8] sm:$0xff] %vm777, %v775
  // Predicated region
  $region14: #{sfadnet_forward.15} parent=0 // pred_check
    _
  $region15: #{sfadnet_forward.15} parent=0 // pred_check_branch
    %843 = sbr.rel (0) target = $region17
  $region16: #{sfadnet_forward.15} parent=0 // pred_region
    _
  $region17: #{sfadnet_forward.15} parent=0 // pred_fallthru
    _
  // Predicated region
  $region18: #{sfadnet_forward.15} parent=0 // pred_check
    _
  $region19: #{sfadnet_forward.15} parent=0 // pred_check_branch
    %845 = sbr.rel (0) target = $region21
  $region20: #{sfadnet_forward.15} parent=0 // pred_region
    _
  $region21: #{sfadnet_forward.15} parent=0 // pred_fallthru
    _

// kernel: sfadnet_forward.16
$region0: #{sfadnet_forward.16}
  #allocation0 [shape = 'u32[]', space=smem, size = 0x4, offset = 0x4, fixed_abs, tag = 'smem constant byte address 0x4 - core index']
  #allocation1 [shape = 'u32[72,128]{1,0:T(1,128)}', space=vmem, size = 0x9000, scoped, tag = 'internal scratch']
  %s0 = inlined_call_operand.vmem [shape: f32[16,32,64], index: 0, kind: input, shape index: {}]
  %s1 = inlined_call_operand.vmem [shape: f32[64,256], index: 1, kind: input, shape index: {}]
  %s2 = inlined_call_operand.vmem [shape: f32[1,256], index: 2, kind: input, shape index: {}]
  %s3 = inlined_call_operand.vmem [shape: f32[256,64], index: 3, kind: input, shape index: {}]
  %s4 = inlined_call_operand.vmem [shape: f32[1,64], index: 4, kind: input, shape index: {}]
  %s5 = inlined_call_operand.vmem [shape: f32[128,32], index: 5, kind: input, shape index: {}]
  %s6 = inlined_call_operand.vmem [shape: f32[128,1], index: 6, kind: input, shape index: {}]
  %s7 = inlined_call_operand.vmem [shape: f32[12,128], index: 7, kind: input, shape index: {}]
  %s8 = inlined_call_operand.vmem [shape: f32[12,1], index: 8, kind: input, shape index: {}]
  %s9 = inlined_call_operand.vmem [shape: f32[16,12,64], index: 9, kind: output, shape index: {}]
  %s10 = sld [smem:[#allocation0]]
  $region69: #{sfadnet_forward.16} parent=0
    _
  %s12 = ssub.s32 1, %s10
  %s13 = scalar_select 0, %s12, %s10
  loop: start=0, step=1, limit=18
  $region2: #{sfadnet_forward.16} parent=0 // loop_pre_header
    _
  $region3: #{sfadnet_forward.16} parent=0 // loop_header
    %s15 = sphi 0, %s19
    %p16 = scmp.ge.s32.totalorder %s15, 18
    %s25 = sphi 0, %s27
    %s28 = sphi 0, %s25
    %s29 = sphi 0, %s28
    %s45 = sphi 0, %s29
    %s49 = sphi 0, %s49
    %s51 = sphi 0, %s49
    %s52 = sphi 0, %s51
    %s66 = sphi 0, %s52
    %s70 = sphi 0, %s70
    %s72 = sphi 0, %s70
    %s73 = sphi 0, %s72
    %s87 = sphi 0, %s73
    %s91 = sphi 0, %s91
    %s93 = sphi 0, %s91
    %s94 = sphi 0, %s93
    %s108 = sphi 0, %s94
    %s112 = sphi 0, %s112
    %s114 = sphi 0, %s112
    %s115 = sphi 0, %s114
    %s129 = sphi 0, %s115
    %s133 = sphi 0, %s133
    %s135 = sphi 0, %s133
    %s136 = sphi 0, %s135
    %s150 = sphi 0, %s136
    %s154 = sphi 0, %s154
    %s156 = sphi 0, %s154
    %s157 = sphi 0, %s156
    %s171 = sphi 0, %s157
    %s175 = sphi 0, %s175
    %s177 = sphi 0, %s175
    %s178 = sphi 0, %s177
    %s192 = sphi 0, %s178
    %s196 = sphi 0, %s196
    %s198 = sphi 0, %s196
    %s199 = sphi 0, %s198
    %s213 = sphi 0, %s199
    %s219 = sphi 0, %s221
    %s222 = sphi 0, %s219
    %s223 = sphi 0, %s222
    %s239 = sphi 0, %s223
  $region4: #{sfadnet_forward.16} parent=0 // loop_header_branch
    %18 = sbr.rel (%p16) target = $region8
  $region5: #{sfadnet_forward.16} parent=0 // loop_body
    %s20 = ssub.s32 %s15, 1
    %s21 = ssub.s32 %s15, 2
    %s22 = sadd.s32 %s15, 1
    %s23 = ssub.s32 %s15, %s22
    %p24 = scmp.eq.s32.totalorder %s23, 0
    %s26 = sadd.s32 %s25, 1
    %s27 = scalar_select %p24, %s25, %s26
    %p30 = pneg %p24
    %p31 = scmp.eq.s32.totalorder %s15, 15
    %p32 = por %p30, %p31
    %p33 = scmp.ne.s32.totalorder %s25, %s28
    %p34 = scmp.eq.s32.totalorder %s15, 0
    %p35 = por %p33, %p34
    %p36 = scmp.ne.s32.totalorder %s25, %s28
    %p37 = scmp.eq.s32.totalorder %s20, 15
    %p38 = por %p36, %p37
    %p39 = scmp.ne.s32.totalorder %s28, %s29
    %p40 = scmp.eq.s32.totalorder %s20, 0
    %p41 = por %p39, %p40
    %p42 = scmp.ne.s32.totalorder %s28, %s29
    %p43 = scmp.eq.s32.totalorder %s21, 15
    %p44 = por %p42, %p43
    %p46 = scmp.ne.s32.totalorder %s29, %s45
    %p47 = scmp.eq.s32.totalorder %s21, 0
    %p48 = por %p46, %p47
    %s50 = sadd.s32 %s49, 1
    %p53 = scmp.eq.s32.totalorder %s15, 15
    %p54 = scmp.ne.s32.totalorder %s49, %s51
    %p55 = scmp.eq.s32.totalorder %s15, 0
    %p56 = por %p54, %p55
    %p57 = scmp.ne.s32.totalorder %s49, %s51
    %p58 = scmp.eq.s32.totalorder %s20, 15
    %p59 = por %p57, %p58
    %p60 = scmp.ne.s32.totalorder %s51, %s52
    %p61 = scmp.eq.s32.totalorder %s20, 0
    %p62 = por %p60, %p61
    %p63 = scmp.ne.s32.totalorder %s51, %s52
    %p64 = scmp.eq.s32.totalorder %s21, 15
    %p65 = por %p63, %p64
    %p67 = scmp.ne.s32.totalorder %s52, %s66
    %p68 = scmp.eq.s32.totalorder %s21, 0
    %p69 = por %p67, %p68
    %s71 = sadd.s32 %s70, 1
    %p74 = scmp.eq.s32.totalorder %s15, 15
    %p75 = scmp.ne.s32.totalorder %s70, %s72
    %p76 = scmp.eq.s32.totalorder %s15, 0
    %p77 = por %p75, %p76
    %p78 = scmp.ne.s32.totalorder %s70, %s72
    %p79 = scmp.eq.s32.totalorder %s20, 15
    %p80 = por %p78, %p79
    %p81 = scmp.ne.s32.totalorder %s72, %s73
    %p82 = scmp.eq.s32.totalorder %s20, 0
    %p83 = por %p81, %p82
    %p84 = scmp.ne.s32.totalorder %s72, %s73
    %p85 = scmp.eq.s32.totalorder %s21, 15
    %p86 = por %p84, %p85
    %p88 = scmp.ne.s32.totalorder %s73, %s87
    %p89 = scmp.eq.s32.totalorder %s21, 0
    %p90 = por %p88, %p89
    %s92 = sadd.s32 %s91, 1
    %p95 = scmp.eq.s32.totalorder %s15, 15
    %p96 = scmp.ne.s32.totalorder %s91, %s93
    %p97 = scmp.eq.s32.totalorder %s15, 0
    %p98 = por %p96, %p97
    %p99 = scmp.ne.s32.totalorder %s91, %s93
    %p100 = scmp.eq.s32.totalorder %s20, 15
    %p101 = por %p99, %p100
    %p102 = scmp.ne.s32.totalorder %s93, %s94
    %p103 = scmp.eq.s32.totalorder %s20, 0
    %p104 = por %p102, %p103
    %p105 = scmp.ne.s32.totalorder %s93, %s94
    %p106 = scmp.eq.s32.totalorder %s21, 15
    %p107 = por %p105, %p106
    %p109 = scmp.ne.s32.totalorder %s94, %s108
    %p110 = scmp.eq.s32.totalorder %s21, 0
    %p111 = por %p109, %p110
    %s113 = sadd.s32 %s112, 1
    %p116 = scmp.eq.s32.totalorder %s15, 15
    %p117 = scmp.ne.s32.totalorder %s112, %s114
    %p118 = scmp.eq.s32.totalorder %s15, 0
    %p119 = por %p117, %p118
    %p120 = scmp.ne.s32.totalorder %s112, %s114
    %p121 = scmp.eq.s32.totalorder %s20, 15
    %p122 = por %p120, %p121
    %p123 = scmp.ne.s32.totalorder %s114, %s115
    %p124 = scmp.eq.s32.totalorder %s20, 0
    %p125 = por %p123, %p124
    %p126 = scmp.ne.s32.totalorder %s114, %s115
    %p127 = scmp.eq.s32.totalorder %s21, 15
    %p128 = por %p126, %p127
    %p130 = scmp.ne.s32.totalorder %s115, %s129
    %p131 = scmp.eq.s32.totalorder %s21, 0
    %p132 = por %p130, %p131
    %s134 = sadd.s32 %s133, 1
    %p137 = scmp.eq.s32.totalorder %s15, 15
    %p138 = scmp.ne.s32.totalorder %s133, %s135
    %p139 = scmp.eq.s32.totalorder %s15, 0
    %p140 = por %p138, %p139
    %p141 = scmp.ne.s32.totalorder %s133, %s135
    %p142 = scmp.eq.s32.totalorder %s20, 15
    %p143 = por %p141, %p142
    %p144 = scmp.ne.s32.totalorder %s135, %s136
    %p145 = scmp.eq.s32.totalorder %s20, 0
    %p146 = por %p144, %p145
    %p147 = scmp.ne.s32.totalorder %s135, %s136
    %p148 = scmp.eq.s32.totalorder %s21, 15
    %p149 = por %p147, %p148
    %p151 = scmp.ne.s32.totalorder %s136, %s150
    %p152 = scmp.eq.s32.totalorder %s21, 0
    %p153 = por %p151, %p152
    %s155 = sadd.s32 %s154, 1
    %p158 = scmp.eq.s32.totalorder %s15, 15
    %p159 = scmp.ne.s32.totalorder %s154, %s156
    %p160 = scmp.eq.s32.totalorder %s15, 0
    %p161 = por %p159, %p160
    %p162 = scmp.ne.s32.totalorder %s154, %s156
    %p163 = scmp.eq.s32.totalorder %s20, 15
    %p164 = por %p162, %p163
    %p165 = scmp.ne.s32.totalorder %s156, %s157
    %p166 = scmp.eq.s32.totalorder %s20, 0
    %p167 = por %p165, %p166
    %p168 = scmp.ne.s32.totalorder %s156, %s157
    %p169 = scmp.eq.s32.totalorder %s21, 15
    %p170 = por %p168, %p169
    %p172 = scmp.ne.s32.totalorder %s157, %s171
    %p173 = scmp.eq.s32.totalorder %s21, 0
    %p174 = por %p172, %p173
    %s176 = sadd.s32 %s175, 1
    %p179 = scmp.eq.s32.totalorder %s15, 15
    %p180 = scmp.ne.s32.totalorder %s175, %s177
    %p181 = scmp.eq.s32.totalorder %s15, 0
    %p182 = por %p180, %p181
    %p183 = scmp.ne.s32.totalorder %s175, %s177
    %p184 = scmp.eq.s32.totalorder %s20, 15
    %p185 = por %p183, %p184
    %p186 = scmp.ne.s32.totalorder %s177, %s178
    %p187 = scmp.eq.s32.totalorder %s20, 0
    %p188 = por %p186, %p187
    %p189 = scmp.ne.s32.totalorder %s177, %s178
    %p190 = scmp.eq.s32.totalorder %s21, 15
    %p191 = por %p189, %p190
    %p193 = scmp.ne.s32.totalorder %s178, %s192
    %p194 = scmp.eq.s32.totalorder %s21, 0
    %p195 = por %p193, %p194
    %s197 = sadd.s32 %s196, 1
    %p200 = scmp.eq.s32.totalorder %s15, 15
    %p201 = scmp.ne.s32.totalorder %s196, %s198
    %p202 = scmp.eq.s32.totalorder %s15, 0
    %p203 = por %p201, %p202
    %p204 = scmp.ne.s32.totalorder %s196, %s198
    %p205 = scmp.eq.s32.totalorder %s20, 15
    %p206 = por %p204, %p205
    %p207 = scmp.ne.s32.totalorder %s198, %s199
    %p208 = scmp.eq.s32.totalorder %s20, 0
    %p209 = por %p207, %p208
    %p210 = scmp.ne.s32.totalorder %s198, %s199
    %p211 = scmp.eq.s32.totalorder %s21, 15
    %p212 = por %p210, %p211
    %p214 = scmp.ne.s32.totalorder %s199, %s213
    %p215 = scmp.eq.s32.totalorder %s21, 0
    %p216 = por %p214, %p215
    %s217 = ssub.s32 %s15, %s22
    %p218 = scmp.eq.s32.totalorder %s217, 0
    %s220 = sadd.s32 %s219, 1
    %s221 = scalar_select %p218, %s219, %s220
    %p224 = pneg %p218
    %p225 = scmp.eq.s32.totalorder %s15, 15
    %p226 = por %p224, %p225
    %p227 = scmp.ne.s32.totalorder %s219, %s222
    %p228 = scmp.eq.s32.totalorder %s15, 0
    %p229 = por %p227, %p228
    %p230 = scmp.ne.s32.totalorder %s219, %s222
    %p231 = scmp.eq.s32.totalorder %s20, 15
    %p232 = por %p230, %p231
    %p233 = scmp.ne.s32.totalorder %s222, %s223
    %p234 = scmp.eq.s32.totalorder %s20, 0
    %p235 = por %p233, %p234
    %p236 = scmp.ne.s32.totalorder %s222, %s223
    %p237 = scmp.eq.s32.totalorder %s21, 15
    %p238 = por %p236, %p237
    %p240 = scmp.ne.s32.totalorder %s223, %s239
    %p241 = scmp.eq.s32.totalorder %s21, 0
    %p242 = por %p240, %p241
    %p243 = scmp.le.s32.totalorder 1, %s15
    %p244 = scmp.lt.s32.totalorder %s15, 17
    %p245 = pnand %p243, %p244
    %p246 = pneg %p245
    // Predicated region
    $region9: #{sfadnet_forward.16} parent=5 // pred_check
      _
    $region10: #{sfadnet_forward.16} parent=5 // pred_check_branch
      %248 = sbr.rel (%p245) target = $region12
    $region11: #{sfadnet_forward.16} parent=5 // pred_region
      %s249 = ssub.s32 %s15, 1
      // Predicated region
      $region13: #{sfadnet_forward.16} parent=11 // pred_check
        %p250 = pneg %p62
      $region14: #{sfadnet_forward.16} parent=11 // pred_check_branch
        %252 = sbr.rel (%p250) target = $region16
      $region15: #{sfadnet_forward.16} parent=11 // pred_region
        _
      $region16: #{sfadnet_forward.16} parent=11 // pred_fallthru
        _
      // Predicated region
      $region17: #{sfadnet_forward.16} parent=11 // pred_check
        %p253 = pneg %p83
      $region18: #{sfadnet_forward.16} parent=11 // pred_check_branch
        %255 = sbr.rel (%p253) target = $region20
      $region19: #{sfadnet_forward.16} parent=11 // pred_region
        _
      $region20: #{sfadnet_forward.16} parent=11 // pred_fallthru
        _
      // Predicated region
      $region21: #{sfadnet_forward.16} parent=11 // pred_check
        %p256 = pneg %p104
      $region22: #{sfadnet_forward.16} parent=11 // pred_check_branch
        %258 = sbr.rel (%p256) target = $region24
      $region23: #{sfadnet_forward.16} parent=11 // pred_region
        _
      $region24: #{sfadnet_forward.16} parent=11 // pred_fallthru
        _
      // Predicated region
      $region25: #{sfadnet_forward.16} parent=11 // pred_check
        %p259 = pneg %p125
      $region26: #{sfadnet_forward.16} parent=11 // pred_check_branch
        %261 = sbr.rel (%p259) target = $region28
      $region27: #{sfadnet_forward.16} parent=11 // pred_region
        _
      $region28: #{sfadnet_forward.16} parent=11 // pred_fallthru
        _
      // Predicated region
      $region29: #{sfadnet_forward.16} parent=11 // pred_check
        %p262 = pneg %p146
      $region30: #{sfadnet_forward.16} parent=11 // pred_check_branch
        %264 = sbr.rel (%p262) target = $region32
      $region31: #{sfadnet_forward.16} parent=11 // pred_region
        _
      $region32: #{sfadnet_forward.16} parent=11 // pred_fallthru
        _
      // Predicated region
      $region33: #{sfadnet_forward.16} parent=11 // pred_check
        %p265 = pneg %p167
      $region34: #{sfadnet_forward.16} parent=11 // pred_check_branch
        %267 = sbr.rel (%p265) target = $region36
      $region35: #{sfadnet_forward.16} parent=11 // pred_region
        _
      $region36: #{sfadnet_forward.16} parent=11 // pred_fallthru
        _
      // Predicated region
      $region37: #{sfadnet_forward.16} parent=11 // pred_check
        %p268 = pneg %p188
      $region38: #{sfadnet_forward.16} parent=11 // pred_check_branch
        %270 = sbr.rel (%p268) target = $region40
      $region39: #{sfadnet_forward.16} parent=11 // pred_region
        _
      $region40: #{sfadnet_forward.16} parent=11 // pred_fallthru
        _
      // Predicated region
      $region41: #{sfadnet_forward.16} parent=11 // pred_check
        %p271 = pneg %p209
      $region42: #{sfadnet_forward.16} parent=11 // pred_check_branch
        %273 = sbr.rel (%p271) target = $region44
      $region43: #{sfadnet_forward.16} parent=11 // pred_region
        _
      $region44: #{sfadnet_forward.16} parent=11 // pred_fallthru
        _
    $region12: #{sfadnet_forward.16} parent=5 // pred_fallthru
      _
    %p274 = scmp.lt.s32.totalorder %s15, 16
    // Predicated region
    $region45: #{sfadnet_forward.16} parent=5 // pred_check
      %p275 = pneg %p274
    $region46: #{sfadnet_forward.16} parent=5 // pred_check_branch
      %277 = sbr.rel (%p275) target = $region48
    $region47: #{sfadnet_forward.16} parent=5 // pred_region
      // Predicated region
      $region49: #{sfadnet_forward.16} parent=47 // pred_check
        %p278 = pneg %p35
      $region50: #{sfadnet_forward.16} parent=47 // pred_check_branch
        %280 = sbr.rel (%p278) target = $region52
      $region51: #{sfadnet_forward.16} parent=47 // pred_region
        %p281 = scmp.lt.s32.totalorder %s15, 15
        %s282 = scalar_select %p281, %s15, 15
        %s283 = smul.addr %s282, 4
        %s284 = smul.addr %s283, 8
        %s285 = scalar_lea.vmem %s0, %s284
      $region52: #{sfadnet_forward.16} parent=47 // pred_fallthru
        _
    $region48: #{sfadnet_forward.16} parent=5 // pred_fallthru
      _
    %p286 = scmp.le.s32.totalorder 1, %s15
    %p287 = scmp.lt.s32.totalorder %s15, 17
    %p288 = pnand %p286, %p287
    %p289 = pneg %p288
    // Predicated region
    $region53: #{sfadnet_forward.16} parent=5 // pred_check
      _
    $region54: #{sfadnet_forward.16} parent=5 // pred_check_branch
      %291 = sbr.rel (%p288) target = $region56
    $region55: #{sfadnet_forward.16} parent=5 // pred_region
      %s292 = ssub.s32 %s15, 1
      %p293 = scmp.lt.s32.totalorder %s20, 15
      %s294 = scalar_select %p293, %s20, 15
      %s295 = smul.addr %s294, 4
      %s296 = smul.addr %s295, 8
      %s297 = scalar_lea.vmem %s0, %s296
      %p298 = pneg %p41
      %p299 = pneg %p38
      %p300 = pneg %p62
      %p301 = pneg %p59
      %p302 = pneg %p83
      %p303 = pneg %p80
      %p304 = pneg %p104
      %p305 = pneg %p101
      %p306 = pneg %p125
      %p307 = pneg %p122
      %p308 = pneg %p146
      %p309 = pneg %p143
      %p310 = pneg %p167
      %p311 = pneg %p164
      %p312 = pneg %p188
      %p313 = pneg %p185
      %p314 = pneg %p209
      %p315 = pneg %p206
      %p316 = pneg %p235
      %p317 = pneg %p232
      %p318 = scmp.lt.s32.totalorder %s20, 15
      %s319 = scalar_select %p318, %s20, 15
      %s320 = smul.addr %s319, 2
      %s321 = smul.addr %s320, 8
      %s322 = scalar_lea.vmem %s9, %s321
      %p323 = scmp.lt.s32.totalorder %s20, 15
      %s324 = scalar_select %p323, %s20, 15
      %s325 = smul.addr %s324, 4
      %s326 = smul.addr %s325, 8
      %s327 = scalar_lea.vmem %s0, %s326
      %p328 = scmp.lt.s32.totalorder %s20, 15
      %s329 = scalar_select %p328, %s20, 15
      %s330 = smul.addr %s329, 2
      %s331 = smul.addr %s330, 8
      %s332 = scalar_lea.vmem %s9, %s331
      %v333 = vld [vmem:[%s327] sm:$0xff]
      %v334 = vld [vmem:[%s327 + $0x8] sm:$0xff]
      %v335 = vld [vmem:[%s327 + $0x10] sm:$0xff]
      %v336 = vld [vmem:[%s327 + $0x18] sm:$0xff]
      %v337 = vld [vmem:[%s1] sm:$0xff]
      %v338 = vld [vmem:[%s1 + $0x8] sm:$0xff]
      %v339 = vld [vmem:[%s1 + $0x10] sm:$0xff]
      %v340 = vld [vmem:[%s1 + $0x18] sm:$0xff]
      %v341 = vld [vmem:[%s1 + $0x20] sm:$0xff]
      %v342 = vld [vmem:[%s1 + $0x28] sm:$0xff]
      %v343 = vld [vmem:[%s1 + $0x30] sm:$0xff]
      %v344 = vld [vmem:[%s1 + $0x38] sm:$0xff]
      %v345 = vld [vmem:[%s1 + $0x40] sm:$0xff]
      %v346 = vld [vmem:[%s1 + $0x48] sm:$0xff]
      %v347 = vld [vmem:[%s1 + $0x50] sm:$0xff]
      %v348 = vld [vmem:[%s1 + $0x58] sm:$0xff]
      %v349 = vld [vmem:[%s1 + $0x60] sm:$0xff]
      %v350 = vld [vmem:[%s1 + $0x68] sm:$0xff]
      %v351 = vld [vmem:[%s1 + $0x70] sm:$0xff]
      %v352 = vld [vmem:[%s1 + $0x78] sm:$0xff]
      %v353 = vld [vmem:[%s2] sm:$0x3]
      %v355 = vperm.slane %v353, 0
      %v356 = vperm.slane %v353, 1
      %vm359 = vcmask 523264
      %v361 = vsel %vm359, %v333, 0
      %v364 = vsel %vm359, %v334, 0
      %v367 = vsel %vm359, %v335, 0
      %v370 = vsel %vm359, %v336, 0
      %372 = vmatpush.msra.mxu0 0.0
      %373 = vmatpush.msra.mxu0 0.0
      %374 = vmatpush.msra.mxu0 0.0
      %375 = vmatpush.msra.mxu0 0.0
      %376 = vmatpush.msra.mxu0 0.0
      %377 = vmatpush.msra.mxu0 0.0
      %378 = vmatpush.msra.mxu0 0.0
      %379 = vmatpush.msra.mxu0 0.0
      %380 = vmatpush.msra.mxu0 %v351
      %381 = vmatpush.msra.mxu0 %v349
      %382 = vmatpush.msra.mxu0 %v347
      %383 = vmatpush.msra.mxu0 %v345
      %384 = vmatpush.msra.mxu0 %v343
      %385 = vmatpush.msra.mxu0 %v341
      %386 = vmatpush.msra.mxu0 %v339
      %387 = vmatpush.msra.mxu0 %v337
      %388 = vmatmul.f32.gmra.mxu0 %v361
      %v389 = vpop.f32.mrf.mxu0
      %v390 = vadd.f32 %v355, %v389
      %391 = vmatmul.f32.gmra.mxu0 %v364
      %v392 = vpop.f32.mrf.mxu0
      %v393 = vadd.f32 %v355, %v392
      %394 = vmatmul.f32.gmra.mxu0 %v367
      %v395 = vpop.f32.mrf.mxu0
      %v396 = vadd.f32 %v355, %v395
      %397 = vmatmul.f32.gmra.mxu0 %v370
      %v398 = vpop.f32.mrf.mxu0
      %v399 = vadd.f32 %v355, %v398
      %400 = vdwg.mxu0
      %401 = vmatpush.msra.mxu0 0.0
      %402 = vmatpush.msra.mxu0 0.0
      %403 = vmatpush.msra.mxu0 0.0
      %404 = vmatpush.msra.mxu0 0.0
      %405 = vmatpush.msra.mxu0 0.0
      %406 = vmatpush.msra.mxu0 0.0
      %407 = vmatpush.msra.mxu0 0.0
      %408 = vmatpush.msra.mxu0 0.0
      %409 = vmatpush.msra.mxu0 %v352
      %410 = vmatpush.msra.mxu0 %v350
      %411 = vmatpush.msra.mxu0 %v348
      %412 = vmatpush.msra.mxu0 %v346
      %413 = vmatpush.msra.mxu0 %v344
      %414 = vmatpush.msra.mxu0 %v342
      %415 = vmatpush.msra.mxu0 %v340
      %416 = vmatpush.msra.mxu0 %v338
      %417 = vmatmul.f32.gmra.mxu0 %v361
      %v418 = vpop.f32.mrf.mxu0
      %v419 = vadd.f32 %v356, %v418
      %420 = vmatmul.f32.gmra.mxu0 %v364
      %v421 = vpop.f32.mrf.mxu0
      %v422 = vadd.f32 %v356, %v421
      %423 = vmatmul.f32.gmra.mxu0 %v367
      %v424 = vpop.f32.mrf.mxu0
      %v425 = vadd.f32 %v356, %v424
      %426 = vmatmul.f32.gmra.mxu0 %v370
      %v427 = vpop.f32.mrf.mxu0
      %v428 = vadd.f32 %v356, %v427
      %429 = vdwg.mxu0
      %v430 = vmax.f32 %v390, 0.0
      %v431 = vmax.f32 %v419, 0.0
      %v432 = vmax.f32 %v393, 0.0
      %v433 = vmax.f32 %v422, 0.0
      %v434 = vmax.f32 %v396, 0.0
      %v435 = vmax.f32 %v425, 0.0
      %v436 = vmax.f32 %v399, 0.0
      %v437 = vmax.f32 %v428, 0.0
      %v438 = vld [vmem:[%s3] sm:$0xff]
      %v439 = vld [vmem:[%s3 + $0x8] sm:$0xff]
      %v440 = vld [vmem:[%s3 + $0x10] sm:$0xff]
      %v441 = vld [vmem:[%s3 + $0x18] sm:$0xff]
      %v442 = vld [vmem:[%s3 + $0x20] sm:$0xff]
      %v443 = vld [vmem:[%s3 + $0x28] sm:$0xff]
      %v444 = vld [vmem:[%s3 + $0x30] sm:$0xff]
      %v445 = vld [vmem:[%s3 + $0x38] sm:$0xff]
      %v446 = vld [vmem:[%s3 + $0x40] sm:$0xff]
      %v447 = vld [vmem:[%s3 + $0x48] sm:$0xff]
      %v448 = vld [vmem:[%s3 + $0x50] sm:$0xff]
      %v449 = vld [vmem:[%s3 + $0x58] sm:$0xff]
      %v450 = vld [vmem:[%s3 + $0x60] sm:$0xff]
      %v451 = vld [vmem:[%s3 + $0x68] sm:$0xff]
      %v452 = vld [vmem:[%s3 + $0x70] sm:$0xff]
      %v453 = vld [vmem:[%s3 + $0x78] sm:$0xff]
      %v454 = vld [vmem:[%s3 + $0x80] sm:$0xff]
      %v455 = vld [vmem:[%s3 + $0x88] sm:$0xff]
      %v456 = vld [vmem:[%s3 + $0x90] sm:$0xff]
      %v457 = vld [vmem:[%s3 + $0x98] sm:$0xff]
      %v458 = vld [vmem:[%s3 + $0xa0] sm:$0xff]
      %v459 = vld [vmem:[%s3 + $0xa8] sm:$0xff]
      %v460 = vld [vmem:[%s3 + $0xb0] sm:$0xff]
      %v461 = vld [vmem:[%s3 + $0xb8] sm:$0xff]
      %v462 = vld [vmem:[%s3 + $0xc0] sm:$0xff]
      %v463 = vld [vmem:[%s3 + $0xc8] sm:$0xff]
      %v464 = vld [vmem:[%s3 + $0xd0] sm:$0xff]
      %v465 = vld [vmem:[%s3 + $0xd8] sm:$0xff]
      %v466 = vld [vmem:[%s3 + $0xe0] sm:$0xff]
      %v467 = vld [vmem:[%s3 + $0xe8] sm:$0xff]
      %v468 = vld [vmem:[%s3 + $0xf0] sm:$0xff]
      %v469 = vld [vmem:[%s3 + $0xf8] sm:$0xff]
      %v470 = vld [vmem:[%s4] sm:$0x1]
      %v472 = vperm.slane %v470, 0
      %474 = vmatpush.msra.mxu0 %v453
      %475 = vmatpush.msra.mxu0 %v452
      %476 = vmatpush.msra.mxu0 %v451
      %477 = vmatpush.msra.mxu0 %v450
      %478 = vmatpush.msra.mxu0 %v449
      %479 = vmatpush.msra.mxu0 %v448
      %480 = vmatpush.msra.mxu0 %v447
      %481 = vmatpush.msra.mxu0 %v446
      %482 = vmatpush.msra.mxu0 %v445
      %483 = vmatpush.msra.mxu0 %v444
      %484 = vmatpush.msra.mxu0 %v443
      %485 = vmatpush.msra.mxu0 %v442
      %486 = vmatpush.msra.mxu0 %v441
      %487 = vmatpush.msra.mxu0 %v440
      %488 = vmatpush.msra.mxu0 %v439
      %489 = vmatpush.msra.mxu0 %v438
      %490 = vmatmul.f32.gmra.mxu0 %v430
      %v491 = vpop.f32.mrf.mxu0
      %v492 = vadd.f32 %v472, %v491
      %493 = vmatmul.f32.gmra.mxu0 %v432
      %v494 = vpop.f32.mrf.mxu0
      %v495 = vadd.f32 %v472, %v494
      %496 = vmatmul.f32.gmra.mxu0 %v434
      %v497 = vpop.f32.mrf.mxu0
      %v498 = vadd.f32 %v472, %v497
      %499 = vmatmul.f32.gmra.mxu0 %v436
      %v500 = vpop.f32.mrf.mxu0
      %v501 = vadd.f32 %v472, %v500
      %502 = vdwg.mxu0
      %503 = vmatpush.msra.mxu0 %v469
      %504 = vmatpush.msra.mxu0 %v468
      %505 = vmatpush.msra.mxu0 %v467
      %506 = vmatpush.msra.mxu0 %v466
      %507 = vmatpush.msra.mxu0 %v465
      %508 = vmatpush.msra.mxu0 %v464
      %509 = vmatpush.msra.mxu0 %v463
      %510 = vmatpush.msra.mxu0 %v462
      %511 = vmatpush.msra.mxu0 %v461
      %512 = vmatpush.msra.mxu0 %v460
      %513 = vmatpush.msra.mxu0 %v459
      %514 = vmatpush.msra.mxu0 %v458
      %515 = vmatpush.msra.mxu0 %v457
      %516 = vmatpush.msra.mxu0 %v456
      %517 = vmatpush.msra.mxu0 %v455
      %518 = vmatpush.msra.mxu0 %v454
      %519 = vmatmul.f32.gmra.mxu0 %v431
      %v520 = vpop.f32.mrf.mxu0
      %v521 = vadd.f32 %v492, %v520
      %522 = vmatmul.f32.gmra.mxu0 %v433
      %v523 = vpop.f32.mrf.mxu0
      %v524 = vadd.f32 %v495, %v523
      %525 = vmatmul.f32.gmra.mxu0 %v435
      %v526 = vpop.f32.mrf.mxu0
      %v527 = vadd.f32 %v498, %v526
      %528 = vmatmul.f32.gmra.mxu0 %v437
      %v529 = vpop.f32.mrf.mxu0
      %v530 = vadd.f32 %v501, %v529
      %531 = vdwg.mxu0
      %v532 = vld [vmem:[%s5] sm:$0xff]
      %v533 = vld [vmem:[%s5 + $0x8] sm:$0xff]
      %v534 = vld [vmem:[%s5 + $0x10] sm:$0xff]
      %v535 = vld [vmem:[%s5 + $0x18] sm:$0xff]
      %v536 = vld [vmem:[%s5 + $0x20] sm:$0xff]
      %v537 = vld [vmem:[%s5 + $0x28] sm:$0xff]
      %v538 = vld [vmem:[%s5 + $0x30] sm:$0xff]
      %v539 = vld [vmem:[%s5 + $0x38] sm:$0xff]
      %v540 = vld [vmem:[%s5 + $0x40] sm:$0xff]
      %v541 = vld [vmem:[%s5 + $0x48] sm:$0xff]
      %v542 = vld [vmem:[%s5 + $0x50] sm:$0xff]
      %v543 = vld [vmem:[%s5 + $0x58] sm:$0xff]
      %v544 = vld [vmem:[%s5 + $0x60] sm:$0xff]
      %v545 = vld [vmem:[%s5 + $0x68] sm:$0xff]
      %v546 = vld [vmem:[%s5 + $0x70] sm:$0xff]
      %v547 = vld [vmem:[%s5 + $0x78] sm:$0xff]
      %v548 = vld [vmem:[%s6] sm:$0xff]
      %v549 = vld [vmem:[%s6 + $0x8] sm:$0xff]
      %v550 = vld [vmem:[%s6 + $0x10] sm:$0xff]
      %v551 = vld [vmem:[%s6 + $0x18] sm:$0xff]
      %v552 = vld [vmem:[%s6 + $0x20] sm:$0xff]
      %v553 = vld [vmem:[%s6 + $0x28] sm:$0xff]
      %v554 = vld [vmem:[%s6 + $0x30] sm:$0xff]
      %v555 = vld [vmem:[%s6 + $0x38] sm:$0xff]
      %v556 = vld [vmem:[%s6 + $0x40] sm:$0xff]
      %v557 = vld [vmem:[%s6 + $0x48] sm:$0xff]
      %v558 = vld [vmem:[%s6 + $0x50] sm:$0xff]
      %v559 = vld [vmem:[%s6 + $0x58] sm:$0xff]
      %v560 = vld [vmem:[%s6 + $0x60] sm:$0xff]
      %v561 = vld [vmem:[%s6 + $0x68] sm:$0xff]
      %v562 = vld [vmem:[%s6 + $0x70] sm:$0xff]
      %v563 = vld [vmem:[%s6 + $0x78] sm:$0xff]
      %565 = vset.pattern.permute.xlu0 0
      %566 = vperm.xlu0 %565, %v548
      %v567 = vpop.permute.xlu0 %566
      %570 = vset.pattern.permute.xlu0 0
      %571 = vperm.xlu0 %570, %v549
      %v572 = vpop.permute.xlu0 %571
      %575 = vset.pattern.permute.xlu0 0
      %576 = vperm.xlu0 %575, %v550
      %v577 = vpop.permute.xlu0 %576
      %580 = vset.pattern.permute.xlu0 0
      %581 = vperm.xlu0 %580, %v551
      %v582 = vpop.permute.xlu0 %581
      %585 = vset.pattern.permute.xlu0 0
      %586 = vperm.xlu0 %585, %v552
      %v587 = vpop.permute.xlu0 %586
      %590 = vset.pattern.permute.xlu0 0
      %591 = vperm.xlu0 %590, %v553
      %v592 = vpop.permute.xlu0 %591
      %595 = vset.pattern.permute.xlu0 0
      %596 = vperm.xlu0 %595, %v554
      %v597 = vpop.permute.xlu0 %596
      %600 = vset.pattern.permute.xlu0 0
      %601 = vperm.xlu0 %600, %v555
      %v602 = vpop.permute.xlu0 %601
      %605 = vset.pattern.permute.xlu0 0
      %606 = vperm.xlu0 %605, %v556
      %v607 = vpop.permute.xlu0 %606
      %610 = vset.pattern.permute.xlu0 0
      %611 = vperm.xlu0 %610, %v557
      %v612 = vpop.permute.xlu0 %611
      %615 = vset.pattern.permute.xlu0 0
      %616 = vperm.xlu0 %615, %v558
      %v617 = vpop.permute.xlu0 %616
      %620 = vset.pattern.permute.xlu0 0
      %621 = vperm.xlu0 %620, %v559
      %v622 = vpop.permute.xlu0 %621
      %625 = vset.pattern.permute.xlu0 0
      %626 = vperm.xlu0 %625, %v560
      %v627 = vpop.permute.xlu0 %626
      %630 = vset.pattern.permute.xlu0 0
      %631 = vperm.xlu0 %630, %v561
      %v632 = vpop.permute.xlu0 %631
      %635 = vset.pattern.permute.xlu0 0
      %636 = vperm.xlu0 %635, %v562
      %v637 = vpop.permute.xlu0 %636
      %640 = vset.pattern.permute.xlu0 0
      %641 = vperm.xlu0 %640, %v563
      %v642 = vpop.permute.xlu0 %641
      %vm644 = vcmask 261120
      %v646 = vsel %vm644, %v532, 0
      %v649 = vsel %vm644, %v533, 0
      %v652 = vsel %vm644, %v534, 0
      %v655 = vsel %vm644, %v535, 0
      %v658 = vsel %vm644, %v536, 0
      %v661 = vsel %vm644, %v537, 0
      %v664 = vsel %vm644, %v538, 0
      %v667 = vsel %vm644, %v539, 0
      %v670 = vsel %vm644, %v540, 0
      %v673 = vsel %vm644, %v541, 0
      %v676 = vsel %vm644, %v542, 0
      %v679 = vsel %vm644, %v543, 0
      %v682 = vsel %vm644, %v544, 0
      %v685 = vsel %vm644, %v545, 0
      %v688 = vsel %vm644, %v546, 0
      %v691 = vsel %vm644, %v547, 0
      %693 = vmatpush.msra.mxu0 0.0
      %694 = vmatpush.msra.mxu0 0.0
      %695 = vmatpush.msra.mxu0 0.0
      %696 = vmatpush.msra.mxu0 0.0
      %697 = vmatpush.msra.mxu0 0.0
      %698 = vmatpush.msra.mxu0 0.0
      %699 = vmatpush.msra.mxu0 0.0
      %700 = vmatpush.msra.mxu0 0.0
      %701 = vmatpush.msra.mxu0 0.0
      %702 = vmatpush.msra.mxu0 0.0
      %703 = vmatpush.msra.mxu0 0.0
      %704 = vmatpush.msra.mxu0 0.0
      %705 = vmatpush.msra.mxu0 %v530
      %706 = vmatpush.msra.mxu0 %v527
      %707 = vmatpush.msra.mxu0 %v524
      %708 = vmatpush.msra.mxu0 %v521
      %709 = vmatmul.f32.gmra.mxu0 %v646
      %v710 = vpop.f32.mrf.mxu0
      %v711 = vadd.f32 %v567, %v710
      %712 = vmatmul.f32.gmra.mxu0 %v649
      %v713 = vpop.f32.mrf.mxu0
      %v714 = vadd.f32 %v572, %v713
      %715 = vmatmul.f32.gmra.mxu0 %v652
      %v716 = vpop.f32.mrf.mxu0
      %v717 = vadd.f32 %v577, %v716
      %718 = vmatmul.f32.gmra.mxu0 %v655
      %v719 = vpop.f32.mrf.mxu0
      %v720 = vadd.f32 %v582, %v719
      %721 = vmatmul.f32.gmra.mxu0 %v658
      %v722 = vpop.f32.mrf.mxu0
      %v723 = vadd.f32 %v587, %v722
      %724 = vmatmul.f32.gmra.mxu0 %v661
      %v725 = vpop.f32.mrf.mxu0
      %v726 = vadd.f32 %v592, %v725
      %727 = vmatmul.f32.gmra.mxu0 %v664
      %v728 = vpop.f32.mrf.mxu0
      %v729 = vadd.f32 %v597, %v728
      %730 = vmatmul.f32.gmra.mxu0 %v667
      %v731 = vpop.f32.mrf.mxu0
      %v732 = vadd.f32 %v602, %v731
      %733 = vmatmul.f32.gmra.mxu0 %v670
      %v734 = vpop.f32.mrf.mxu0
      %v735 = vadd.f32 %v607, %v734
      %736 = vmatmul.f32.gmra.mxu0 %v673
      %v737 = vpop.f32.mrf.mxu0
      %v738 = vadd.f32 %v612, %v737
      %739 = vmatmul.f32.gmra.mxu0 %v676
      %v740 = vpop.f32.mrf.mxu0
      %v741 = vadd.f32 %v617, %v740
      %742 = vmatmul.f32.gmra.mxu0 %v679
      %v743 = vpop.f32.mrf.mxu0
      %v744 = vadd.f32 %v622, %v743
      %745 = vmatmul.f32.gmra.mxu0 %v682
      %v746 = vpop.f32.mrf.mxu0
      %v747 = vadd.f32 %v627, %v746
      %748 = vmatmul.f32.gmra.mxu0 %v685
      %v749 = vpop.f32.mrf.mxu0
      %v750 = vadd.f32 %v632, %v749
      %751 = vmatmul.f32.gmra.mxu0 %v688
      %v752 = vpop.f32.mrf.mxu0
      %v753 = vadd.f32 %v637, %v752
      %754 = vmatmul.f32.gmra.mxu0 %v691
      %v755 = vpop.f32.mrf.mxu0
      %v756 = vadd.f32 %v642, %v755
      %757 = vdwg.mxu0
      %v758 = vmax.f32 %v711, 0.0
      %v759 = vmax.f32 %v714, 0.0
      %v760 = vmax.f32 %v717, 0.0
      %v761 = vmax.f32 %v720, 0.0
      %v762 = vmax.f32 %v723, 0.0
      %v763 = vmax.f32 %v726, 0.0
      %v764 = vmax.f32 %v729, 0.0
      %v765 = vmax.f32 %v732, 0.0
      %v766 = vmax.f32 %v735, 0.0
      %v767 = vmax.f32 %v738, 0.0
      %v768 = vmax.f32 %v741, 0.0
      %v769 = vmax.f32 %v744, 0.0
      %v770 = vmax.f32 %v747, 0.0
      %v771 = vmax.f32 %v750, 0.0
      %v772 = vmax.f32 %v753, 0.0
      %v773 = vmax.f32 %v756, 0.0
      %v774 = vld [vmem:[%s7] sm:$0xff]
      %v775 = vld [vmem:[%s7 + $0x8] sm:$0xf]
      %v776 = vld [vmem:[%s8] sm:$0xff]
      %v777 = vld [vmem:[%s8 + $0x8] sm:$0xf]
      %779 = vset.pattern.permute.xlu0 0
      %780 = vperm.xlu0 %779, %v776
      %v781 = vpop.permute.xlu0 %780
      %784 = vset.pattern.permute.xlu0 0
      %785 = vperm.xlu0 %784, %v777
      %v786 = vpop.permute.xlu0 %785
      %788 = vmatpush.msra.mxu0 %v773
      %789 = vmatpush.msra.mxu0 %v772
      %790 = vmatpush.msra.mxu0 %v771
      %791 = vmatpush.msra.mxu0 %v770
      %792 = vmatpush.msra.mxu0 %v769
      %793 = vmatpush.msra.mxu0 %v768
      %794 = vmatpush.msra.mxu0 %v767
      %795 = vmatpush.msra.mxu0 %v766
      %796 = vmatpush.msra.mxu0 %v765
      %797 = vmatpush.msra.mxu0 %v764
      %798 = vmatpush.msra.mxu0 %v763
      %799 = vmatpush.msra.mxu0 %v762
      %800 = vmatpush.msra.mxu0 %v761
      %801 = vmatpush.msra.mxu0 %v760
      %802 = vmatpush.msra.mxu0 %v759
      %803 = vmatpush.msra.mxu0 %v758
      %804 = vmatmul.f32.gmra.mxu0 %v774
      %v805 = vpop.f32.mrf.mxu0
      %v806 = vadd.f32 %v781, %v805
      %807 = vmatmul.f32.gmra.mxu0 %v775
      %v808 = vpop.f32.mrf.mxu0
      %v809 = vadd.f32 %v786, %v808
      %810 = vdwg.mxu0
      %811 = vst.msk [vmem:[%s332] sm:$0xff] %vm359, %v806
      %vm812 = vcmask 519168
      %813 = vst.msk [vmem:[%s332 + $0x8] sm:$0xf] %vm812, %v809
      %p814 = scmp.lt.s32.totalorder %s20, 15
      %s815 = scalar_select %p814, %s20, 15
      %s816 = smul.addr %s815, 2
      %s817 = smul.addr %s816, 8
      %s818 = scalar_lea.vmem %s9, %s817
      // Predicated region
      $region57: #{sfadnet_forward.16} parent=55 // pred_check
        %p819 = pneg %p232
      $region58: #{sfadnet_forward.16} parent=55 // pred_check_branch
        %821 = sbr.rel (%p819) target = $region60
      $region59: #{sfadnet_forward.16} parent=55 // pred_region
        _
      $region60: #{sfadnet_forward.16} parent=55 // pred_fallthru
        _
    $region56: #{sfadnet_forward.16} parent=5 // pred_fallthru
      _
    %p822 = scmp.le.s32.totalorder 2, %s15
    // Predicated region
    $region61: #{sfadnet_forward.16} parent=5 // pred_check
      %p823 = pneg %p822
    $region62: #{sfadnet_forward.16} parent=5 // pred_check_branch
      %825 = sbr.rel (%p823) target = $region64
    $region63: #{sfadnet_forward.16} parent=5 // pred_region
      %s826 = ssub.s32 %s15, 2
      // Predicated region
      $region65: #{sfadnet_forward.16} parent=63 // pred_check
        %p827 = pneg %p238
      $region66: #{sfadnet_forward.16} parent=63 // pred_check_branch
        %829 = sbr.rel (%p827) target = $region68
      $region67: #{sfadnet_forward.16} parent=63 // pred_region
        %p830 = scmp.lt.s32.totalorder %s21, 15
        %s831 = scalar_select %p830, %s21, 15
        %s832 = smul.addr %s831, 2
        %s833 = smul.addr %s832, 8
        %s834 = scalar_lea.vmem %s9, %s833
      $region68: #{sfadnet_forward.16} parent=63 // pred_fallthru
        _
    $region64: #{sfadnet_forward.16} parent=5 // pred_fallthru
      _
  $region6: #{sfadnet_forward.16} parent=0 // loop_footer
    %s19 = sadd.s32 1, %s15
  $region7: #{sfadnet_forward.16} parent=0 // loop_footer_branch
    %14 = sbr.rel target = $region3
  $region8: #{sfadnet_forward.16} parent=0 // loop_exit
    _

// kernel: sfadnet_forward.17
$region0: #{sfadnet_forward.17}
  #allocation0 [shape = 'u32[]', space=smem, size = 0x4, offset = 0x4, fixed_abs, tag = 'smem constant byte address 0x4 - core index']
  #allocation1 [shape = 'u32[72,128]{1,0:T(1,128)}', space=vmem, size = 0x9000, scoped, tag = 'internal scratch']
  %s0 = inlined_call_operand.vmem [shape: f32[16,12,128], index: 0, kind: input, shape index: {}]
  %s1 = inlined_call_operand.vmem [shape: f32[128,512], index: 1, kind: input, shape index: {}]
  %s2 = inlined_call_operand.vmem [shape: f32[1,512], index: 2, kind: input, shape index: {}]
  %s3 = inlined_call_operand.vmem [shape: f32[512,3], index: 3, kind: input, shape index: {}]
  %s4 = inlined_call_operand.vmem [shape: f32[1,3], index: 4, kind: input, shape index: {}]
  %s5 = inlined_call_operand.vmem [shape: f32[4,12], index: 5, kind: input, shape index: {}]
  %s6 = inlined_call_operand.vmem [shape: f32[4,1], index: 6, kind: input, shape index: {}]
  %s7 = inlined_call_operand.vmem [shape: f32[16,4,3], index: 7, kind: output, shape index: {}]
  %s8 = sld [smem:[#allocation0]]
  $region61: #{sfadnet_forward.17} parent=0
    _
  %s10 = ssub.s32 1, %s8
  %s11 = scalar_select 0, %s10, %s8
  loop: start=0, step=1, limit=18
  $region2: #{sfadnet_forward.17} parent=0 // loop_pre_header
    _
  $region3: #{sfadnet_forward.17} parent=0 // loop_header
    %s13 = sphi 0, %s17
    %p14 = scmp.ge.s32.totalorder %s13, 18
    %s23 = sphi 0, %s25
    %s26 = sphi 0, %s23
    %s27 = sphi 0, %s26
    %s43 = sphi 0, %s27
    %s47 = sphi 0, %s47
    %s49 = sphi 0, %s47
    %s50 = sphi 0, %s49
    %s64 = sphi 0, %s50
    %s68 = sphi 0, %s68
    %s70 = sphi 0, %s68
    %s71 = sphi 0, %s70
    %s85 = sphi 0, %s71
    %s89 = sphi 0, %s89
    %s91 = sphi 0, %s89
    %s92 = sphi 0, %s91
    %s106 = sphi 0, %s92
    %s110 = sphi 0, %s110
    %s112 = sphi 0, %s110
    %s113 = sphi 0, %s112
    %s127 = sphi 0, %s113
    %s131 = sphi 0, %s131
    %s133 = sphi 0, %s131
    %s134 = sphi 0, %s133
    %s148 = sphi 0, %s134
    %s152 = sphi 0, %s152
    %s154 = sphi 0, %s152
    %s155 = sphi 0, %s154
    %s169 = sphi 0, %s155
    %s175 = sphi 0, %s177
    %s178 = sphi 0, %s175
    %s179 = sphi 0, %s178
    %s195 = sphi 0, %s179
  $region4: #{sfadnet_forward.17} parent=0 // loop_header_branch
    %16 = sbr.rel (%p14) target = $region8
  $region5: #{sfadnet_forward.17} parent=0 // loop_body
    %s18 = ssub.s32 %s13, 1
    %s19 = ssub.s32 %s13, 2
    %s20 = sadd.s32 %s13, 1
    %s21 = ssub.s32 %s13, %s20
    %p22 = scmp.eq.s32.totalorder %s21, 0
    %s24 = sadd.s32 %s23, 1
    %s25 = scalar_select %p22, %s23, %s24
    %p28 = pneg %p22
    %p29 = scmp.eq.s32.totalorder %s13, 15
    %p30 = por %p28, %p29
    %p31 = scmp.ne.s32.totalorder %s23, %s26
    %p32 = scmp.eq.s32.totalorder %s13, 0
    %p33 = por %p31, %p32
    %p34 = scmp.ne.s32.totalorder %s23, %s26
    %p35 = scmp.eq.s32.totalorder %s18, 15
    %p36 = por %p34, %p35
    %p37 = scmp.ne.s32.totalorder %s26, %s27
    %p38 = scmp.eq.s32.totalorder %s18, 0
    %p39 = por %p37, %p38
    %p40 = scmp.ne.s32.totalorder %s26, %s27
    %p41 = scmp.eq.s32.totalorder %s19, 15
    %p42 = por %p40, %p41
    %p44 = scmp.ne.s32.totalorder %s27, %s43
    %p45 = scmp.eq.s32.totalorder %s19, 0
    %p46 = por %p44, %p45
    %s48 = sadd.s32 %s47, 1
    %p51 = scmp.eq.s32.totalorder %s13, 15
    %p52 = scmp.ne.s32.totalorder %s47, %s49
    %p53 = scmp.eq.s32.totalorder %s13, 0
    %p54 = por %p52, %p53
    %p55 = scmp.ne.s32.totalorder %s47, %s49
    %p56 = scmp.eq.s32.totalorder %s18, 15
    %p57 = por %p55, %p56
    %p58 = scmp.ne.s32.totalorder %s49, %s50
    %p59 = scmp.eq.s32.totalorder %s18, 0
    %p60 = por %p58, %p59
    %p61 = scmp.ne.s32.totalorder %s49, %s50
    %p62 = scmp.eq.s32.totalorder %s19, 15
    %p63 = por %p61, %p62
    %p65 = scmp.ne.s32.totalorder %s50, %s64
    %p66 = scmp.eq.s32.totalorder %s19, 0
    %p67 = por %p65, %p66
    %s69 = sadd.s32 %s68, 1
    %p72 = scmp.eq.s32.totalorder %s13, 15
    %p73 = scmp.ne.s32.totalorder %s68, %s70
    %p74 = scmp.eq.s32.totalorder %s13, 0
    %p75 = por %p73, %p74
    %p76 = scmp.ne.s32.totalorder %s68, %s70
    %p77 = scmp.eq.s32.totalorder %s18, 15
    %p78 = por %p76, %p77
    %p79 = scmp.ne.s32.totalorder %s70, %s71
    %p80 = scmp.eq.s32.totalorder %s18, 0
    %p81 = por %p79, %p80
    %p82 = scmp.ne.s32.totalorder %s70, %s71
    %p83 = scmp.eq.s32.totalorder %s19, 15
    %p84 = por %p82, %p83
    %p86 = scmp.ne.s32.totalorder %s71, %s85
    %p87 = scmp.eq.s32.totalorder %s19, 0
    %p88 = por %p86, %p87
    %s90 = sadd.s32 %s89, 1
    %p93 = scmp.eq.s32.totalorder %s13, 15
    %p94 = scmp.ne.s32.totalorder %s89, %s91
    %p95 = scmp.eq.s32.totalorder %s13, 0
    %p96 = por %p94, %p95
    %p97 = scmp.ne.s32.totalorder %s89, %s91
    %p98 = scmp.eq.s32.totalorder %s18, 15
    %p99 = por %p97, %p98
    %p100 = scmp.ne.s32.totalorder %s91, %s92
    %p101 = scmp.eq.s32.totalorder %s18, 0
    %p102 = por %p100, %p101
    %p103 = scmp.ne.s32.totalorder %s91, %s92
    %p104 = scmp.eq.s32.totalorder %s19, 15
    %p105 = por %p103, %p104
    %p107 = scmp.ne.s32.totalorder %s92, %s106
    %p108 = scmp.eq.s32.totalorder %s19, 0
    %p109 = por %p107, %p108
    %s111 = sadd.s32 %s110, 1
    %p114 = scmp.eq.s32.totalorder %s13, 15
    %p115 = scmp.ne.s32.totalorder %s110, %s112
    %p116 = scmp.eq.s32.totalorder %s13, 0
    %p117 = por %p115, %p116
    %p118 = scmp.ne.s32.totalorder %s110, %s112
    %p119 = scmp.eq.s32.totalorder %s18, 15
    %p120 = por %p118, %p119
    %p121 = scmp.ne.s32.totalorder %s112, %s113
    %p122 = scmp.eq.s32.totalorder %s18, 0
    %p123 = por %p121, %p122
    %p124 = scmp.ne.s32.totalorder %s112, %s113
    %p125 = scmp.eq.s32.totalorder %s19, 15
    %p126 = por %p124, %p125
    %p128 = scmp.ne.s32.totalorder %s113, %s127
    %p129 = scmp.eq.s32.totalorder %s19, 0
    %p130 = por %p128, %p129
    %s132 = sadd.s32 %s131, 1
    %p135 = scmp.eq.s32.totalorder %s13, 15
    %p136 = scmp.ne.s32.totalorder %s131, %s133
    %p137 = scmp.eq.s32.totalorder %s13, 0
    %p138 = por %p136, %p137
    %p139 = scmp.ne.s32.totalorder %s131, %s133
    %p140 = scmp.eq.s32.totalorder %s18, 15
    %p141 = por %p139, %p140
    %p142 = scmp.ne.s32.totalorder %s133, %s134
    %p143 = scmp.eq.s32.totalorder %s18, 0
    %p144 = por %p142, %p143
    %p145 = scmp.ne.s32.totalorder %s133, %s134
    %p146 = scmp.eq.s32.totalorder %s19, 15
    %p147 = por %p145, %p146
    %p149 = scmp.ne.s32.totalorder %s134, %s148
    %p150 = scmp.eq.s32.totalorder %s19, 0
    %p151 = por %p149, %p150
    %s153 = sadd.s32 %s152, 1
    %p156 = scmp.eq.s32.totalorder %s13, 15
    %p157 = scmp.ne.s32.totalorder %s152, %s154
    %p158 = scmp.eq.s32.totalorder %s13, 0
    %p159 = por %p157, %p158
    %p160 = scmp.ne.s32.totalorder %s152, %s154
    %p161 = scmp.eq.s32.totalorder %s18, 15
    %p162 = por %p160, %p161
    %p163 = scmp.ne.s32.totalorder %s154, %s155
    %p164 = scmp.eq.s32.totalorder %s18, 0
    %p165 = por %p163, %p164
    %p166 = scmp.ne.s32.totalorder %s154, %s155
    %p167 = scmp.eq.s32.totalorder %s19, 15
    %p168 = por %p166, %p167
    %p170 = scmp.ne.s32.totalorder %s155, %s169
    %p171 = scmp.eq.s32.totalorder %s19, 0
    %p172 = por %p170, %p171
    %s173 = ssub.s32 %s13, %s20
    %p174 = scmp.eq.s32.totalorder %s173, 0
    %s176 = sadd.s32 %s175, 1
    %s177 = scalar_select %p174, %s175, %s176
    %p180 = pneg %p174
    %p181 = scmp.eq.s32.totalorder %s13, 15
    %p182 = por %p180, %p181
    %p183 = scmp.ne.s32.totalorder %s175, %s178
    %p184 = scmp.eq.s32.totalorder %s13, 0
    %p185 = por %p183, %p184
    %p186 = scmp.ne.s32.totalorder %s175, %s178
    %p187 = scmp.eq.s32.totalorder %s18, 15
    %p188 = por %p186, %p187
    %p189 = scmp.ne.s32.totalorder %s178, %s179
    %p190 = scmp.eq.s32.totalorder %s18, 0
    %p191 = por %p189, %p190
    %p192 = scmp.ne.s32.totalorder %s178, %s179
    %p193 = scmp.eq.s32.totalorder %s19, 15
    %p194 = por %p192, %p193
    %p196 = scmp.ne.s32.totalorder %s179, %s195
    %p197 = scmp.eq.s32.totalorder %s19, 0
    %p198 = por %p196, %p197
    %p199 = scmp.le.s32.totalorder 1, %s13
    %p200 = scmp.lt.s32.totalorder %s13, 17
    %p201 = pnand %p199, %p200
    %p202 = pneg %p201
    // Predicated region
    $region9: #{sfadnet_forward.17} parent=5 // pred_check
      _
    $region10: #{sfadnet_forward.17} parent=5 // pred_check_branch
      %204 = sbr.rel (%p201) target = $region12
    $region11: #{sfadnet_forward.17} parent=5 // pred_region
      %s205 = ssub.s32 %s13, 1
      // Predicated region
      $region13: #{sfadnet_forward.17} parent=11 // pred_check
        %p206 = pneg %p60
      $region14: #{sfadnet_forward.17} parent=11 // pred_check_branch
        %208 = sbr.rel (%p206) target = $region16
      $region15: #{sfadnet_forward.17} parent=11 // pred_region
        _
      $region16: #{sfadnet_forward.17} parent=11 // pred_fallthru
        _
      // Predicated region
      $region17: #{sfadnet_forward.17} parent=11 // pred_check
        %p209 = pneg %p81
      $region18: #{sfadnet_forward.17} parent=11 // pred_check_branch
        %211 = sbr.rel (%p209) target = $region20
      $region19: #{sfadnet_forward.17} parent=11 // pred_region
        _
      $region20: #{sfadnet_forward.17} parent=11 // pred_fallthru
        _
      // Predicated region
      $region21: #{sfadnet_forward.17} parent=11 // pred_check
        %p212 = pneg %p102
      $region22: #{sfadnet_forward.17} parent=11 // pred_check_branch
        %214 = sbr.rel (%p212) target = $region24
      $region23: #{sfadnet_forward.17} parent=11 // pred_region
        _
      $region24: #{sfadnet_forward.17} parent=11 // pred_fallthru
        _
      // Predicated region
      $region25: #{sfadnet_forward.17} parent=11 // pred_check
        %p215 = pneg %p123
      $region26: #{sfadnet_forward.17} parent=11 // pred_check_branch
        %217 = sbr.rel (%p215) target = $region28
      $region27: #{sfadnet_forward.17} parent=11 // pred_region
        _
      $region28: #{sfadnet_forward.17} parent=11 // pred_fallthru
        _
      // Predicated region
      $region29: #{sfadnet_forward.17} parent=11 // pred_check
        %p218 = pneg %p144
      $region30: #{sfadnet_forward.17} parent=11 // pred_check_branch
        %220 = sbr.rel (%p218) target = $region32
      $region31: #{sfadnet_forward.17} parent=11 // pred_region
        _
      $region32: #{sfadnet_forward.17} parent=11 // pred_fallthru
        _
      // Predicated region
      $region33: #{sfadnet_forward.17} parent=11 // pred_check
        %p221 = pneg %p165
      $region34: #{sfadnet_forward.17} parent=11 // pred_check_branch
        %223 = sbr.rel (%p221) target = $region36
      $region35: #{sfadnet_forward.17} parent=11 // pred_region
        _
      $region36: #{sfadnet_forward.17} parent=11 // pred_fallthru
        _
    $region12: #{sfadnet_forward.17} parent=5 // pred_fallthru
      _
    %p224 = scmp.lt.s32.totalorder %s13, 16
    // Predicated region
    $region37: #{sfadnet_forward.17} parent=5 // pred_check
      %p225 = pneg %p224
    $region38: #{sfadnet_forward.17} parent=5 // pred_check_branch
      %227 = sbr.rel (%p225) target = $region40
    $region39: #{sfadnet_forward.17} parent=5 // pred_region
      // Predicated region
      $region41: #{sfadnet_forward.17} parent=39 // pred_check
        %p228 = pneg %p33
      $region42: #{sfadnet_forward.17} parent=39 // pred_check_branch
        %230 = sbr.rel (%p228) target = $region44
      $region43: #{sfadnet_forward.17} parent=39 // pred_region
        %p231 = scmp.lt.s32.totalorder %s13, 15
        %s232 = scalar_select %p231, %s13, 15
        %s233 = smul.addr %s232, 2
        %s234 = smul.addr %s233, 8
        %s235 = scalar_lea.vmem %s0, %s234
      $region44: #{sfadnet_forward.17} parent=39 // pred_fallthru
        _
    $region40: #{sfadnet_forward.17} parent=5 // pred_fallthru
      _
    %p236 = scmp.le.s32.totalorder 1, %s13
    %p237 = scmp.lt.s32.totalorder %s13, 17
    %p238 = pnand %p236, %p237
    %p239 = pneg %p238
    // Predicated region
    $region45: #{sfadnet_forward.17} parent=5 // pred_check
      _
    $region46: #{sfadnet_forward.17} parent=5 // pred_check_branch
      %241 = sbr.rel (%p238) target = $region48
    $region47: #{sfadnet_forward.17} parent=5 // pred_region
      %s242 = ssub.s32 %s13, 1
      %p243 = scmp.lt.s32.totalorder %s18, 15
      %s244 = scalar_select %p243, %s18, 15
      %s245 = smul.addr %s244, 2
      %s246 = smul.addr %s245, 8
      %s247 = scalar_lea.vmem %s0, %s246
      %p248 = pneg %p39
      %p249 = pneg %p36
      %p250 = pneg %p60
      %p251 = pneg %p57
      %p252 = pneg %p81
      %p253 = pneg %p78
      %p254 = pneg %p102
      %p255 = pneg %p99
      %p256 = pneg %p123
      %p257 = pneg %p120
      %p258 = pneg %p144
      %p259 = pneg %p141
      %p260 = pneg %p165
      %p261 = pneg %p162
      %p262 = pneg %p191
      %p263 = pneg %p188
      %p264 = scmp.lt.s32.totalorder %s18, 15
      %s265 = scalar_select %p264, %s18, 15
      %s266 = smul.addr %s265, 4
      %s267 = scalar_lea.vmem %s7, %s266
      %p268 = scmp.lt.s32.totalorder %s18, 15
      %s269 = scalar_select %p268, %s18, 15
      %s270 = smul.addr %s269, 2
      %s271 = smul.addr %s270, 8
      %s272 = scalar_lea.vmem %s0, %s271
      %p273 = scmp.lt.s32.totalorder %s18, 15
      %s274 = scalar_select %p273, %s18, 15
      %s275 = smul.addr %s274, 4
      %s276 = scalar_lea.vmem %s7, %s275
      %v277 = vld [vmem:[%s272] sm:$0xff]
      %v278 = vld [vmem:[%s272 + $0x8] sm:$0xf]
      %v279 = vmax.f32 %v277, 0.0
      %v280 = vmax.f32 %v278, 0.0
      %v281 = vld [vmem:[%s1] sm:$0xff]
      %v282 = vld [vmem:[%s1 + $0x8] sm:$0xff]
      %v283 = vld [vmem:[%s1 + $0x10] sm:$0xff]
      %v284 = vld [vmem:[%s1 + $0x18] sm:$0xff]
      %v285 = vld [vmem:[%s1 + $0x20] sm:$0xff]
      %v286 = vld [vmem:[%s1 + $0x28] sm:$0xff]
      %v287 = vld [vmem:[%s1 + $0x30] sm:$0xff]
      %v288 = vld [vmem:[%s1 + $0x38] sm:$0xff]
      %v289 = vld [vmem:[%s1 + $0x40] sm:$0xff]
      %v290 = vld [vmem:[%s1 + $0x48] sm:$0xff]
      %v291 = vld [vmem:[%s1 + $0x50] sm:$0xff]
      %v292 = vld [vmem:[%s1 + $0x58] sm:$0xff]
      %v293 = vld [vmem:[%s1 + $0x60] sm:$0xff]
      %v294 = vld [vmem:[%s1 + $0x68] sm:$0xff]
      %v295 = vld [vmem:[%s1 + $0x70] sm:$0xff]
      %v296 = vld [vmem:[%s1 + $0x78] sm:$0xff]
      %v297 = vld [vmem:[%s1 + $0x80] sm:$0xff]
      %v298 = vld [vmem:[%s1 + $0x88] sm:$0xff]
      %v299 = vld [vmem:[%s1 + $0x90] sm:$0xff]
      %v300 = vld [vmem:[%s1 + $0x98] sm:$0xff]
      %v301 = vld [vmem:[%s1 + $0xa0] sm:$0xff]
      %v302 = vld [vmem:[%s1 + $0xa8] sm:$0xff]
      %v303 = vld [vmem:[%s1 + $0xb0] sm:$0xff]
      %v304 = vld [vmem:[%s1 + $0xb8] sm:$0xff]
      %v305 = vld [vmem:[%s1 + $0xc0] sm:$0xff]
      %v306 = vld [vmem:[%s1 + $0xc8] sm:$0xff]
      %v307 = vld [vmem:[%s1 + $0xd0] sm:$0xff]
      %v308 = vld [vmem:[%s1 + $0xd8] sm:$0xff]
      %v309 = vld [vmem:[%s1 + $0xe0] sm:$0xff]
      %v310 = vld [vmem:[%s1 + $0xe8] sm:$0xff]
      %v311 = vld [vmem:[%s1 + $0xf0] sm:$0xff]
      %v312 = vld [vmem:[%s1 + $0xf8] sm:$0xff]
      %v313 = vld [vmem:[%s1 + $0x100] sm:$0xff]
      %v314 = vld [vmem:[%s1 + $0x108] sm:$0xff]
      %v315 = vld [vmem:[%s1 + $0x110] sm:$0xff]
      %v316 = vld [vmem:[%s1 + $0x118] sm:$0xff]
      %v317 = vld [vmem:[%s1 + $0x120] sm:$0xff]
      %v318 = vld [vmem:[%s1 + $0x128] sm:$0xff]
      %v319 = vld [vmem:[%s1 + $0x130] sm:$0xff]
      %v320 = vld [vmem:[%s1 + $0x138] sm:$0xff]
      %v321 = vld [vmem:[%s1 + $0x140] sm:$0xff]
      %v322 = vld [vmem:[%s1 + $0x148] sm:$0xff]
      %v323 = vld [vmem:[%s1 + $0x150] sm:$0xff]
      %v324 = vld [vmem:[%s1 + $0x158] sm:$0xff]
      %v325 = vld [vmem:[%s1 + $0x160] sm:$0xff]
      %v326 = vld [vmem:[%s1 + $0x168] sm:$0xff]
      %v327 = vld [vmem:[%s1 + $0x170] sm:$0xff]
      %v328 = vld [vmem:[%s1 + $0x178] sm:$0xff]
      %v329 = vld [vmem:[%s1 + $0x180] sm:$0xff]
      %v330 = vld [vmem:[%s1 + $0x188] sm:$0xff]
      %v331 = vld [vmem:[%s1 + $0x190] sm:$0xff]
      %v332 = vld [vmem:[%s1 + $0x198] sm:$0xff]
      %v333 = vld [vmem:[%s1 + $0x1a0] sm:$0xff]
      %v334 = vld [vmem:[%s1 + $0x1a8] sm:$0xff]
      %v335 = vld [vmem:[%s1 + $0x1b0] sm:$0xff]
      %v336 = vld [vmem:[%s1 + $0x1b8] sm:$0xff]
      %v337 = vld [vmem:[%s1 + $0x1c0] sm:$0xff]
      %v338 = vld [vmem:[%s1 + $0x1c8] sm:$0xff]
      %v339 = vld [vmem:[%s1 + $0x1d0] sm:$0xff]
      %v340 = vld [vmem:[%s1 + $0x1d8] sm:$0xff]
      %v341 = vld [vmem:[%s1 + $0x1e0] sm:$0xff]
      %v342 = vld [vmem:[%s1 + $0x1e8] sm:$0xff]
      %v343 = vld [vmem:[%s1 + $0x1f0] sm:$0xff]
      %v344 = vld [vmem:[%s1 + $0x1f8] sm:$0xff]
      %v345 = vld [vmem:[%s2] sm:$0xf]
      %v347 = vperm.slane %v345, 0
      %v348 = vperm.slane %v345, 1
      %v349 = vperm.slane %v345, 2
      %v350 = vperm.slane %v345, 3
      %355 = vmatpush.msra.mxu0 %v341
      %356 = vmatpush.msra.mxu0 %v337
      %357 = vmatpush.msra.mxu0 %v333
      %358 = vmatpush.msra.mxu0 %v329
      %359 = vmatpush.msra.mxu0 %v325
      %360 = vmatpush.msra.mxu0 %v321
      %361 = vmatpush.msra.mxu0 %v317
      %362 = vmatpush.msra.mxu0 %v313
      %363 = vmatpush.msra.mxu0 %v309
      %364 = vmatpush.msra.mxu0 %v305
      %365 = vmatpush.msra.mxu0 %v301
      %366 = vmatpush.msra.mxu0 %v297
      %367 = vmatpush.msra.mxu0 %v293
      %368 = vmatpush.msra.mxu0 %v289
      %369 = vmatpush.msra.mxu0 %v285
      %370 = vmatpush.msra.mxu0 %v281
      %371 = vmatmul.f32.gmra.mxu0 %v279
      %v372 = vpop.f32.mrf.mxu0
      %v373 = vadd.f32 %v347, %v372
      %374 = vmatmul.f32.gmra.mxu0 %v280
      %v375 = vpop.f32.mrf.mxu0
      %v376 = vadd.f32 %v347, %v375
      %377 = vdwg.mxu0
      %378 = vmatpush.msra.mxu0 %v342
      %379 = vmatpush.msra.mxu0 %v338
      %380 = vmatpush.msra.mxu0 %v334
      %381 = vmatpush.msra.mxu0 %v330
      %382 = vmatpush.msra.mxu0 %v326
      %383 = vmatpush.msra.mxu0 %v322
      %384 = vmatpush.msra.mxu0 %v318
      %385 = vmatpush.msra.mxu0 %v314
      %386 = vmatpush.msra.mxu0 %v310
      %387 = vmatpush.msra.mxu0 %v306
      %388 = vmatpush.msra.mxu0 %v302
      %389 = vmatpush.msra.mxu0 %v298
      %390 = vmatpush.msra.mxu0 %v294
      %391 = vmatpush.msra.mxu0 %v290
      %392 = vmatpush.msra.mxu0 %v286
      %393 = vmatpush.msra.mxu0 %v282
      %394 = vmatmul.f32.gmra.mxu0 %v279
      %v395 = vpop.f32.mrf.mxu0
      %v396 = vadd.f32 %v348, %v395
      %397 = vmatmul.f32.gmra.mxu0 %v280
      %v398 = vpop.f32.mrf.mxu0
      %v399 = vadd.f32 %v348, %v398
      %400 = vdwg.mxu0
      %401 = vmatpush.msra.mxu0 %v343
      %402 = vmatpush.msra.mxu0 %v339
      %403 = vmatpush.msra.mxu0 %v335
      %404 = vmatpush.msra.mxu0 %v331
      %405 = vmatpush.msra.mxu0 %v327
      %406 = vmatpush.msra.mxu0 %v323
      %407 = vmatpush.msra.mxu0 %v319
      %408 = vmatpush.msra.mxu0 %v315
      %409 = vmatpush.msra.mxu0 %v311
      %410 = vmatpush.msra.mxu0 %v307
      %411 = vmatpush.msra.mxu0 %v303
      %412 = vmatpush.msra.mxu0 %v299
      %413 = vmatpush.msra.mxu0 %v295
      %414 = vmatpush.msra.mxu0 %v291
      %415 = vmatpush.msra.mxu0 %v287
      %416 = vmatpush.msra.mxu0 %v283
      %417 = vmatmul.f32.gmra.mxu0 %v279
      %v418 = vpop.f32.mrf.mxu0
      %v419 = vadd.f32 %v349, %v418
      %420 = vmatmul.f32.gmra.mxu0 %v280
      %v421 = vpop.f32.mrf.mxu0
      %v422 = vadd.f32 %v349, %v421
      %423 = vdwg.mxu0
      %424 = vmatpush.msra.mxu0 %v344
      %425 = vmatpush.msra.mxu0 %v340
      %426 = vmatpush.msra.mxu0 %v336
      %427 = vmatpush.msra.mxu0 %v332
      %428 = vmatpush.msra.mxu0 %v328
      %429 = vmatpush.msra.mxu0 %v324
      %430 = vmatpush.msra.mxu0 %v320
      %431 = vmatpush.msra.mxu0 %v316
      %432 = vmatpush.msra.mxu0 %v312
      %433 = vmatpush.msra.mxu0 %v308
      %434 = vmatpush.msra.mxu0 %v304
      %435 = vmatpush.msra.mxu0 %v300
      %436 = vmatpush.msra.mxu0 %v296
      %437 = vmatpush.msra.mxu0 %v292
      %438 = vmatpush.msra.mxu0 %v288
      %439 = vmatpush.msra.mxu0 %v284
      %440 = vmatmul.f32.gmra.mxu0 %v279
      %v441 = vpop.f32.mrf.mxu0
      %v442 = vadd.f32 %v350, %v441
      %443 = vmatmul.f32.gmra.mxu0 %v280
      %v444 = vpop.f32.mrf.mxu0
      %v445 = vadd.f32 %v350, %v444
      %446 = vdwg.mxu0
      %v447 = vmax.f32 %v373, 0.0
      %v448 = vmax.f32 %v396, 0.0
      %v449 = vmax.f32 %v419, 0.0
      %v450 = vmax.f32 %v442, 0.0
      %v451 = vmax.f32 %v376, 0.0
      %v452 = vmax.f32 %v399, 0.0
      %v453 = vmax.f32 %v422, 0.0
      %v454 = vmax.f32 %v445, 0.0
      %v455 = vld [vmem:[%s3] sm:$0xff]
      %v456 = vld [vmem:[%s3 + $0x8] sm:$0xff]
      %v457 = vld [vmem:[%s3 + $0x10] sm:$0xff]
      %v458 = vld [vmem:[%s3 + $0x18] sm:$0xff]
      %v459 = vld [vmem:[%s3 + $0x20] sm:$0xff]
      %v460 = vld [vmem:[%s3 + $0x28] sm:$0xff]
      %v461 = vld [vmem:[%s3 + $0x30] sm:$0xff]
      %v462 = vld [vmem:[%s3 + $0x38] sm:$0xff]
      %v463 = vld [vmem:[%s3 + $0x40] sm:$0xff]
      %v464 = vld [vmem:[%s3 + $0x48] sm:$0xff]
      %v465 = vld [vmem:[%s3 + $0x50] sm:$0xff]
      %v466 = vld [vmem:[%s3 + $0x58] sm:$0xff]
      %v467 = vld [vmem:[%s3 + $0x60] sm:$0xff]
      %v468 = vld [vmem:[%s3 + $0x68] sm:$0xff]
      %v469 = vld [vmem:[%s3 + $0x70] sm:$0xff]
      %v470 = vld [vmem:[%s3 + $0x78] sm:$0xff]
      %v471 = vld [vmem:[%s3 + $0x80] sm:$0xff]
      %v472 = vld [vmem:[%s3 + $0x88] sm:$0xff]
      %v473 = vld [vmem:[%s3 + $0x90] sm:$0xff]
      %v474 = vld [vmem:[%s3 + $0x98] sm:$0xff]
      %v475 = vld [vmem:[%s3 + $0xa0] sm:$0xff]
      %v476 = vld [vmem:[%s3 + $0xa8] sm:$0xff]
      %v477 = vld [vmem:[%s3 + $0xb0] sm:$0xff]
      %v478 = vld [vmem:[%s3 + $0xb8] sm:$0xff]
      %v479 = vld [vmem:[%s3 + $0xc0] sm:$0xff]
      %v480 = vld [vmem:[%s3 + $0xc8] sm:$0xff]
      %v481 = vld [vmem:[%s3 + $0xd0] sm:$0xff]
      %v482 = vld [vmem:[%s3 + $0xd8] sm:$0xff]
      %v483 = vld [vmem:[%s3 + $0xe0] sm:$0xff]
      %v484 = vld [vmem:[%s3 + $0xe8] sm:$0xff]
      %v485 = vld [vmem:[%s3 + $0xf0] sm:$0xff]
      %v486 = vld [vmem:[%s3 + $0xf8] sm:$0xff]
      %v487 = vld [vmem:[%s3 + $0x100] sm:$0xff]
      %v488 = vld [vmem:[%s3 + $0x108] sm:$0xff]
      %v489 = vld [vmem:[%s3 + $0x110] sm:$0xff]
      %v490 = vld [vmem:[%s3 + $0x118] sm:$0xff]
      %v491 = vld [vmem:[%s3 + $0x120] sm:$0xff]
      %v492 = vld [vmem:[%s3 + $0x128] sm:$0xff]
      %v493 = vld [vmem:[%s3 + $0x130] sm:$0xff]
      %v494 = vld [vmem:[%s3 + $0x138] sm:$0xff]
      %v495 = vld [vmem:[%s3 + $0x140] sm:$0xff]
      %v496 = vld [vmem:[%s3 + $0x148] sm:$0xff]
      %v497 = vld [vmem:[%s3 + $0x150] sm:$0xff]
      %v498 = vld [vmem:[%s3 + $0x158] sm:$0xff]
      %v499 = vld [vmem:[%s3 + $0x160] sm:$0xff]
      %v500 = vld [vmem:[%s3 + $0x168] sm:$0xff]
      %v501 = vld [vmem:[%s3 + $0x170] sm:$0xff]
      %v502 = vld [vmem:[%s3 + $0x178] sm:$0xff]
      %v503 = vld [vmem:[%s3 + $0x180] sm:$0xff]
      %v504 = vld [vmem:[%s3 + $0x188] sm:$0xff]
      %v505 = vld [vmem:[%s3 + $0x190] sm:$0xff]
      %v506 = vld [vmem:[%s3 + $0x198] sm:$0xff]
      %v507 = vld [vmem:[%s3 + $0x1a0] sm:$0xff]
      %v508 = vld [vmem:[%s3 + $0x1a8] sm:$0xff]
      %v509 = vld [vmem:[%s3 + $0x1b0] sm:$0xff]
      %v510 = vld [vmem:[%s3 + $0x1b8] sm:$0xff]
      %v511 = vld [vmem:[%s3 + $0x1c0] sm:$0xff]
      %v512 = vld [vmem:[%s3 + $0x1c8] sm:$0xff]
      %v513 = vld [vmem:[%s3 + $0x1d0] sm:$0xff]
      %v514 = vld [vmem:[%s3 + $0x1d8] sm:$0xff]
      %v515 = vld [vmem:[%s3 + $0x1e0] sm:$0xff]
      %v516 = vld [vmem:[%s3 + $0x1e8] sm:$0xff]
      %v517 = vld [vmem:[%s3 + $0x1f0] sm:$0xff]
      %v518 = vld [vmem:[%s3 + $0x1f8] sm:$0xff]
      %v519 = vld [vmem:[%s4] sm:$0x1]
      %v521 = vperm.slane %v519, 0
      %523 = vmatpush.msra.mxu0 %v470
      %524 = vmatpush.msra.mxu0 %v469
      %525 = vmatpush.msra.mxu0 %v468
      %526 = vmatpush.msra.mxu0 %v467
      %527 = vmatpush.msra.mxu0 %v466
      %528 = vmatpush.msra.mxu0 %v465
      %529 = vmatpush.msra.mxu0 %v464
      %530 = vmatpush.msra.mxu0 %v463
      %531 = vmatpush.msra.mxu0 %v462
      %532 = vmatpush.msra.mxu0 %v461
      %533 = vmatpush.msra.mxu0 %v460
      %534 = vmatpush.msra.mxu0 %v459
      %535 = vmatpush.msra.mxu0 %v458
      %536 = vmatpush.msra.mxu0 %v457
      %537 = vmatpush.msra.mxu0 %v456
      %538 = vmatpush.msra.mxu0 %v455
      %539 = vmatmul.f32.gmra.mxu0 %v447
      %v540 = vpop.f32.mrf.mxu0
      %v541 = vadd.f32 %v521, %v540
      %542 = vmatmul.f32.gmra.mxu0 %v451
      %v543 = vpop.f32.mrf.mxu0
      %v544 = vadd.f32 %v521, %v543
      %545 = vdwg.mxu0
      %546 = vmatpush.msra.mxu0 %v486
      %547 = vmatpush.msra.mxu0 %v485
      %548 = vmatpush.msra.mxu0 %v484
      %549 = vmatpush.msra.mxu0 %v483
      %550 = vmatpush.msra.mxu0 %v482
      %551 = vmatpush.msra.mxu0 %v481
      %552 = vmatpush.msra.mxu0 %v480
      %553 = vmatpush.msra.mxu0 %v479
      %554 = vmatpush.msra.mxu0 %v478
      %555 = vmatpush.msra.mxu0 %v477
      %556 = vmatpush.msra.mxu0 %v476
      %557 = vmatpush.msra.mxu0 %v475
      %558 = vmatpush.msra.mxu0 %v474
      %559 = vmatpush.msra.mxu0 %v473
      %560 = vmatpush.msra.mxu0 %v472
      %561 = vmatpush.msra.mxu0 %v471
      %562 = vmatmul.f32.gmra.mxu0 %v448
      %v563 = vpop.f32.mrf.mxu0
      %v564 = vadd.f32 %v541, %v563
      %565 = vmatmul.f32.gmra.mxu0 %v452
      %v566 = vpop.f32.mrf.mxu0
      %v567 = vadd.f32 %v544, %v566
      %568 = vdwg.mxu0
      %569 = vmatpush.msra.mxu0 %v502
      %570 = vmatpush.msra.mxu0 %v501
      %571 = vmatpush.msra.mxu0 %v500
      %572 = vmatpush.msra.mxu0 %v499
      %573 = vmatpush.msra.mxu0 %v498
      %574 = vmatpush.msra.mxu0 %v497
      %575 = vmatpush.msra.mxu0 %v496
      %576 = vmatpush.msra.mxu0 %v495
      %577 = vmatpush.msra.mxu0 %v494
      %578 = vmatpush.msra.mxu0 %v493
      %579 = vmatpush.msra.mxu0 %v492
      %580 = vmatpush.msra.mxu0 %v491
      %581 = vmatpush.msra.mxu0 %v490
      %582 = vmatpush.msra.mxu0 %v489
      %583 = vmatpush.msra.mxu0 %v488
      %584 = vmatpush.msra.mxu0 %v487
      %585 = vmatmul.f32.gmra.mxu0 %v449
      %v586 = vpop.f32.mrf.mxu0
      %v587 = vadd.f32 %v564, %v586
      %588 = vmatmul.f32.gmra.mxu0 %v453
      %v589 = vpop.f32.mrf.mxu0
      %v590 = vadd.f32 %v567, %v589
      %591 = vdwg.mxu0
      %592 = vmatpush.msra.mxu0 %v518
      %593 = vmatpush.msra.mxu0 %v517
      %594 = vmatpush.msra.mxu0 %v516
      %595 = vmatpush.msra.mxu0 %v515
      %596 = vmatpush.msra.mxu0 %v514
      %597 = vmatpush.msra.mxu0 %v513
      %598 = vmatpush.msra.mxu0 %v512
      %599 = vmatpush.msra.mxu0 %v511
      %600 = vmatpush.msra.mxu0 %v510
      %601 = vmatpush.msra.mxu0 %v509
      %602 = vmatpush.msra.mxu0 %v508
      %603 = vmatpush.msra.mxu0 %v507
      %604 = vmatpush.msra.mxu0 %v506
      %605 = vmatpush.msra.mxu0 %v505
      %606 = vmatpush.msra.mxu0 %v504
      %607 = vmatpush.msra.mxu0 %v503
      %608 = vmatmul.f32.gmra.mxu0 %v450
      %v609 = vpop.f32.mrf.mxu0
      %v610 = vadd.f32 %v587, %v609
      %611 = vmatmul.f32.gmra.mxu0 %v454
      %v612 = vpop.f32.mrf.mxu0
      %v613 = vadd.f32 %v590, %v612
      %614 = vdwg.mxu0
      %v615 = vld [vmem:[%s5] sm:$0xf]
      %v616 = vld [vmem:[%s6] sm:$0xf]
      %618 = vset.pattern.permute.xlu0 0
      %619 = vperm.xlu0 %618, %v616
      %v620 = vpop.permute.xlu0 %619
      %vm622 = vcmask 97280
      %v624 = vsel %vm622, %v615, 0
      %vm626 = vcmask 1043456
      %v628 = vsel %vm626, %v613, 0
      %630 = vmatpush.msra.mxu0 0.0
      %631 = vmatpush.msra.mxu0 0.0
      %632 = vmatpush.msra.mxu0 0.0
      %633 = vmatpush.msra.mxu0 0.0
      %634 = vmatpush.msra.mxu0 0.0
      %635 = vmatpush.msra.mxu0 0.0
      %636 = vmatpush.msra.mxu0 0.0
      %637 = vmatpush.msra.mxu0 0.0
      %638 = vmatpush.msra.mxu0 0.0
      %639 = vmatpush.msra.mxu0 0.0
      %640 = vmatpush.msra.mxu0 0.0
      %641 = vmatpush.msra.mxu0 0.0
      %642 = vmatpush.msra.mxu0 0.0
      %643 = vmatpush.msra.mxu0 0.0
      %644 = vmatpush.msra.mxu0 %v628
      %645 = vmatpush.msra.mxu0 %v610
      %646 = vmatmul.f32.gmra.mxu0 %v624
      %v647 = vpop.f32.mrf.mxu0
      %v648 = vadd.f32 %v620, %v647
      %649 = vdwg.mxu0
      %vm650 = vcmask 19456
      %651 = vst.msk [vmem:[%s276] sm:$0xf] %vm650, %v648
      %p652 = scmp.lt.s32.totalorder %s18, 15
      %s653 = scalar_select %p652, %s18, 15
      %s654 = smul.addr %s653, 4
      %s655 = scalar_lea.vmem %s7, %s654
      // Predicated region
      $region49: #{sfadnet_forward.17} parent=47 // pred_check
        %p656 = pneg %p188
      $region50: #{sfadnet_forward.17} parent=47 // pred_check_branch
        %658 = sbr.rel (%p656) target = $region52
      $region51: #{sfadnet_forward.17} parent=47 // pred_region
        _
      $region52: #{sfadnet_forward.17} parent=47 // pred_fallthru
        _
    $region48: #{sfadnet_forward.17} parent=5 // pred_fallthru
      _
    %p659 = scmp.le.s32.totalorder 2, %s13
    // Predicated region
    $region53: #{sfadnet_forward.17} parent=5 // pred_check
      %p660 = pneg %p659
    $region54: #{sfadnet_forward.17} parent=5 // pred_check_branch
      %662 = sbr.rel (%p660) target = $region56
    $region55: #{sfadnet_forward.17} parent=5 // pred_region
      %s663 = ssub.s32 %s13, 2
      // Predicated region
      $region57: #{sfadnet_forward.17} parent=55 // pred_check
        %p664 = pneg %p194
      $region58: #{sfadnet_forward.17} parent=55 // pred_check_branch
        %666 = sbr.rel (%p664) target = $region60
      $region59: #{sfadnet_forward.17} parent=55 // pred_region
        %p667 = scmp.lt.s32.totalorder %s19, 15
        %s668 = scalar_select %p667, %s19, 15
        %s669 = smul.addr %s668, 4
        %s670 = scalar_lea.vmem %s7, %s669
      $region60: #{sfadnet_forward.17} parent=55 // pred_fallthru
        _
    $region56: #{sfadnet_forward.17} parent=5 // pred_fallthru
      _
  $region6: #{sfadnet_forward.17} parent=0 // loop_footer
    %s17 = sadd.s32 1, %s13
  $region7: #{sfadnet_forward.17} parent=0 // loop_footer_branch
    %12 = sbr.rel target = $region3
  $region8: #{sfadnet_forward.17} parent=0 // loop_exit
    _

</llo_original>
